<compile_context>
chip_gen: v5e
topology: v5e:2x2
jax: 0.10.0
libtpu: 0.0.40
codegen_flags: <defaults>
</compile_context>

<pallas_src>
import jax
import jax.numpy as jnp
from jax.experimental import pallas as pl
from jax.experimental.pallas import tpu as pltpu  # noqa: F401  (TPU backend)

# ---- small synthetic config (stands in for xclip-base-patch32) ----
BATCH, FRAMES, CHANNELS, IMG, PATCH = 2, 4, 3, 16, 8
GRID_HW = IMG // PATCH
NUM_PATCHES = GRID_HW * GRID_HW          # 4
SEQ = NUM_PATCHES + 1                    # cls token + patches = 5
HIDDEN, HEADS = 32, 4
HEAD_DIM = HIDDEN // HEADS
MLP = 4 * HIDDEN
LAYERS = 2
NUM_LABELS = 5
EPS = 1e-5

NF = BATCH * FRAMES                      # merged batch*frames images = 8
TOKENS = NF * SEQ                        # rows of the activation slab = 40
CPP = CHANNELS * PATCH * PATCH           # im2col width = 192
LOGIT_PAD = 128                          # lane-dense classifier output width
POOL_ROWS = 8                            # batch dim padded to one full sublane tile
OUT_W = 2 * LOGIT_PAD                    # single dense output slab width = 256


# ---------------- in-kernel helpers ----------------
def _ln(x, gamma, beta):
    mu = jnp.mean(x, axis=-1, keepdims=True)
    var = jnp.mean(jnp.square(x - mu), axis=-1, keepdims=True)
    return (x - mu) * jax.lax.rsqrt(var + EPS) * gamma + beta


# ---------------- single fused Pallas kernel ----------------
def xclip_fused_kernel(x_ref, wpatch_ref, posb_ref, preg_ref, preb_ref,
                       mask_ref, pool_ref,
                       ln1g_ref, ln1b_ref, wqkv_ref, bqkv_ref, wo_ref, bo_ref,
                       ln2g_ref, ln2b_ref, w1_ref, b1_ref, w2_ref, b2_ref,
                       clsw_ref, clsb_ref,
                       out_ref):
    # ---- prologue: patch embed + (cls|pos) bias + pre-LN ----
    # x rows 0..NF-1 are zero (cls rows); posb carries cls+pos[0] there and
    # pos[1+p] on the patch rows, so one matmul + one add builds the whole slab.
    xs = jnp.dot(x_ref[...], wpatch_ref[...],
                 preferred_element_type=jnp.float32)               # (TOKENS, D)
    xs = xs + posb_ref[...]
    xs = _ln(xs, preg_ref[...], preb_ref[...])                     # pre_layernorm

    mask_add = mask_ref[...]                                       # (TOKENS, TOKENS)
    scale = jnp.float32(HEAD_DIM ** -0.5)

    # ---- transformer layers (pre-LN, quick-GELU), fully unrolled ----
    for l in range(LAYERS):
        # --- self-attention block ---
        h = _ln(xs, ln1g_ref[l], ln1b_ref[l])
        qkv = jnp.dot(h.astype(jnp.bfloat16), wqkv_ref[l],
                      preferred_element_type=jnp.float32) + bqkv_ref[l]   # (40, 96)
        q_all = (qkv[:, :HIDDEN] * scale).astype(jnp.bfloat16)
        k_all = qkv[:, HIDDEN:2 * HIDDEN].astype(jnp.bfloat16)
        v_all = qkv[:, 2 * HIDDEN:].astype(jnp.bfloat16)

        heads_out = []
        for hd in range(HEADS):
            lo = hd * HEAD_DIM
            qh = q_all[:, lo:lo + HEAD_DIM]
            kh = k_all[:, lo:lo + HEAD_DIM]
            vh = v_all[:, lo:lo + HEAD_DIM]
            s = jax.lax.dot_general(qh, kh, (((1,), (1,)), ((), ())),
                                    preferred_element_type=jnp.float32)   # (40, 40)
            s = s + mask_add                                      # same-image mask
            s = s - jnp.max(s, axis=-1, keepdims=True)
            p = jnp.exp(s)
            p = p * pl.reciprocal(jnp.sum(p, axis=-1, keepdims=True), approx=True)
            heads_out.append(jnp.dot(p.astype(jnp.bfloat16), vh,
                                     preferred_element_type=jnp.float32))  # (40, 8)
        # concat(heads) @ Wo as ONE (40,32)@(32,32) bf16 matmul.
        attn = jnp.concatenate(heads_out, axis=1).astype(jnp.bfloat16)
        attn = jnp.dot(attn, wo_ref[l], preferred_element_type=jnp.float32)
        xs = xs + attn + bo_ref[l]

        # --- MLP block (quick-GELU, as in CLIP/XCLIP) ---
        h = _ln(xs, ln2g_ref[l], ln2b_ref[l])
        h = jnp.dot(h.astype(jnp.bfloat16), w1_ref[l],
                    preferred_element_type=jnp.float32) + b1_ref[l]       # (40, 128)
        h = h * jax.nn.sigmoid(1.702 * h)
        h = jnp.dot(h.astype(jnp.bfloat16), w2_ref[l],
                    preferred_element_type=jnp.float32) + b2_ref[l]
        xs = xs + h

    # ---- pool1 (mean over seq) + pool2 (mean over frames) as one matmul ----
    # pool_ref is a host-precomputed (8, TOKENS) matrix: 1/(F*SEQ) on rows of
    # the matching batch, rows >= BATCH are all zero (sublane padding).
    pooled = jnp.dot(pool_ref[...], xs, preferred_element_type=jnp.float32)  # (8, D)
    logits = jnp.dot(pooled.astype(jnp.bfloat16), clsw_ref[...],
                     preferred_element_type=jnp.float32) + clsb_ref[...]     # (8, 128)

    # Single sublane/lane-dense output slab: lanes [0:128) logits, [128:160) pooled.
    out_ref[...] = jnp.concatenate(
        [logits, pooled,
         jnp.zeros((POOL_ROWS, LOGIT_PAD - HIDDEN), jnp.float32)], axis=1)


# ---------------- parameters (host-side folding of constants) ----------------
def init_params(key):
    def nrm(k, shape, scale=0.02):
        return scale * jax.random.normal(k, shape, jnp.float32)

    keys = iter(jax.random.split(key, 64))

    # Conv2d(C, D, kernel=P, stride=P, bias=False) expressed as a (C*P*P, D)
    # matmul weight; row ordering (c, ph, pw) matches the wrapper's im2col.
    w_patch = nrm(next(keys), (CPP, HIDDEN))

    cls = nrm(next(keys), (1, HIDDEN))
    pos = nrm(next(keys), (SEQ, HIDDEN))

    # Fold cls token + positional embedding into one additive (TOKENS, D) bias:
    #   rows 0..NF-1 (cls rows; their x rows are zero)  -> cls + pos[0]
    #   row NF + n*NUM_PATCHES + p (patch rows)         -> pos[1 + p]
    pos_bias = jnp.concatenate([
        jnp.broadcast_to(cls + pos[0:1, :], (NF, HIDDEN)),
        jnp.tile(pos[1:, :], (NF, 1)),
    ], axis=0).astype(jnp.float32)

    # Same-image additive attention mask (0 / -1e30) and the combined
    # seq-mean + frame-mean pooling matrix, both precomputed host-side.
    img = jnp.concatenate(
        [jnp.arange(NF), jnp.repeat(jnp.arange(NF), NUM_PATCHES)])    # image of row
    mask_add = jnp.where(img[:, None] == img[None, :],
                         0.0, -1e30).astype(jnp.float32)              # (40, 40)
    batch_of_row = img // FRAMES
    pool_mat = jnp.where(
        jnp.arange(POOL_ROWS)[:, None] == batch_of_row[None, :],
        1.0 / (FRAMES * SEQ), 0.0).astype(jnp.float32)                # (8, 40)

    params = {
        'w_patch': w_patch.astype(jnp.bfloat16),
        'pos_bias': pos_bias,
        'mask_add': mask_add,
        'pool_mat': pool_mat,
        'pre_ln_g': jnp.ones((1, HIDDEN), jnp.float32),
        'pre_ln_b': jnp.zeros((1, HIDDEN), jnp.float32),
        # fc_norm: defined in __init__ but never used in forward (mirrored here).
        'fc_norm_g': jnp.ones((1, HIDDEN), jnp.float32),
        'fc_norm_b': jnp.zeros((1, HIDDEN), jnp.float32),
    }

    # Per-layer weights stacked along a leading LAYERS axis; Q/K/V fused host-side.
    wqkv, wo, w1, w2 = [], [], [], []
    for _ in range(LAYERS):
        wq = nrm(next(keys), (HIDDEN, HIDDEN))
        wk = nrm(next(keys), (HIDDEN, HIDDEN))
        wv = nrm(next(keys), (HIDDEN, HIDDEN))
        wqkv.append(jnp.concatenate([wq, wk, wv], axis=1))
        wo.append(nrm(next(keys), (HIDDEN, HIDDEN)))
        w1.append(nrm(next(keys), (HIDDEN, MLP)))
        w2.append(nrm(next(keys), (MLP, HIDDEN)))
    params.update({
        'ln1_g': jnp.ones((LAYERS, 1, HIDDEN), jnp.float32),
        'ln1_b': jnp.zeros((LAYERS, 1, HIDDEN), jnp.float32),
        'wqkv': jnp.stack(wqkv).astype(jnp.bfloat16),
        'bqkv': jnp.zeros((LAYERS, 1, 3 * HIDDEN), jnp.float32),
        'wo': jnp.stack(wo).astype(jnp.bfloat16),
        'bo': jnp.zeros((LAYERS, 1, HIDDEN), jnp.float32),
        'ln2_g': jnp.ones((LAYERS, 1, HIDDEN), jnp.float32),
        'ln2_b': jnp.zeros((LAYERS, 1, HIDDEN), jnp.float32),
        'w1': jnp.stack(w1).astype(jnp.bfloat16),
        'b1': jnp.zeros((LAYERS, 1, MLP), jnp.float32),
        'w2': jnp.stack(w2).astype(jnp.bfloat16),
        'b2': jnp.zeros((LAYERS, 1, HIDDEN), jnp.float32),
    })

    # Classifier padded to a lane-dense 128-wide output; wrapper slices to NUM_LABELS.
    cls_w = nrm(next(keys), (HIDDEN, NUM_LABELS))
    params['cls_w'] = jnp.pad(
        cls_w, ((0, 0), (0, LOGIT_PAD - NUM_LABELS))).astype(jnp.bfloat16)
    params['cls_b'] = jnp.zeros((1, LOGIT_PAD), jnp.float32)
    return params


# ---------------- forward (matches XCLIPClassificationModel.forward) ----------------
def cross_entropy(logits, labels):
    logz = jax.nn.logsumexp(logits, axis=-1)
    ll = jnp.take_along_axis(logits, labels[:, None], axis=-1)[:, 0]
    return jnp.mean(logz - ll)


def xclip_classification_forward(params, pixel_values, labels=None,
                                 return_last_hidden_state=False):
    b, f, c, h, w = pixel_values.shape
    assert (b, f, c, h, w) == (BATCH, FRAMES, CHANNELS, IMG, IMG)

    # Tiny XLA im2col outside the kernel: (B,F,C,H,W) -> (NF*NP, C*P*P) patch rows,
    # then NF leading zero rows for the cls tokens (their values come from pos_bias).
    x = pixel_values.reshape(NF, CHANNELS, GRID_HW, PATCH, GRID_HW, PATCH)
    x = x.transpose(0, 2, 4, 1, 3, 5).reshape(NF * NUM_PATCHES, CPP)
    x_slab = jnp.pad(x, ((NF, 0), (0, 0))).astype(jnp.bfloat16)       # (TOKENS, CPP)

    out = pl.pallas_call(
        xclip_fused_kernel,
        out_shape=jax.ShapeDtypeStruct((POOL_ROWS, OUT_W), jnp.float32),
    )(x_slab, params['w_patch'], params['pos_bias'],
      params['pre_ln_g'], params['pre_ln_b'],
      params['mask_add'], params['pool_mat'],
      params['ln1_g'], params['ln1_b'], params['wqkv'], params['bqkv'],
      params['wo'], params['bo'], params['ln2_g'], params['ln2_b'],
      params['w1'], params['b1'], params['w2'], params['b2'],
      params['cls_w'], params['cls_b'])

    logits = out[:b, :NUM_LABELS]
    pooled_out = out[:b, LOGIT_PAD:LOGIT_PAD + HIDDEN]

    loss = None
    if labels is not None:
        loss = cross_entropy(logits.reshape(-1, NUM_LABELS), labels.reshape(-1))
    if return_last_hidden_state:
        return {'logits': logits, 'loss': loss, 'last_hidden_state': pooled_out}
    return {'logits': logits, 'loss': loss}


if __name__ == "__main__":
    key = jax.random.PRNGKey(0)
    params = init_params(key)
    pixel_values = jax.random.normal(
        jax.random.fold_in(key, 999),
        (BATCH, FRAMES, CHANNELS, IMG, IMG), jnp.float32)

    out = xclip_classification_forward(params, pixel_values,
                                       return_last_hidden_state=True)
    jax.block_until_ready(out['logits'])
    assert out['logits'].shape == (BATCH, NUM_LABELS)
    assert out['last_hidden_state'].shape == (BATCH, HIDDEN)
    print("KERNEL_OK")
</pallas_src>

<mosaic_0001>
module attributes {stable_mosaic.version = 11 : i64} {
  func.func @xclip_fused_kernel(%arg0: memref<40x192xbf16, #tpu.memory_space<vmem>>, %arg1: memref<192x32xbf16, #tpu.memory_space<vmem>>, %arg2: memref<40x32xf32, #tpu.memory_space<vmem>>, %arg3: memref<1x32xf32, #tpu.memory_space<vmem>>, %arg4: memref<1x32xf32, #tpu.memory_space<vmem>>, %arg5: memref<40x40xf32, #tpu.memory_space<vmem>>, %arg6: memref<8x40xf32, #tpu.memory_space<vmem>>, %arg7: memref<2x1x32xf32, #tpu.memory_space<vmem>>, %arg8: memref<2x1x32xf32, #tpu.memory_space<vmem>>, %arg9: memref<2x32x96xbf16, #tpu.memory_space<vmem>>, %arg10: memref<2x1x96xf32, #tpu.memory_space<vmem>>, %arg11: memref<2x32x32xbf16, #tpu.memory_space<vmem>>, %arg12: memref<2x1x32xf32, #tpu.memory_space<vmem>>, %arg13: memref<2x1x32xf32, #tpu.memory_space<vmem>>, %arg14: memref<2x1x32xf32, #tpu.memory_space<vmem>>, %arg15: memref<2x32x128xbf16, #tpu.memory_space<vmem>>, %arg16: memref<2x1x128xf32, #tpu.memory_space<vmem>>, %arg17: memref<2x128x32xbf16, #tpu.memory_space<vmem>>, %arg18: memref<2x1x32xf32, #tpu.memory_space<vmem>>, %arg19: memref<32x128xbf16, #tpu.memory_space<vmem>>, %arg20: memref<1x128xf32, #tpu.memory_space<vmem>>, %arg21: memref<8x256xf32, #tpu.memory_space<vmem>>) attributes {dimension_semantics = [], scalar_prefetch = 0 : i64, scratch_operands = 0 : i64, tpu.core_type = #tpu.core_type<tc>} {
    %c0 = arith.constant 0 : index
    %c0_0 = arith.constant 0 : index
    %0 = vector.load %arg0[%c0, %c0_0] : memref<40x192xbf16, #tpu.memory_space<vmem>>, vector<40x192xbf16>
    %c0_1 = arith.constant 0 : index
    %c0_2 = arith.constant 0 : index
    %1 = vector.load %arg1[%c0_1, %c0_2] : memref<192x32xbf16, #tpu.memory_space<vmem>>, vector<192x32xbf16>
    %cst = arith.constant dense<0.000000e+00> : vector<40x32xf32>
    %2 = tpu.matmul %0, %1, %cst {dimension_numbers = #tpu.dot_dimension_numbers<[1], [0], [0], [1], [0, 0, 1, 1], [], []>} : vector<40x192xbf16>, vector<192x32xbf16>, vector<40x32xf32> -> vector<40x32xf32>
    %c0_3 = arith.constant 0 : index
    %c0_4 = arith.constant 0 : index
    %3 = vector.load %arg2[%c0_3, %c0_4] : memref<40x32xf32, #tpu.memory_space<vmem>>, vector<40x32xf32>
    %4 = arith.addf %2, %3 : vector<40x32xf32>
    %c0_5 = arith.constant 0 : index
    %c0_6 = arith.constant 0 : index
    %5 = vector.load %arg3[%c0_5, %c0_6] : memref<1x32xf32, #tpu.memory_space<vmem>>, vector<1x32xf32>
    %c0_7 = arith.constant 0 : index
    %c0_8 = arith.constant 0 : index
    %6 = vector.load %arg4[%c0_7, %c0_8] : memref<1x32xf32, #tpu.memory_space<vmem>>, vector<1x32xf32>
    %cst_9 = arith.constant dense<0.000000e+00> : vector<40xf32>
    %7 = vector.multi_reduction <add>, %4, %cst_9 [1] : vector<40x32xf32> to vector<40xf32>
    %8 = vector.shape_cast %7 : vector<40xf32> to vector<40x1xf32>
    %cst_10 = arith.constant 3.200000e+01 : f32
    %9 = vector.broadcast %cst_10 : f32 to vector<40x1xf32>
    %10 = arith.divf %8, %9 : vector<40x1xf32>
    %11 = vector.broadcast %10 : vector<40x1xf32> to vector<40x32xf32>
    %12 = arith.subf %4, %11 : vector<40x32xf32>
    %13 = arith.mulf %12, %12 : vector<40x32xf32>
    %cst_11 = arith.constant dense<0.000000e+00> : vector<40xf32>
    %14 = vector.multi_reduction <add>, %13, %cst_11 [1] : vector<40x32xf32> to vector<40xf32>
    %15 = vector.shape_cast %14 : vector<40xf32> to vector<40x1xf32>
    %cst_12 = arith.constant 3.200000e+01 : f32
    %16 = vector.broadcast %cst_12 : f32 to vector<40x1xf32>
    %17 = arith.divf %15, %16 : vector<40x1xf32>
    %18 = vector.broadcast %10 : vector<40x1xf32> to vector<40x32xf32>
    %19 = arith.subf %4, %18 : vector<40x32xf32>
    %cst_13 = arith.constant 9.99999974E-6 : f32
    %20 = vector.broadcast %cst_13 : f32 to vector<40x1xf32>
    %21 = arith.addf %17, %20 : vector<40x1xf32>
    %22 = math.rsqrt %21 : vector<40x1xf32>
    %23 = vector.broadcast %22 : vector<40x1xf32> to vector<40x32xf32>
    %24 = arith.mulf %19, %23 : vector<40x32xf32>
    %25 = vector.broadcast %5 : vector<1x32xf32> to vector<40x32xf32>
    %26 = arith.mulf %24, %25 : vector<40x32xf32>
    %27 = vector.broadcast %6 : vector<1x32xf32> to vector<40x32xf32>
    %28 = arith.addf %26, %27 : vector<40x32xf32>
    %c0_14 = arith.constant 0 : index
    %c0_15 = arith.constant 0 : index
    %29 = vector.load %arg5[%c0_14, %c0_15] : memref<40x40xf32, #tpu.memory_space<vmem>>, vector<40x40xf32>
    %c0_16 = arith.constant 0 : index
    %c0_17 = arith.constant 0 : index
    %c0_18 = arith.constant 0 : index
    %30 = vector.load %arg7[%c0_16, %c0_17, %c0_18] : memref<2x1x32xf32, #tpu.memory_space<vmem>>, vector<1x1x32xf32>
    %31 = vector.shape_cast %30 : vector<1x1x32xf32> to vector<1x32xf32>
    %c0_19 = arith.constant 0 : index
    %c0_20 = arith.constant 0 : index
    %c0_21 = arith.constant 0 : index
    %32 = vector.load %arg8[%c0_19, %c0_20, %c0_21] : memref<2x1x32xf32, #tpu.memory_space<vmem>>, vector<1x1x32xf32>
    %33 = vector.shape_cast %32 : vector<1x1x32xf32> to vector<1x32xf32>
    %cst_22 = arith.constant dense<0.000000e+00> : vector<40xf32>
    %34 = vector.multi_reduction <add>, %28, %cst_22 [1] : vector<40x32xf32> to vector<40xf32>
    %35 = vector.shape_cast %34 : vector<40xf32> to vector<40x1xf32>
    %cst_23 = arith.constant 3.200000e+01 : f32
    %36 = vector.broadcast %cst_23 : f32 to vector<40x1xf32>
    %37 = arith.divf %35, %36 : vector<40x1xf32>
    %38 = vector.broadcast %37 : vector<40x1xf32> to vector<40x32xf32>
    %39 = arith.subf %28, %38 : vector<40x32xf32>
    %40 = arith.mulf %39, %39 : vector<40x32xf32>
    %cst_24 = arith.constant dense<0.000000e+00> : vector<40xf32>
    %41 = vector.multi_reduction <add>, %40, %cst_24 [1] : vector<40x32xf32> to vector<40xf32>
    %42 = vector.shape_cast %41 : vector<40xf32> to vector<40x1xf32>
    %cst_25 = arith.constant 3.200000e+01 : f32
    %43 = vector.broadcast %cst_25 : f32 to vector<40x1xf32>
    %44 = arith.divf %42, %43 : vector<40x1xf32>
    %45 = vector.broadcast %37 : vector<40x1xf32> to vector<40x32xf32>
    %46 = arith.subf %28, %45 : vector<40x32xf32>
    %cst_26 = arith.constant 9.99999974E-6 : f32
    %47 = vector.broadcast %cst_26 : f32 to vector<40x1xf32>
    %48 = arith.addf %44, %47 : vector<40x1xf32>
    %49 = math.rsqrt %48 : vector<40x1xf32>
    %50 = vector.broadcast %49 : vector<40x1xf32> to vector<40x32xf32>
    %51 = arith.mulf %46, %50 : vector<40x32xf32>
    %52 = vector.broadcast %31 : vector<1x32xf32> to vector<40x32xf32>
    %53 = arith.mulf %51, %52 : vector<40x32xf32>
    %54 = vector.broadcast %33 : vector<1x32xf32> to vector<40x32xf32>
    %55 = arith.addf %53, %54 : vector<40x32xf32>
    %56 = arith.truncf %55 : vector<40x32xf32> to vector<40x32xbf16>
    %c0_27 = arith.constant 0 : index
    %c0_28 = arith.constant 0 : index
    %c0_29 = arith.constant 0 : index
    %57 = vector.load %arg9[%c0_27, %c0_28, %c0_29] : memref<2x32x96xbf16, #tpu.memory_space<vmem>>, vector<1x32x96xbf16>
    %58 = vector.shape_cast %57 : vector<1x32x96xbf16> to vector<32x96xbf16>
    %cst_30 = arith.constant dense<0.000000e+00> : vector<40x96xf32>
    %59 = tpu.matmul %56, %58, %cst_30 {dimension_numbers = #tpu.dot_dimension_numbers<[1], [0], [0], [1], [0, 0, 1, 1], [], []>} : vector<40x32xbf16>, vector<32x96xbf16>, vector<40x96xf32> -> vector<40x96xf32>
    %c0_31 = arith.constant 0 : index
    %c0_32 = arith.constant 0 : index
    %c0_33 = arith.constant 0 : index
    %60 = vector.load %arg10[%c0_31, %c0_32, %c0_33] : memref<2x1x96xf32, #tpu.memory_space<vmem>>, vector<1x1x96xf32>
    %61 = vector.shape_cast %60 : vector<1x1x96xf32> to vector<1x96xf32>
    %62 = vector.broadcast %61 : vector<1x96xf32> to vector<40x96xf32>
    %63 = arith.addf %59, %62 : vector<40x96xf32>
    %64 = vector.extract_strided_slice %63 {offsets = [0, 0], sizes = [40, 32], strides = [1, 1]} : vector<40x96xf32> to vector<40x32xf32>
    %cst_34 = arith.constant 0.353553385 : f32
    %65 = vector.broadcast %cst_34 : f32 to vector<40x32xf32>
    %66 = arith.mulf %64, %65 : vector<40x32xf32>
    %67 = arith.truncf %66 : vector<40x32xf32> to vector<40x32xbf16>
    %68 = vector.extract_strided_slice %63 {offsets = [0, 32], sizes = [40, 32], strides = [1, 1]} : vector<40x96xf32> to vector<40x32xf32>
    %69 = arith.truncf %68 : vector<40x32xf32> to vector<40x32xbf16>
    %70 = vector.extract_strided_slice %63 {offsets = [0, 64], sizes = [40, 32], strides = [1, 1]} : vector<40x96xf32> to vector<40x32xf32>
    %71 = arith.truncf %70 : vector<40x32xf32> to vector<40x32xbf16>
    %72 = vector.extract_strided_slice %67 {offsets = [0, 0], sizes = [40, 8], strides = [1, 1]} : vector<40x32xbf16> to vector<40x8xbf16>
    %73 = vector.extract_strided_slice %69 {offsets = [0, 0], sizes = [40, 8], strides = [1, 1]} : vector<40x32xbf16> to vector<40x8xbf16>
    %74 = vector.extract_strided_slice %71 {offsets = [0, 0], sizes = [40, 8], strides = [1, 1]} : vector<40x32xbf16> to vector<40x8xbf16>
    %cst_35 = arith.constant dense<0.000000e+00> : vector<40x40xf32>
    %75 = tpu.matmul %72, %73, %cst_35 {dimension_numbers = #tpu.dot_dimension_numbers<[1], [1], [0], [0], [0, 0, 1, 0], [], []>} : vector<40x8xbf16>, vector<40x8xbf16>, vector<40x40xf32> -> vector<40x40xf32>
    %76 = arith.addf %75, %29 : vector<40x40xf32>
    %cst_36 = arith.constant dense<0xFF800000> : vector<40xf32>
    %77 = vector.multi_reduction <maximumf>, %76, %cst_36 [1] : vector<40x40xf32> to vector<40xf32>
    %78 = vector.shape_cast %77 : vector<40xf32> to vector<40x1xf32>
    %79 = vector.broadcast %78 : vector<40x1xf32> to vector<40x40xf32>
    %80 = arith.subf %76, %79 : vector<40x40xf32>
    %81 = math.exp %80 : vector<40x40xf32>
    %cst_37 = arith.constant dense<0.000000e+00> : vector<40xf32>
    %82 = vector.multi_reduction <add>, %81, %cst_37 [1] : vector<40x40xf32> to vector<40xf32>
    %83 = vector.shape_cast %82 : vector<40xf32> to vector<40x1xf32>
    %84 = tpu.reciprocal %83 {approx = true} : vector<40x1xf32> -> vector<40x1xf32>
    %85 = vector.broadcast %84 : vector<40x1xf32> to vector<40x40xf32>
    %86 = arith.mulf %81, %85 : vector<40x40xf32>
    %87 = arith.truncf %86 : vector<40x40xf32> to vector<40x40xbf16>
    %cst_38 = arith.constant dense<0.000000e+00> : vector<40x8xf32>
    %88 = tpu.matmul %87, %74, %cst_38 {dimension_numbers = #tpu.dot_dimension_numbers<[1], [0], [0], [1], [0, 0, 1, 1], [], []>} : vector<40x40xbf16>, vector<40x8xbf16>, vector<40x8xf32> -> vector<40x8xf32>
    %89 = vector.extract_strided_slice %67 {offsets = [0, 8], sizes = [40, 8], strides = [1, 1]} : vector<40x32xbf16> to vector<40x8xbf16>
    %90 = vector.extract_strided_slice %69 {offsets = [0, 8], sizes = [40, 8], strides = [1, 1]} : vector<40x32xbf16> to vector<40x8xbf16>
    %91 = vector.extract_strided_slice %71 {offsets = [0, 8], sizes = [40, 8], strides = [1, 1]} : vector<40x32xbf16> to vector<40x8xbf16>
    %cst_39 = arith.constant dense<0.000000e+00> : vector<40x40xf32>
    %92 = tpu.matmul %89, %90, %cst_39 {dimension_numbers = #tpu.dot_dimension_numbers<[1], [1], [0], [0], [0, 0, 1, 0], [], []>} : vector<40x8xbf16>, vector<40x8xbf16>, vector<40x40xf32> -> vector<40x40xf32>
    %93 = arith.addf %92, %29 : vector<40x40xf32>
    %cst_40 = arith.constant dense<0xFF800000> : vector<40xf32>
    %94 = vector.multi_reduction <maximumf>, %93, %cst_40 [1] : vector<40x40xf32> to vector<40xf32>
    %95 = vector.shape_cast %94 : vector<40xf32> to vector<40x1xf32>
    %96 = vector.broadcast %95 : vector<40x1xf32> to vector<40x40xf32>
    %97 = arith.subf %93, %96 : vector<40x40xf32>
    %98 = math.exp %97 : vector<40x40xf32>
    %cst_41 = arith.constant dense<0.000000e+00> : vector<40xf32>
    %99 = vector.multi_reduction <add>, %98, %cst_41 [1] : vector<40x40xf32> to vector<40xf32>
    %100 = vector.shape_cast %99 : vector<40xf32> to vector<40x1xf32>
    %101 = tpu.reciprocal %100 {approx = true} : vector<40x1xf32> -> vector<40x1xf32>
    %102 = vector.broadcast %101 : vector<40x1xf32> to vector<40x40xf32>
    %103 = arith.mulf %98, %102 : vector<40x40xf32>
    %104 = arith.truncf %103 : vector<40x40xf32> to vector<40x40xbf16>
    %cst_42 = arith.constant dense<0.000000e+00> : vector<40x8xf32>
    %105 = tpu.matmul %104, %91, %cst_42 {dimension_numbers = #tpu.dot_dimension_numbers<[1], [0], [0], [1], [0, 0, 1, 1], [], []>} : vector<40x40xbf16>, vector<40x8xbf16>, vector<40x8xf32> -> vector<40x8xf32>
    %106 = vector.extract_strided_slice %67 {offsets = [0, 16], sizes = [40, 8], strides = [1, 1]} : vector<40x32xbf16> to vector<40x8xbf16>
    %107 = vector.extract_strided_slice %69 {offsets = [0, 16], sizes = [40, 8], strides = [1, 1]} : vector<40x32xbf16> to vector<40x8xbf16>
    %108 = vector.extract_strided_slice %71 {offsets = [0, 16], sizes = [40, 8], strides = [1, 1]} : vector<40x32xbf16> to vector<40x8xbf16>
    %cst_43 = arith.constant dense<0.000000e+00> : vector<40x40xf32>
    %109 = tpu.matmul %106, %107, %cst_43 {dimension_numbers = #tpu.dot_dimension_numbers<[1], [1], [0], [0], [0, 0, 1, 0], [], []>} : vector<40x8xbf16>, vector<40x8xbf16>, vector<40x40xf32> -> vector<40x40xf32>
    %110 = arith.addf %109, %29 : vector<40x40xf32>
    %cst_44 = arith.constant dense<0xFF800000> : vector<40xf32>
    %111 = vector.multi_reduction <maximumf>, %110, %cst_44 [1] : vector<40x40xf32> to vector<40xf32>
    %112 = vector.shape_cast %111 : vector<40xf32> to vector<40x1xf32>
    %113 = vector.broadcast %112 : vector<40x1xf32> to vector<40x40xf32>
    %114 = arith.subf %110, %113 : vector<40x40xf32>
    %115 = math.exp %114 : vector<40x40xf32>
    %cst_45 = arith.constant dense<0.000000e+00> : vector<40xf32>
    %116 = vector.multi_reduction <add>, %115, %cst_45 [1] : vector<40x40xf32> to vector<40xf32>
    %117 = vector.shape_cast %116 : vector<40xf32> to vector<40x1xf32>
    %118 = tpu.reciprocal %117 {approx = true} : vector<40x1xf32> -> vector<40x1xf32>
    %119 = vector.broadcast %118 : vector<40x1xf32> to vector<40x40xf32>
    %120 = arith.mulf %115, %119 : vector<40x40xf32>
    %121 = arith.truncf %120 : vector<40x40xf32> to vector<40x40xbf16>
    %cst_46 = arith.constant dense<0.000000e+00> : vector<40x8xf32>
    %122 = tpu.matmul %121, %108, %cst_46 {dimension_numbers = #tpu.dot_dimension_numbers<[1], [0], [0], [1], [0, 0, 1, 1], [], []>} : vector<40x40xbf16>, vector<40x8xbf16>, vector<40x8xf32> -> vector<40x8xf32>
    %123 = vector.extract_strided_slice %67 {offsets = [0, 24], sizes = [40, 8], strides = [1, 1]} : vector<40x32xbf16> to vector<40x8xbf16>
    %124 = vector.extract_strided_slice %69 {offsets = [0, 24], sizes = [40, 8], strides = [1, 1]} : vector<40x32xbf16> to vector<40x8xbf16>
    %125 = vector.extract_strided_slice %71 {offsets = [0, 24], sizes = [40, 8], strides = [1, 1]} : vector<40x32xbf16> to vector<40x8xbf16>
    %cst_47 = arith.constant dense<0.000000e+00> : vector<40x40xf32>
    %126 = tpu.matmul %123, %124, %cst_47 {dimension_numbers = #tpu.dot_dimension_numbers<[1], [1], [0], [0], [0, 0, 1, 0], [], []>} : vector<40x8xbf16>, vector<40x8xbf16>, vector<40x40xf32> -> vector<40x40xf32>
    %127 = arith.addf %126, %29 : vector<40x40xf32>
    %cst_48 = arith.constant dense<0xFF800000> : vector<40xf32>
    %128 = vector.multi_reduction <maximumf>, %127, %cst_48 [1] : vector<40x40xf32> to vector<40xf32>
    %129 = vector.shape_cast %128 : vector<40xf32> to vector<40x1xf32>
    %130 = vector.broadcast %129 : vector<40x1xf32> to vector<40x40xf32>
    %131 = arith.subf %127, %130 : vector<40x40xf32>
    %132 = math.exp %131 : vector<40x40xf32>
    %cst_49 = arith.constant dense<0.000000e+00> : vector<40xf32>
    %133 = vector.multi_reduction <add>, %132, %cst_49 [1] : vector<40x40xf32> to vector<40xf32>
    %134 = vector.shape_cast %133 : vector<40xf32> to vector<40x1xf32>
    %135 = tpu.reciprocal %134 {approx = true} : vector<40x1xf32> -> vector<40x1xf32>
    %136 = vector.broadcast %135 : vector<40x1xf32> to vector<40x40xf32>
    %137 = arith.mulf %132, %136 : vector<40x40xf32>
    %138 = arith.truncf %137 : vector<40x40xf32> to vector<40x40xbf16>
    %cst_50 = arith.constant dense<0.000000e+00> : vector<40x8xf32>
    %139 = tpu.matmul %138, %125, %cst_50 {dimension_numbers = #tpu.dot_dimension_numbers<[1], [0], [0], [1], [0, 0, 1, 1], [], []>} : vector<40x40xbf16>, vector<40x8xbf16>, vector<40x8xf32> -> vector<40x8xf32>
    %140 = tpu.concatenate %88, %105, %122, %139 in 1 : vector<40x8xf32>, vector<40x8xf32>, vector<40x8xf32>, vector<40x8xf32> -> vector<40x32xf32>
    %141 = arith.truncf %140 : vector<40x32xf32> to vector<40x32xbf16>
    %c0_51 = arith.constant 0 : index
    %c0_52 = arith.constant 0 : index
    %c0_53 = arith.constant 0 : index
    %142 = vector.load %arg11[%c0_51, %c0_52, %c0_53] : memref<2x32x32xbf16, #tpu.memory_space<vmem>>, vector<1x32x32xbf16>
    %143 = vector.shape_cast %142 : vector<1x32x32xbf16> to vector<32x32xbf16>
    %cst_54 = arith.constant dense<0.000000e+00> : vector<40x32xf32>
    %144 = tpu.matmul %141, %143, %cst_54 {dimension_numbers = #tpu.dot_dimension_numbers<[1], [0], [0], [1], [0, 0, 1, 1], [], []>} : vector<40x32xbf16>, vector<32x32xbf16>, vector<40x32xf32> -> vector<40x32xf32>
    %145 = arith.addf %28, %144 : vector<40x32xf32>
    %c0_55 = arith.constant 0 : index
    %c0_56 = arith.constant 0 : index
    %c0_57 = arith.constant 0 : index
    %146 = vector.load %arg12[%c0_55, %c0_56, %c0_57] : memref<2x1x32xf32, #tpu.memory_space<vmem>>, vector<1x1x32xf32>
    %147 = vector.shape_cast %146 : vector<1x1x32xf32> to vector<1x32xf32>
    %148 = vector.broadcast %147 : vector<1x32xf32> to vector<40x32xf32>
    %149 = arith.addf %145, %148 : vector<40x32xf32>
    %c0_58 = arith.constant 0 : index
    %c0_59 = arith.constant 0 : index
    %c0_60 = arith.constant 0 : index
    %150 = vector.load %arg13[%c0_58, %c0_59, %c0_60] : memref<2x1x32xf32, #tpu.memory_space<vmem>>, vector<1x1x32xf32>
    %151 = vector.shape_cast %150 : vector<1x1x32xf32> to vector<1x32xf32>
    %c0_61 = arith.constant 0 : index
    %c0_62 = arith.constant 0 : index
    %c0_63 = arith.constant 0 : index
    %152 = vector.load %arg14[%c0_61, %c0_62, %c0_63] : memref<2x1x32xf32, #tpu.memory_space<vmem>>, vector<1x1x32xf32>
    %153 = vector.shape_cast %152 : vector<1x1x32xf32> to vector<1x32xf32>
    %cst_64 = arith.constant dense<0.000000e+00> : vector<40xf32>
    %154 = vector.multi_reduction <add>, %149, %cst_64 [1] : vector<40x32xf32> to vector<40xf32>
    %155 = vector.shape_cast %154 : vector<40xf32> to vector<40x1xf32>
    %cst_65 = arith.constant 3.200000e+01 : f32
    %156 = vector.broadcast %cst_65 : f32 to vector<40x1xf32>
    %157 = arith.divf %155, %156 : vector<40x1xf32>
    %158 = vector.broadcast %157 : vector<40x1xf32> to vector<40x32xf32>
    %159 = arith.subf %149, %158 : vector<40x32xf32>
    %160 = arith.mulf %159, %159 : vector<40x32xf32>
    %cst_66 = arith.constant dense<0.000000e+00> : vector<40xf32>
    %161 = vector.multi_reduction <add>, %160, %cst_66 [1] : vector<40x32xf32> to vector<40xf32>
    %162 = vector.shape_cast %161 : vector<40xf32> to vector<40x1xf32>
    %cst_67 = arith.constant 3.200000e+01 : f32
    %163 = vector.broadcast %cst_67 : f32 to vector<40x1xf32>
    %164 = arith.divf %162, %163 : vector<40x1xf32>
    %165 = vector.broadcast %157 : vector<40x1xf32> to vector<40x32xf32>
    %166 = arith.subf %149, %165 : vector<40x32xf32>
    %cst_68 = arith.constant 9.99999974E-6 : f32
    %167 = vector.broadcast %cst_68 : f32 to vector<40x1xf32>
    %168 = arith.addf %164, %167 : vector<40x1xf32>
    %169 = math.rsqrt %168 : vector<40x1xf32>
    %170 = vector.broadcast %169 : vector<40x1xf32> to vector<40x32xf32>
    %171 = arith.mulf %166, %170 : vector<40x32xf32>
    %172 = vector.broadcast %151 : vector<1x32xf32> to vector<40x32xf32>
    %173 = arith.mulf %171, %172 : vector<40x32xf32>
    %174 = vector.broadcast %153 : vector<1x32xf32> to vector<40x32xf32>
    %175 = arith.addf %173, %174 : vector<40x32xf32>
    %176 = arith.truncf %175 : vector<40x32xf32> to vector<40x32xbf16>
    %c0_69 = arith.constant 0 : index
    %c0_70 = arith.constant 0 : index
    %c0_71 = arith.constant 0 : index
    %177 = vector.load %arg15[%c0_69, %c0_70, %c0_71] : memref<2x32x128xbf16, #tpu.memory_space<vmem>>, vector<1x32x128xbf16>
    %178 = vector.shape_cast %177 : vector<1x32x128xbf16> to vector<32x128xbf16>
    %cst_72 = arith.constant dense<0.000000e+00> : vector<40x128xf32>
    %179 = tpu.matmul %176, %178, %cst_72 {dimension_numbers = #tpu.dot_dimension_numbers<[1], [0], [0], [1], [0, 0, 1, 1], [], []>} : vector<40x32xbf16>, vector<32x128xbf16>, vector<40x128xf32> -> vector<40x128xf32>
    %c0_73 = arith.constant 0 : index
    %c0_74 = arith.constant 0 : index
    %c0_75 = arith.constant 0 : index
    %180 = vector.load %arg16[%c0_73, %c0_74, %c0_75] : memref<2x1x128xf32, #tpu.memory_space<vmem>>, vector<1x1x128xf32>
    %181 = vector.shape_cast %180 : vector<1x1x128xf32> to vector<1x128xf32>
    %182 = vector.broadcast %181 : vector<1x128xf32> to vector<40x128xf32>
    %183 = arith.addf %179, %182 : vector<40x128xf32>
    %cst_76 = arith.constant 1.702000e+00 : f32
    %184 = vector.broadcast %cst_76 : f32 to vector<40x128xf32>
    %185 = arith.mulf %184, %183 : vector<40x128xf32>
    %186 = arith.negf %185 : vector<40x128xf32>
    %187 = math.exp %186 : vector<40x128xf32>
    %cst_77 = arith.constant 1.000000e+00 : f32
    %188 = vector.broadcast %cst_77 : f32 to vector<40x128xf32>
    %189 = arith.addf %188, %187 : vector<40x128xf32>
    %190 = arith.divf %188, %189 : vector<40x128xf32>
    %191 = arith.mulf %183, %190 : vector<40x128xf32>
    %192 = arith.truncf %191 : vector<40x128xf32> to vector<40x128xbf16>
    %c0_78 = arith.constant 0 : index
    %c0_79 = arith.constant 0 : index
    %c0_80 = arith.constant 0 : index
    %193 = vector.load %arg17[%c0_78, %c0_79, %c0_80] : memref<2x128x32xbf16, #tpu.memory_space<vmem>>, vector<1x128x32xbf16>
    %194 = vector.shape_cast %193 : vector<1x128x32xbf16> to vector<128x32xbf16>
    %cst_81 = arith.constant dense<0.000000e+00> : vector<40x32xf32>
    %195 = tpu.matmul %192, %194, %cst_81 {dimension_numbers = #tpu.dot_dimension_numbers<[1], [0], [0], [1], [0, 0, 1, 1], [], []>} : vector<40x128xbf16>, vector<128x32xbf16>, vector<40x32xf32> -> vector<40x32xf32>
    %c0_82 = arith.constant 0 : index
    %c0_83 = arith.constant 0 : index
    %c0_84 = arith.constant 0 : index
    %196 = vector.load %arg18[%c0_82, %c0_83, %c0_84] : memref<2x1x32xf32, #tpu.memory_space<vmem>>, vector<1x1x32xf32>
    %197 = vector.shape_cast %196 : vector<1x1x32xf32> to vector<1x32xf32>
    %198 = vector.broadcast %197 : vector<1x32xf32> to vector<40x32xf32>
    %199 = arith.addf %195, %198 : vector<40x32xf32>
    %200 = arith.addf %149, %199 : vector<40x32xf32>
    %c1 = arith.constant 1 : index
    %c0_85 = arith.constant 0 : index
    %c0_86 = arith.constant 0 : index
    %201 = vector.load %arg7[%c1, %c0_85, %c0_86] : memref<2x1x32xf32, #tpu.memory_space<vmem>>, vector<1x1x32xf32>
    %202 = vector.shape_cast %201 : vector<1x1x32xf32> to vector<1x32xf32>
    %c1_87 = arith.constant 1 : index
    %c0_88 = arith.constant 0 : index
    %c0_89 = arith.constant 0 : index
    %203 = vector.load %arg8[%c1_87, %c0_88, %c0_89] : memref<2x1x32xf32, #tpu.memory_space<vmem>>, vector<1x1x32xf32>
    %204 = vector.shape_cast %203 : vector<1x1x32xf32> to vector<1x32xf32>
    %cst_90 = arith.constant dense<0.000000e+00> : vector<40xf32>
    %205 = vector.multi_reduction <add>, %200, %cst_90 [1] : vector<40x32xf32> to vector<40xf32>
    %206 = vector.shape_cast %205 : vector<40xf32> to vector<40x1xf32>
    %cst_91 = arith.constant 3.200000e+01 : f32
    %207 = vector.broadcast %cst_91 : f32 to vector<40x1xf32>
    %208 = arith.divf %206, %207 : vector<40x1xf32>
    %209 = vector.broadcast %208 : vector<40x1xf32> to vector<40x32xf32>
    %210 = arith.subf %200, %209 : vector<40x32xf32>
    %211 = arith.mulf %210, %210 : vector<40x32xf32>
    %cst_92 = arith.constant dense<0.000000e+00> : vector<40xf32>
    %212 = vector.multi_reduction <add>, %211, %cst_92 [1] : vector<40x32xf32> to vector<40xf32>
    %213 = vector.shape_cast %212 : vector<40xf32> to vector<40x1xf32>
    %cst_93 = arith.constant 3.200000e+01 : f32
    %214 = vector.broadcast %cst_93 : f32 to vector<40x1xf32>
    %215 = arith.divf %213, %214 : vector<40x1xf32>
    %216 = vector.broadcast %208 : vector<40x1xf32> to vector<40x32xf32>
    %217 = arith.subf %200, %216 : vector<40x32xf32>
    %cst_94 = arith.constant 9.99999974E-6 : f32
    %218 = vector.broadcast %cst_94 : f32 to vector<40x1xf32>
    %219 = arith.addf %215, %218 : vector<40x1xf32>
    %220 = math.rsqrt %219 : vector<40x1xf32>
    %221 = vector.broadcast %220 : vector<40x1xf32> to vector<40x32xf32>
    %222 = arith.mulf %217, %221 : vector<40x32xf32>
    %223 = vector.broadcast %202 : vector<1x32xf32> to vector<40x32xf32>
    %224 = arith.mulf %222, %223 : vector<40x32xf32>
    %225 = vector.broadcast %204 : vector<1x32xf32> to vector<40x32xf32>
    %226 = arith.addf %224, %225 : vector<40x32xf32>
    %227 = arith.truncf %226 : vector<40x32xf32> to vector<40x32xbf16>
    %c1_95 = arith.constant 1 : index
    %c0_96 = arith.constant 0 : index
    %c0_97 = arith.constant 0 : index
    %228 = vector.load %arg9[%c1_95, %c0_96, %c0_97] : memref<2x32x96xbf16, #tpu.memory_space<vmem>>, vector<1x32x96xbf16>
    %229 = vector.shape_cast %228 : vector<1x32x96xbf16> to vector<32x96xbf16>
    %cst_98 = arith.constant dense<0.000000e+00> : vector<40x96xf32>
    %230 = tpu.matmul %227, %229, %cst_98 {dimension_numbers = #tpu.dot_dimension_numbers<[1], [0], [0], [1], [0, 0, 1, 1], [], []>} : vector<40x32xbf16>, vector<32x96xbf16>, vector<40x96xf32> -> vector<40x96xf32>
    %c1_99 = arith.constant 1 : index
    %c0_100 = arith.constant 0 : index
    %c0_101 = arith.constant 0 : index
    %231 = vector.load %arg10[%c1_99, %c0_100, %c0_101] : memref<2x1x96xf32, #tpu.memory_space<vmem>>, vector<1x1x96xf32>
    %232 = vector.shape_cast %231 : vector<1x1x96xf32> to vector<1x96xf32>
    %233 = vector.broadcast %232 : vector<1x96xf32> to vector<40x96xf32>
    %234 = arith.addf %230, %233 : vector<40x96xf32>
    %235 = vector.extract_strided_slice %234 {offsets = [0, 0], sizes = [40, 32], strides = [1, 1]} : vector<40x96xf32> to vector<40x32xf32>
    %cst_102 = arith.constant 0.353553385 : f32
    %236 = vector.broadcast %cst_102 : f32 to vector<40x32xf32>
    %237 = arith.mulf %235, %236 : vector<40x32xf32>
    %238 = arith.truncf %237 : vector<40x32xf32> to vector<40x32xbf16>
    %239 = vector.extract_strided_slice %234 {offsets = [0, 32], sizes = [40, 32], strides = [1, 1]} : vector<40x96xf32> to vector<40x32xf32>
    %240 = arith.truncf %239 : vector<40x32xf32> to vector<40x32xbf16>
    %241 = vector.extract_strided_slice %234 {offsets = [0, 64], sizes = [40, 32], strides = [1, 1]} : vector<40x96xf32> to vector<40x32xf32>
    %242 = arith.truncf %241 : vector<40x32xf32> to vector<40x32xbf16>
    %243 = vector.extract_strided_slice %238 {offsets = [0, 0], sizes = [40, 8], strides = [1, 1]} : vector<40x32xbf16> to vector<40x8xbf16>
    %244 = vector.extract_strided_slice %240 {offsets = [0, 0], sizes = [40, 8], strides = [1, 1]} : vector<40x32xbf16> to vector<40x8xbf16>
    %245 = vector.extract_strided_slice %242 {offsets = [0, 0], sizes = [40, 8], strides = [1, 1]} : vector<40x32xbf16> to vector<40x8xbf16>
    %cst_103 = arith.constant dense<0.000000e+00> : vector<40x40xf32>
    %246 = tpu.matmul %243, %244, %cst_103 {dimension_numbers = #tpu.dot_dimension_numbers<[1], [1], [0], [0], [0, 0, 1, 0], [], []>} : vector<40x8xbf16>, vector<40x8xbf16>, vector<40x40xf32> -> vector<40x40xf32>
    %247 = arith.addf %246, %29 : vector<40x40xf32>
    %cst_104 = arith.constant dense<0xFF800000> : vector<40xf32>
    %248 = vector.multi_reduction <maximumf>, %247, %cst_104 [1] : vector<40x40xf32> to vector<40xf32>
    %249 = vector.shape_cast %248 : vector<40xf32> to vector<40x1xf32>
    %250 = vector.broadcast %249 : vector<40x1xf32> to vector<40x40xf32>
    %251 = arith.subf %247, %250 : vector<40x40xf32>
    %252 = math.exp %251 : vector<40x40xf32>
    %cst_105 = arith.constant dense<0.000000e+00> : vector<40xf32>
    %253 = vector.multi_reduction <add>, %252, %cst_105 [1] : vector<40x40xf32> to vector<40xf32>
    %254 = vector.shape_cast %253 : vector<40xf32> to vector<40x1xf32>
    %255 = tpu.reciprocal %254 {approx = true} : vector<40x1xf32> -> vector<40x1xf32>
    %256 = vector.broadcast %255 : vector<40x1xf32> to vector<40x40xf32>
    %257 = arith.mulf %252, %256 : vector<40x40xf32>
    %258 = arith.truncf %257 : vector<40x40xf32> to vector<40x40xbf16>
    %cst_106 = arith.constant dense<0.000000e+00> : vector<40x8xf32>
    %259 = tpu.matmul %258, %245, %cst_106 {dimension_numbers = #tpu.dot_dimension_numbers<[1], [0], [0], [1], [0, 0, 1, 1], [], []>} : vector<40x40xbf16>, vector<40x8xbf16>, vector<40x8xf32> -> vector<40x8xf32>
    %260 = vector.extract_strided_slice %238 {offsets = [0, 8], sizes = [40, 8], strides = [1, 1]} : vector<40x32xbf16> to vector<40x8xbf16>
    %261 = vector.extract_strided_slice %240 {offsets = [0, 8], sizes = [40, 8], strides = [1, 1]} : vector<40x32xbf16> to vector<40x8xbf16>
    %262 = vector.extract_strided_slice %242 {offsets = [0, 8], sizes = [40, 8], strides = [1, 1]} : vector<40x32xbf16> to vector<40x8xbf16>
    %cst_107 = arith.constant dense<0.000000e+00> : vector<40x40xf32>
    %263 = tpu.matmul %260, %261, %cst_107 {dimension_numbers = #tpu.dot_dimension_numbers<[1], [1], [0], [0], [0, 0, 1, 0], [], []>} : vector<40x8xbf16>, vector<40x8xbf16>, vector<40x40xf32> -> vector<40x40xf32>
    %264 = arith.addf %263, %29 : vector<40x40xf32>
    %cst_108 = arith.constant dense<0xFF800000> : vector<40xf32>
    %265 = vector.multi_reduction <maximumf>, %264, %cst_108 [1] : vector<40x40xf32> to vector<40xf32>
    %266 = vector.shape_cast %265 : vector<40xf32> to vector<40x1xf32>
    %267 = vector.broadcast %266 : vector<40x1xf32> to vector<40x40xf32>
    %268 = arith.subf %264, %267 : vector<40x40xf32>
    %269 = math.exp %268 : vector<40x40xf32>
    %cst_109 = arith.constant dense<0.000000e+00> : vector<40xf32>
    %270 = vector.multi_reduction <add>, %269, %cst_109 [1] : vector<40x40xf32> to vector<40xf32>
    %271 = vector.shape_cast %270 : vector<40xf32> to vector<40x1xf32>
    %272 = tpu.reciprocal %271 {approx = true} : vector<40x1xf32> -> vector<40x1xf32>
    %273 = vector.broadcast %272 : vector<40x1xf32> to vector<40x40xf32>
    %274 = arith.mulf %269, %273 : vector<40x40xf32>
    %275 = arith.truncf %274 : vector<40x40xf32> to vector<40x40xbf16>
    %cst_110 = arith.constant dense<0.000000e+00> : vector<40x8xf32>
    %276 = tpu.matmul %275, %262, %cst_110 {dimension_numbers = #tpu.dot_dimension_numbers<[1], [0], [0], [1], [0, 0, 1, 1], [], []>} : vector<40x40xbf16>, vector<40x8xbf16>, vector<40x8xf32> -> vector<40x8xf32>
    %277 = vector.extract_strided_slice %238 {offsets = [0, 16], sizes = [40, 8], strides = [1, 1]} : vector<40x32xbf16> to vector<40x8xbf16>
    %278 = vector.extract_strided_slice %240 {offsets = [0, 16], sizes = [40, 8], strides = [1, 1]} : vector<40x32xbf16> to vector<40x8xbf16>
    %279 = vector.extract_strided_slice %242 {offsets = [0, 16], sizes = [40, 8], strides = [1, 1]} : vector<40x32xbf16> to vector<40x8xbf16>
    %cst_111 = arith.constant dense<0.000000e+00> : vector<40x40xf32>
    %280 = tpu.matmul %277, %278, %cst_111 {dimension_numbers = #tpu.dot_dimension_numbers<[1], [1], [0], [0], [0, 0, 1, 0], [], []>} : vector<40x8xbf16>, vector<40x8xbf16>, vector<40x40xf32> -> vector<40x40xf32>
    %281 = arith.addf %280, %29 : vector<40x40xf32>
    %cst_112 = arith.constant dense<0xFF800000> : vector<40xf32>
    %282 = vector.multi_reduction <maximumf>, %281, %cst_112 [1] : vector<40x40xf32> to vector<40xf32>
    %283 = vector.shape_cast %282 : vector<40xf32> to vector<40x1xf32>
    %284 = vector.broadcast %283 : vector<40x1xf32> to vector<40x40xf32>
    %285 = arith.subf %281, %284 : vector<40x40xf32>
    %286 = math.exp %285 : vector<40x40xf32>
    %cst_113 = arith.constant dense<0.000000e+00> : vector<40xf32>
    %287 = vector.multi_reduction <add>, %286, %cst_113 [1] : vector<40x40xf32> to vector<40xf32>
    %288 = vector.shape_cast %287 : vector<40xf32> to vector<40x1xf32>
    %289 = tpu.reciprocal %288 {approx = true} : vector<40x1xf32> -> vector<40x1xf32>
    %290 = vector.broadcast %289 : vector<40x1xf32> to vector<40x40xf32>
    %291 = arith.mulf %286, %290 : vector<40x40xf32>
    %292 = arith.truncf %291 : vector<40x40xf32> to vector<40x40xbf16>
    %cst_114 = arith.constant dense<0.000000e+00> : vector<40x8xf32>
    %293 = tpu.matmul %292, %279, %cst_114 {dimension_numbers = #tpu.dot_dimension_numbers<[1], [0], [0], [1], [0, 0, 1, 1], [], []>} : vector<40x40xbf16>, vector<40x8xbf16>, vector<40x8xf32> -> vector<40x8xf32>
    %294 = vector.extract_strided_slice %238 {offsets = [0, 24], sizes = [40, 8], strides = [1, 1]} : vector<40x32xbf16> to vector<40x8xbf16>
    %295 = vector.extract_strided_slice %240 {offsets = [0, 24], sizes = [40, 8], strides = [1, 1]} : vector<40x32xbf16> to vector<40x8xbf16>
    %296 = vector.extract_strided_slice %242 {offsets = [0, 24], sizes = [40, 8], strides = [1, 1]} : vector<40x32xbf16> to vector<40x8xbf16>
    %cst_115 = arith.constant dense<0.000000e+00> : vector<40x40xf32>
    %297 = tpu.matmul %294, %295, %cst_115 {dimension_numbers = #tpu.dot_dimension_numbers<[1], [1], [0], [0], [0, 0, 1, 0], [], []>} : vector<40x8xbf16>, vector<40x8xbf16>, vector<40x40xf32> -> vector<40x40xf32>
    %298 = arith.addf %297, %29 : vector<40x40xf32>
    %cst_116 = arith.constant dense<0xFF800000> : vector<40xf32>
    %299 = vector.multi_reduction <maximumf>, %298, %cst_116 [1] : vector<40x40xf32> to vector<40xf32>
    %300 = vector.shape_cast %299 : vector<40xf32> to vector<40x1xf32>
    %301 = vector.broadcast %300 : vector<40x1xf32> to vector<40x40xf32>
    %302 = arith.subf %298, %301 : vector<40x40xf32>
    %303 = math.exp %302 : vector<40x40xf32>
    %cst_117 = arith.constant dense<0.000000e+00> : vector<40xf32>
    %304 = vector.multi_reduction <add>, %303, %cst_117 [1] : vector<40x40xf32> to vector<40xf32>
    %305 = vector.shape_cast %304 : vector<40xf32> to vector<40x1xf32>
    %306 = tpu.reciprocal %305 {approx = true} : vector<40x1xf32> -> vector<40x1xf32>
    %307 = vector.broadcast %306 : vector<40x1xf32> to vector<40x40xf32>
    %308 = arith.mulf %303, %307 : vector<40x40xf32>
    %309 = arith.truncf %308 : vector<40x40xf32> to vector<40x40xbf16>
    %cst_118 = arith.constant dense<0.000000e+00> : vector<40x8xf32>
    %310 = tpu.matmul %309, %296, %cst_118 {dimension_numbers = #tpu.dot_dimension_numbers<[1], [0], [0], [1], [0, 0, 1, 1], [], []>} : vector<40x40xbf16>, vector<40x8xbf16>, vector<40x8xf32> -> vector<40x8xf32>
    %311 = tpu.concatenate %259, %276, %293, %310 in 1 : vector<40x8xf32>, vector<40x8xf32>, vector<40x8xf32>, vector<40x8xf32> -> vector<40x32xf32>
    %312 = arith.truncf %311 : vector<40x32xf32> to vector<40x32xbf16>
    %c1_119 = arith.constant 1 : index
    %c0_120 = arith.constant 0 : index
    %c0_121 = arith.constant 0 : index
    %313 = vector.load %arg11[%c1_119, %c0_120, %c0_121] : memref<2x32x32xbf16, #tpu.memory_space<vmem>>, vector<1x32x32xbf16>
    %314 = vector.shape_cast %313 : vector<1x32x32xbf16> to vector<32x32xbf16>
    %cst_122 = arith.constant dense<0.000000e+00> : vector<40x32xf32>
    %315 = tpu.matmul %312, %314, %cst_122 {dimension_numbers = #tpu.dot_dimension_numbers<[1], [0], [0], [1], [0, 0, 1, 1], [], []>} : vector<40x32xbf16>, vector<32x32xbf16>, vector<40x32xf32> -> vector<40x32xf32>
    %316 = arith.addf %200, %315 : vector<40x32xf32>
    %c1_123 = arith.constant 1 : index
    %c0_124 = arith.constant 0 : index
    %c0_125 = arith.constant 0 : index
    %317 = vector.load %arg12[%c1_123, %c0_124, %c0_125] : memref<2x1x32xf32, #tpu.memory_space<vmem>>, vector<1x1x32xf32>
    %318 = vector.shape_cast %317 : vector<1x1x32xf32> to vector<1x32xf32>
    %319 = vector.broadcast %318 : vector<1x32xf32> to vector<40x32xf32>
    %320 = arith.addf %316, %319 : vector<40x32xf32>
    %c1_126 = arith.constant 1 : index
    %c0_127 = arith.constant 0 : index
    %c0_128 = arith.constant 0 : index
    %321 = vector.load %arg13[%c1_126, %c0_127, %c0_128] : memref<2x1x32xf32, #tpu.memory_space<vmem>>, vector<1x1x32xf32>
    %322 = vector.shape_cast %321 : vector<1x1x32xf32> to vector<1x32xf32>
    %c1_129 = arith.constant 1 : index
    %c0_130 = arith.constant 0 : index
    %c0_131 = arith.constant 0 : index
    %323 = vector.load %arg14[%c1_129, %c0_130, %c0_131] : memref<2x1x32xf32, #tpu.memory_space<vmem>>, vector<1x1x32xf32>
    %324 = vector.shape_cast %323 : vector<1x1x32xf32> to vector<1x32xf32>
    %cst_132 = arith.constant dense<0.000000e+00> : vector<40xf32>
    %325 = vector.multi_reduction <add>, %320, %cst_132 [1] : vector<40x32xf32> to vector<40xf32>
    %326 = vector.shape_cast %325 : vector<40xf32> to vector<40x1xf32>
    %cst_133 = arith.constant 3.200000e+01 : f32
    %327 = vector.broadcast %cst_133 : f32 to vector<40x1xf32>
    %328 = arith.divf %326, %327 : vector<40x1xf32>
    %329 = vector.broadcast %328 : vector<40x1xf32> to vector<40x32xf32>
    %330 = arith.subf %320, %329 : vector<40x32xf32>
    %331 = arith.mulf %330, %330 : vector<40x32xf32>
    %cst_134 = arith.constant dense<0.000000e+00> : vector<40xf32>
    %332 = vector.multi_reduction <add>, %331, %cst_134 [1] : vector<40x32xf32> to vector<40xf32>
    %333 = vector.shape_cast %332 : vector<40xf32> to vector<40x1xf32>
    %cst_135 = arith.constant 3.200000e+01 : f32
    %334 = vector.broadcast %cst_135 : f32 to vector<40x1xf32>
    %335 = arith.divf %333, %334 : vector<40x1xf32>
    %336 = vector.broadcast %328 : vector<40x1xf32> to vector<40x32xf32>
    %337 = arith.subf %320, %336 : vector<40x32xf32>
    %cst_136 = arith.constant 9.99999974E-6 : f32
    %338 = vector.broadcast %cst_136 : f32 to vector<40x1xf32>
    %339 = arith.addf %335, %338 : vector<40x1xf32>
    %340 = math.rsqrt %339 : vector<40x1xf32>
    %341 = vector.broadcast %340 : vector<40x1xf32> to vector<40x32xf32>
    %342 = arith.mulf %337, %341 : vector<40x32xf32>
    %343 = vector.broadcast %322 : vector<1x32xf32> to vector<40x32xf32>
    %344 = arith.mulf %342, %343 : vector<40x32xf32>
    %345 = vector.broadcast %324 : vector<1x32xf32> to vector<40x32xf32>
    %346 = arith.addf %344, %345 : vector<40x32xf32>
    %347 = arith.truncf %346 : vector<40x32xf32> to vector<40x32xbf16>
    %c1_137 = arith.constant 1 : index
    %c0_138 = arith.constant 0 : index
    %c0_139 = arith.constant 0 : index
    %348 = vector.load %arg15[%c1_137, %c0_138, %c0_139] : memref<2x32x128xbf16, #tpu.memory_space<vmem>>, vector<1x32x128xbf16>
    %349 = vector.shape_cast %348 : vector<1x32x128xbf16> to vector<32x128xbf16>
    %cst_140 = arith.constant dense<0.000000e+00> : vector<40x128xf32>
    %350 = tpu.matmul %347, %349, %cst_140 {dimension_numbers = #tpu.dot_dimension_numbers<[1], [0], [0], [1], [0, 0, 1, 1], [], []>} : vector<40x32xbf16>, vector<32x128xbf16>, vector<40x128xf32> -> vector<40x128xf32>
    %c1_141 = arith.constant 1 : index
    %c0_142 = arith.constant 0 : index
    %c0_143 = arith.constant 0 : index
    %351 = vector.load %arg16[%c1_141, %c0_142, %c0_143] : memref<2x1x128xf32, #tpu.memory_space<vmem>>, vector<1x1x128xf32>
    %352 = vector.shape_cast %351 : vector<1x1x128xf32> to vector<1x128xf32>
    %353 = vector.broadcast %352 : vector<1x128xf32> to vector<40x128xf32>
    %354 = arith.addf %350, %353 : vector<40x128xf32>
    %cst_144 = arith.constant 1.702000e+00 : f32
    %355 = vector.broadcast %cst_144 : f32 to vector<40x128xf32>
    %356 = arith.mulf %355, %354 : vector<40x128xf32>
    %357 = arith.negf %356 : vector<40x128xf32>
    %358 = math.exp %357 : vector<40x128xf32>
    %cst_145 = arith.constant 1.000000e+00 : f32
    %359 = vector.broadcast %cst_145 : f32 to vector<40x128xf32>
    %360 = arith.addf %359, %358 : vector<40x128xf32>
    %361 = arith.divf %359, %360 : vector<40x128xf32>
    %362 = arith.mulf %354, %361 : vector<40x128xf32>
    %363 = arith.truncf %362 : vector<40x128xf32> to vector<40x128xbf16>
    %c1_146 = arith.constant 1 : index
    %c0_147 = arith.constant 0 : index
    %c0_148 = arith.constant 0 : index
    %364 = vector.load %arg17[%c1_146, %c0_147, %c0_148] : memref<2x128x32xbf16, #tpu.memory_space<vmem>>, vector<1x128x32xbf16>
    %365 = vector.shape_cast %364 : vector<1x128x32xbf16> to vector<128x32xbf16>
    %cst_149 = arith.constant dense<0.000000e+00> : vector<40x32xf32>
    %366 = tpu.matmul %363, %365, %cst_149 {dimension_numbers = #tpu.dot_dimension_numbers<[1], [0], [0], [1], [0, 0, 1, 1], [], []>} : vector<40x128xbf16>, vector<128x32xbf16>, vector<40x32xf32> -> vector<40x32xf32>
    %c1_150 = arith.constant 1 : index
    %c0_151 = arith.constant 0 : index
    %c0_152 = arith.constant 0 : index
    %367 = vector.load %arg18[%c1_150, %c0_151, %c0_152] : memref<2x1x32xf32, #tpu.memory_space<vmem>>, vector<1x1x32xf32>
    %368 = vector.shape_cast %367 : vector<1x1x32xf32> to vector<1x32xf32>
    %369 = vector.broadcast %368 : vector<1x32xf32> to vector<40x32xf32>
    %370 = arith.addf %366, %369 : vector<40x32xf32>
    %371 = arith.addf %320, %370 : vector<40x32xf32>
    %c0_153 = arith.constant 0 : index
    %c0_154 = arith.constant 0 : index
    %372 = vector.load %arg6[%c0_153, %c0_154] : memref<8x40xf32, #tpu.memory_space<vmem>>, vector<8x40xf32>
    %cst_155 = arith.constant dense<0.000000e+00> : vector<8x32xf32>
    %373 = tpu.matmul %372, %371, %cst_155 {dimension_numbers = #tpu.dot_dimension_numbers<[1], [0], [0], [1], [0, 0, 1, 1], [], []>} : vector<8x40xf32>, vector<40x32xf32>, vector<8x32xf32> -> vector<8x32xf32>
    %374 = arith.truncf %373 : vector<8x32xf32> to vector<8x32xbf16>
    %c0_156 = arith.constant 0 : index
    %c0_157 = arith.constant 0 : index
    %375 = vector.load %arg19[%c0_156, %c0_157] : memref<32x128xbf16, #tpu.memory_space<vmem>>, vector<32x128xbf16>
    %cst_158 = arith.constant dense<0.000000e+00> : vector<8x128xf32>
    %376 = tpu.matmul %374, %375, %cst_158 {dimension_numbers = #tpu.dot_dimension_numbers<[1], [0], [0], [1], [0, 0, 1, 1], [], []>} : vector<8x32xbf16>, vector<32x128xbf16>, vector<8x128xf32> -> vector<8x128xf32>
    %c0_159 = arith.constant 0 : index
    %c0_160 = arith.constant 0 : index
    %377 = vector.load %arg20[%c0_159, %c0_160] : memref<1x128xf32, #tpu.memory_space<vmem>>, vector<1x128xf32>
    %378 = vector.broadcast %377 : vector<1x128xf32> to vector<8x128xf32>
    %379 = arith.addf %376, %378 : vector<8x128xf32>
    %cst_161 = arith.constant 0.000000e+00 : f32
    %380 = vector.broadcast %cst_161 : f32 to vector<8x96xf32>
    %381 = tpu.concatenate %379, %373, %380 in 1 : vector<8x128xf32>, vector<8x32xf32>, vector<8x96xf32> -> vector<8x256xf32>
    %c0_162 = arith.constant 0 : index
    %c0_163 = arith.constant 0 : index
    %382 = vector.load %arg21[%c0_162, %c0_163] : memref<8x256xf32, #tpu.memory_space<vmem>>, vector<8x256xf32>
    tpu.vector_store %arg21[%c0_162, %c0_163], %381 {strides = array<i32>} : memref<8x256xf32, #tpu.memory_space<vmem>>, vector<8x256xf32>,
    return
  }
}

</mosaic_0001>

<llo_original>
// kernel: tpu_custom_call.1
$region0: #{tpu_custom_call.1}
  #allocation0 [shape = 'u32[]', space=smem, size = 0x4, offset = 0x4, fixed_abs, tag = 'smem constant byte address 0x4 - core index']
  #allocation1 [shape = 'u32[72,128]{1,0:T(1,128)}', space=vmem, size = 0x9000, scoped, tag = 'internal scratch']
  %s0 = inlined_call_operand.vmem [shape: bf16[40,192], index: 0, kind: input, shape index: {}]
  %s1 = inlined_call_operand.vmem [shape: bf16[192,32], index: 1, kind: input, shape index: {}]
  %s2 = inlined_call_operand.vmem [shape: f32[40,32], index: 2, kind: input, shape index: {}]
  %s3 = inlined_call_operand.vmem [shape: f32[1,32], index: 3, kind: input, shape index: {}]
  %s4 = inlined_call_operand.vmem [shape: f32[1,32], index: 4, kind: input, shape index: {}]
  %s5 = inlined_call_operand.vmem [shape: f32[40,40], index: 5, kind: input, shape index: {}]
  %s6 = inlined_call_operand.vmem [shape: f32[8,40], index: 6, kind: input, shape index: {}]
  %s7 = inlined_call_operand.vmem [shape: f32[2,1,32], index: 7, kind: input, shape index: {}]
  %s8 = inlined_call_operand.vmem [shape: f32[2,1,32], index: 8, kind: input, shape index: {}]
  %s9 = inlined_call_operand.vmem [shape: bf16[2,32,96], index: 9, kind: input, shape index: {}]
  %s10 = inlined_call_operand.vmem [shape: f32[2,1,96], index: 10, kind: input, shape index: {}]
  %s11 = inlined_call_operand.vmem [shape: bf16[2,32,32], index: 11, kind: input, shape index: {}]
  %s12 = inlined_call_operand.vmem [shape: f32[2,1,32], index: 12, kind: input, shape index: {}]
  %s13 = inlined_call_operand.vmem [shape: f32[2,1,32], index: 13, kind: input, shape index: {}]
  %s14 = inlined_call_operand.vmem [shape: f32[2,1,32], index: 14, kind: input, shape index: {}]
  %s15 = inlined_call_operand.vmem [shape: bf16[2,32,128], index: 15, kind: input, shape index: {}]
  %s16 = inlined_call_operand.vmem [shape: f32[2,1,128], index: 16, kind: input, shape index: {}]
  %s17 = inlined_call_operand.vmem [shape: bf16[2,128,32], index: 17, kind: input, shape index: {}]
  %s18 = inlined_call_operand.vmem [shape: f32[2,1,32], index: 18, kind: input, shape index: {}]
  %s19 = inlined_call_operand.vmem [shape: bf16[32,128], index: 19, kind: input, shape index: {}]
  %s20 = inlined_call_operand.vmem [shape: f32[1,128], index: 20, kind: input, shape index: {}]
  %s21 = inlined_call_operand.hbm [shape: f32[8,256], index: 21, kind: output, shape index: {}]
  %s22 = sld [smem:[#allocation0]]
  $region94: #{tpu_custom_call.1} parent=0
    _
  %s24 = ssub.s32 1, %s22
  %s25 = scalar_select 0, %s24, %s22
  $region1: #{tpu_custom_call.1} parent=0
    #allocation2 [shape = 'u8[8192]{0}', space=vmem, size = 0x2000, scoped, tag = 'output window, operand 0, single buffered']
    #allocation3 [shape = 's32[1]{0}', space=sflag, size = 0x4, scoped, tag = 'scoped memory for tpu_custom_call.1']
    %26 = vsyncpa [#allocation3], 0
    // Predicated region
    $region2: #{tpu_custom_call.1} parent=1 // pred_check
      _
    $region3: #{tpu_custom_call.1} parent=1 // pred_check_branch
      %28 = sbr.rel (0) target = $region5
    $region4: #{tpu_custom_call.1} parent=1 // pred_region
      _
    $region5: #{tpu_custom_call.1} parent=1 // pred_fallthru
      _
    // Predicated region
    $region6: #{tpu_custom_call.1} parent=1 // pred_check
      _
    $region7: #{tpu_custom_call.1} parent=1 // pred_check_branch
      %30 = sbr.rel (0) target = $region9
    $region8: #{tpu_custom_call.1} parent=1 // pred_region
      _
    $region9: #{tpu_custom_call.1} parent=1 // pred_fallthru
      _
    // Predicated region
    $region10: #{tpu_custom_call.1} parent=1 // pred_check
      _
    $region11: #{tpu_custom_call.1} parent=1 // pred_check_branch
      %32 = sbr.rel (0) target = $region13
    $region12: #{tpu_custom_call.1} parent=1 // pred_region
      _
    $region13: #{tpu_custom_call.1} parent=1 // pred_fallthru
      _
    // Predicated region
    $region14: #{tpu_custom_call.1} parent=1 // pred_check
      _
    $region15: #{tpu_custom_call.1} parent=1 // pred_check_branch
      %34 = sbr.rel (0) target = $region17
    $region16: #{tpu_custom_call.1} parent=1 // pred_region
      _
    $region17: #{tpu_custom_call.1} parent=1 // pred_fallthru
      _
    // Predicated region
    $region18: #{tpu_custom_call.1} parent=1 // pred_check
      _
    $region19: #{tpu_custom_call.1} parent=1 // pred_check_branch
      %36 = sbr.rel (0) target = $region21
    $region20: #{tpu_custom_call.1} parent=1 // pred_region
      _
    $region21: #{tpu_custom_call.1} parent=1 // pred_fallthru
      _
    // Predicated region
    $region22: #{tpu_custom_call.1} parent=1 // pred_check
      _
    $region23: #{tpu_custom_call.1} parent=1 // pred_check_branch
      %38 = sbr.rel (0) target = $region25
    $region24: #{tpu_custom_call.1} parent=1 // pred_region
      _
    $region25: #{tpu_custom_call.1} parent=1 // pred_fallthru
      _
    // Predicated region
    $region26: #{tpu_custom_call.1} parent=1 // pred_check
      _
    $region27: #{tpu_custom_call.1} parent=1 // pred_check_branch
      %40 = sbr.rel (0) target = $region29
    $region28: #{tpu_custom_call.1} parent=1 // pred_region
      _
    $region29: #{tpu_custom_call.1} parent=1 // pred_fallthru
      _
    // Predicated region
    $region30: #{tpu_custom_call.1} parent=1 // pred_check
      _
    $region31: #{tpu_custom_call.1} parent=1 // pred_check_branch
      %42 = sbr.rel (0) target = $region33
    $region32: #{tpu_custom_call.1} parent=1 // pred_region
      _
    $region33: #{tpu_custom_call.1} parent=1 // pred_fallthru
      _
    // Predicated region
    $region34: #{tpu_custom_call.1} parent=1 // pred_check
      _
    $region35: #{tpu_custom_call.1} parent=1 // pred_check_branch
      %44 = sbr.rel (0) target = $region37
    $region36: #{tpu_custom_call.1} parent=1 // pred_region
      _
    $region37: #{tpu_custom_call.1} parent=1 // pred_fallthru
      _
    // Predicated region
    $region38: #{tpu_custom_call.1} parent=1 // pred_check
      _
    $region39: #{tpu_custom_call.1} parent=1 // pred_check_branch
      %46 = sbr.rel (0) target = $region41
    $region40: #{tpu_custom_call.1} parent=1 // pred_region
      _
    $region41: #{tpu_custom_call.1} parent=1 // pred_fallthru
      _
    // Predicated region
    $region42: #{tpu_custom_call.1} parent=1 // pred_check
      _
    $region43: #{tpu_custom_call.1} parent=1 // pred_check_branch
      %48 = sbr.rel (0) target = $region45
    $region44: #{tpu_custom_call.1} parent=1 // pred_region
      _
    $region45: #{tpu_custom_call.1} parent=1 // pred_fallthru
      _
    // Predicated region
    $region46: #{tpu_custom_call.1} parent=1 // pred_check
      _
    $region47: #{tpu_custom_call.1} parent=1 // pred_check_branch
      %50 = sbr.rel (0) target = $region49
    $region48: #{tpu_custom_call.1} parent=1 // pred_region
      _
    $region49: #{tpu_custom_call.1} parent=1 // pred_fallthru
      _
    // Predicated region
    $region50: #{tpu_custom_call.1} parent=1 // pred_check
      _
    $region51: #{tpu_custom_call.1} parent=1 // pred_check_branch
      %52 = sbr.rel (0) target = $region53
    $region52: #{tpu_custom_call.1} parent=1 // pred_region
      _
    $region53: #{tpu_custom_call.1} parent=1 // pred_fallthru
      _
    // Predicated region
    $region54: #{tpu_custom_call.1} parent=1 // pred_check
      _
    $region55: #{tpu_custom_call.1} parent=1 // pred_check_branch
      %54 = sbr.rel (0) target = $region57
    $region56: #{tpu_custom_call.1} parent=1 // pred_region
      _
    $region57: #{tpu_custom_call.1} parent=1 // pred_fallthru
      _
    // Predicated region
    $region58: #{tpu_custom_call.1} parent=1 // pred_check
      _
    $region59: #{tpu_custom_call.1} parent=1 // pred_check_branch
      %56 = sbr.rel (0) target = $region61
    $region60: #{tpu_custom_call.1} parent=1 // pred_region
      _
    $region61: #{tpu_custom_call.1} parent=1 // pred_fallthru
      _
    // Predicated region
    $region62: #{tpu_custom_call.1} parent=1 // pred_check
      _
    $region63: #{tpu_custom_call.1} parent=1 // pred_check_branch
      %58 = sbr.rel (0) target = $region65
    $region64: #{tpu_custom_call.1} parent=1 // pred_region
      _
    $region65: #{tpu_custom_call.1} parent=1 // pred_fallthru
      _
    // Predicated region
    $region66: #{tpu_custom_call.1} parent=1 // pred_check
      _
    $region67: #{tpu_custom_call.1} parent=1 // pred_check_branch
      %60 = sbr.rel (0) target = $region69
    $region68: #{tpu_custom_call.1} parent=1 // pred_region
      _
    $region69: #{tpu_custom_call.1} parent=1 // pred_fallthru
      _
    // Predicated region
    $region70: #{tpu_custom_call.1} parent=1 // pred_check
      _
    $region71: #{tpu_custom_call.1} parent=1 // pred_check_branch
      %62 = sbr.rel (0) target = $region73
    $region72: #{tpu_custom_call.1} parent=1 // pred_region
      _
    $region73: #{tpu_custom_call.1} parent=1 // pred_fallthru
      _
    // Predicated region
    $region74: #{tpu_custom_call.1} parent=1 // pred_check
      _
    $region75: #{tpu_custom_call.1} parent=1 // pred_check_branch
      %64 = sbr.rel (0) target = $region77
    $region76: #{tpu_custom_call.1} parent=1 // pred_region
      _
    $region77: #{tpu_custom_call.1} parent=1 // pred_fallthru
      _
    // Predicated region
    $region78: #{tpu_custom_call.1} parent=1 // pred_check
      _
    $region79: #{tpu_custom_call.1} parent=1 // pred_check_branch
      %66 = sbr.rel (0) target = $region81
    $region80: #{tpu_custom_call.1} parent=1 // pred_region
      _
    $region81: #{tpu_custom_call.1} parent=1 // pred_fallthru
      _
    // Predicated region
    $region82: #{tpu_custom_call.1} parent=1 // pred_check
      _
    $region83: #{tpu_custom_call.1} parent=1 // pred_check_branch
      %68 = sbr.rel (0) target = $region85
    $region84: #{tpu_custom_call.1} parent=1 // pred_region
      _
    $region85: #{tpu_custom_call.1} parent=1 // pred_fallthru
      _
    %v70 = vld [vmem:[%s0] sm:$0xff]
    %v71 = vld [vmem:[%s0 + $0x8] sm:$0xff]
    %v72 = vld [vmem:[%s0 + $0x10] sm:$0xff]
    %v73 = vld [vmem:[%s0 + $0x18] sm:$0xff]
    %v74 = vld [vmem:[%s0 + $0x20] sm:$0xff]
    %v75 = vld [vmem:[%s1] sm:$0xf]
    %v76 = vld [vmem:[%s1 + $0x4] sm:$0xf]
    %v77 = vld [vmem:[%s1 + $0x8] sm:$0xf]
    %v78 = vld [vmem:[%s1 + $0xc] sm:$0xf]
    %v79 = vld [vmem:[%s1 + $0x10] sm:$0xf]
    %v80 = vld [vmem:[%s1 + $0x14] sm:$0xf]
    %v81 = vld [vmem:[%s1 + $0x18] sm:$0xf]
    %v82 = vld [vmem:[%s1 + $0x1c] sm:$0xf]
    %v83 = vld [vmem:[%s1 + $0x20] sm:$0xf]
    %v84 = vld [vmem:[%s1 + $0x24] sm:$0xf]
    %v85 = vld [vmem:[%s1 + $0x28] sm:$0xf]
    %v86 = vld [vmem:[%s1 + $0x2c] sm:$0xf]
    %v87 = vld [vmem:[%s1 + $0x30] sm:$0xf]
    %v88 = vld [vmem:[%s1 + $0x34] sm:$0xf]
    %v89 = vld [vmem:[%s1 + $0x38] sm:$0xf]
    %v90 = vld [vmem:[%s1 + $0x3c] sm:$0xf]
    %v91 = vld [vmem:[%s1 + $0x40] sm:$0xf]
    %v92 = vld [vmem:[%s1 + $0x44] sm:$0xf]
    %v93 = vld [vmem:[%s1 + $0x48] sm:$0xf]
    %v94 = vld [vmem:[%s1 + $0x4c] sm:$0xf]
    %v95 = vld [vmem:[%s1 + $0x50] sm:$0xf]
    %v96 = vld [vmem:[%s1 + $0x54] sm:$0xf]
    %v97 = vld [vmem:[%s1 + $0x58] sm:$0xf]
    %v98 = vld [vmem:[%s1 + $0x5c] sm:$0xf]
    %v99 = vld [vmem:[%s2] sm:$0xff]
    %v100 = vld [vmem:[%s2 + $0x8] sm:$0xff]
    %v101 = vld [vmem:[%s2 + $0x10] sm:$0xff]
    %v102 = vld [vmem:[%s2 + $0x18] sm:$0xff]
    %v103 = vld [vmem:[%s2 + $0x20] sm:$0xff]
    %v109 = vunpack.c.l.b16 %v70
    %v110 = vunpack.c.h.b16 %v70
    %v111 = vunpack.c.l.b16 %v71
    %v112 = vunpack.c.h.b16 %v71
    %v113 = vunpack.c.l.b16 %v72
    %v114 = vunpack.c.h.b16 %v72
    %v115 = vunpack.c.l.b16 %v73
    %v116 = vunpack.c.h.b16 %v73
    %v117 = vunpack.c.l.b16 %v74
    %v118 = vunpack.c.h.b16 %v74
    %v119 = vpack.c.b16 %v111, %v109
    %v120 = vpack.c.b16 %v112, %v110
    %v121 = vpack.c.b16 %v115, %v113
    %v122 = vpack.c.b16 %v116, %v114
    %v123 = vpack.c.b16 %v117, %v117
    %v124 = vpack.c.b16 %v118, %v118
    %v152 = vunpack.c.l.b16 %v75
    %v153 = vunpack.c.l.b16 %v76
    %v154 = vunpack.c.l.b16 %v77
    %v155 = vunpack.c.l.b16 %v78
    %v156 = vunpack.c.l.b16 %v79
    %v157 = vunpack.c.l.b16 %v80
    %v158 = vunpack.c.l.b16 %v81
    %v159 = vunpack.c.l.b16 %v82
    %v160 = vunpack.c.l.b16 %v83
    %v161 = vunpack.c.l.b16 %v84
    %v162 = vunpack.c.l.b16 %v85
    %v163 = vunpack.c.l.b16 %v86
    %v164 = vunpack.c.l.b16 %v87
    %v165 = vunpack.c.l.b16 %v88
    %v166 = vunpack.c.l.b16 %v89
    %v167 = vunpack.c.l.b16 %v90
    %v168 = vunpack.c.l.b16 %v91
    %v169 = vunpack.c.l.b16 %v92
    %v170 = vunpack.c.l.b16 %v93
    %v171 = vunpack.c.l.b16 %v94
    %v172 = vunpack.c.l.b16 %v95
    %v173 = vunpack.c.l.b16 %v96
    %v174 = vunpack.c.l.b16 %v97
    %v175 = vunpack.c.l.b16 %v98
    %v176 = vpack.c.b16 %v153, %v152
    %v177 = vpack.c.b16 %v155, %v154
    %v178 = vpack.c.b16 %v157, %v156
    %v179 = vpack.c.b16 %v159, %v158
    %v180 = vpack.c.b16 %v161, %v160
    %v181 = vpack.c.b16 %v163, %v162
    %v182 = vpack.c.b16 %v165, %v164
    %v183 = vpack.c.b16 %v167, %v166
    %v184 = vpack.c.b16 %v169, %v168
    %v185 = vpack.c.b16 %v171, %v170
    %v186 = vpack.c.b16 %v173, %v172
    %v187 = vpack.c.b16 %v175, %v174
    %vm200 = vcmask 523264
    %v202 = vsel %vm200, %v120, 0
    %v205 = vsel %vm200, %v122, 0
    %v208 = vsel %vm200, %v124, 0
    %210 = vmatpush.bf16.msra.mxu0 %v183
    %211 = vmatpush.bf16.msra.mxu0 %v182
    %212 = vmatpush.bf16.msra.mxu0 %v181
    %213 = vmatpush.bf16.msra.mxu0 %v180
    %214 = vmatpush.bf16.msra.mxu0 %v179
    %215 = vmatpush.bf16.msra.mxu0 %v178
    %216 = vmatpush.bf16.msra.mxu0 %v177
    %217 = vmatpush.bf16.msra.mxu0 %v176
    %218 = vmatmul.bf16.gmra.mxu0 %v119
    %v219 = vpop.f32.mrf.mxu0
    %v220 = vadd.f32 %v99, %v219
    %v221 = vpop.f32.mrf.mxu0
    %v222 = vadd.f32 %v100, %v221
    %223 = vmatmul.bf16.gmra.mxu0 %v121
    %v224 = vpop.f32.mrf.mxu0
    %v225 = vadd.f32 %v101, %v224
    %v226 = vpop.f32.mrf.mxu0
    %v227 = vadd.f32 %v102, %v226
    %228 = vmatmul.bf16.gmra.mxu0 %v123
    %v229 = vpop.f32.mrf.mxu0
    %v230 = vadd.f32 %v103, %v229
    %v231 = vpop.f32.mrf.mxu0
    %232 = vdwg.mxu0
    %233 = vmatpush.bf16.msra.mxu0 0
    %234 = vmatpush.bf16.msra.mxu0 0
    %235 = vmatpush.bf16.msra.mxu0 0
    %236 = vmatpush.bf16.msra.mxu0 0
    %237 = vmatpush.bf16.msra.mxu0 %v187
    %238 = vmatpush.bf16.msra.mxu0 %v186
    %239 = vmatpush.bf16.msra.mxu0 %v185
    %240 = vmatpush.bf16.msra.mxu0 %v184
    %241 = vmatmul.bf16.gmra.mxu0 %v202
    %v242 = vpop.f32.mrf.mxu0
    %v243 = vadd.f32 %v220, %v242
    %v244 = vpop.f32.mrf.mxu0
    %v245 = vadd.f32 %v222, %v244
    %246 = vmatmul.bf16.gmra.mxu0 %v205
    %v247 = vpop.f32.mrf.mxu0
    %v248 = vadd.f32 %v225, %v247
    %v249 = vpop.f32.mrf.mxu0
    %v250 = vadd.f32 %v227, %v249
    %251 = vmatmul.bf16.gmra.mxu0 %v208
    %v252 = vpop.f32.mrf.mxu0
    %v253 = vadd.f32 %v230, %v252
    %v254 = vpop.f32.mrf.mxu0
    %255 = vdwg.mxu0
    %v256 = vld [vmem:[%s3] sm:$0x1]
    %v257 = vld [vmem:[%s4] sm:$0x1]
    %vm258 = vcmask 261120
    %v259 = vsel %vm258, %v243, 0.0
    %260 = vadd.xlane.f32.xlu0 %v259
    %v261 = vpop.xlane.xlu0 %260
    %v262 = vsel %vm258, %v245, 0.0
    %263 = vadd.xlane.f32.xlu0 %v262
    %v264 = vpop.xlane.xlu0 %263
    %v265 = vsel %vm258, %v248, 0.0
    %266 = vadd.xlane.f32.xlu0 %v265
    %v267 = vpop.xlane.xlu0 %266
    %v268 = vsel %vm258, %v250, 0.0
    %269 = vadd.xlane.f32.xlu0 %v268
    %v270 = vpop.xlane.xlu0 %269
    %v271 = vsel %vm258, %v253, 0.0
    %272 = vadd.xlane.f32.xlu0 %v271
    %v273 = vpop.xlane.xlu0 %272
    %v274 = vrcp.pop 32.0
    %v275 = vmul.f32 32.0, %v274
    %v276 = vsub.f32 1.0, %v275
    %v277 = vmul.f32 %v274, %v276
    %v278 = vadd.f32 %v274, %v277
    %vm279 = vweird.f32 %v274
    %v280 = vsel %vm279, %v274, %v278
    %v281 = vmul.f32 %v261, %v280
    %v282 = vmul.f32 %v264, %v280
    %v283 = vmul.f32 %v267, %v280
    %v284 = vmul.f32 %v270, %v280
    %v285 = vmul.f32 %v273, %v280
    %v286 = vsub.f32 %v243, %v281
    %v287 = vsub.f32 %v245, %v282
    %v288 = vsub.f32 %v248, %v283
    %v289 = vsub.f32 %v250, %v284
    %v290 = vsub.f32 %v253, %v285
    %v291 = vmul.f32 %v286, %v286
    %v292 = vmul.f32 %v287, %v287
    %v293 = vmul.f32 %v288, %v288
    %v294 = vmul.f32 %v289, %v289
    %v295 = vmul.f32 %v290, %v290
    %v296 = vsel %vm258, %v291, 0.0
    %297 = vadd.xlane.f32.xlu0 %v296
    %v298 = vpop.xlane.xlu0 %297
    %v299 = vsel %vm258, %v292, 0.0
    %300 = vadd.xlane.f32.xlu0 %v299
    %v301 = vpop.xlane.xlu0 %300
    %v302 = vsel %vm258, %v293, 0.0
    %303 = vadd.xlane.f32.xlu0 %v302
    %v304 = vpop.xlane.xlu0 %303
    %v305 = vsel %vm258, %v294, 0.0
    %306 = vadd.xlane.f32.xlu0 %v305
    %v307 = vpop.xlane.xlu0 %306
    %v308 = vsel %vm258, %v295, 0.0
    %309 = vadd.xlane.f32.xlu0 %v308
    %v310 = vpop.xlane.xlu0 %309
    %v311 = vmul.f32 %v298, %v280
    %v312 = vmul.f32 %v301, %v280
    %v313 = vmul.f32 %v304, %v280
    %v314 = vmul.f32 %v307, %v280
    %v315 = vmul.f32 %v310, %v280
    %v316 = vadd.f32 %v311, 1e-05
    %v317 = vadd.f32 %v312, 1e-05
    %v318 = vadd.f32 %v313, 1e-05
    %v319 = vadd.f32 %v314, 1e-05
    %v320 = vadd.f32 %v315, 1e-05
    %v321 = vrsqrt.pop %v316
    %v322 = vmul.f32 %v321, %v316
    %v323 = vmul.f32 %v322, %v321
    %v324 = vmul.f32 0.5, %v323
    %v325 = vsub.f32 1.5, %v324
    %v326 = vmul.f32 %v321, %v325
    %vm327 = vweird.f32 %v316
    %vm328 = vweird.f32 %v321
    %vm329 = vmor %vm327, %vm328
    %v330 = vsel %vm329, %v321, %v326
    %v331 = vrsqrt.pop %v317
    %v332 = vmul.f32 %v331, %v317
    %v333 = vmul.f32 %v332, %v331
    %v334 = vmul.f32 0.5, %v333
    %v335 = vsub.f32 1.5, %v334
    %v336 = vmul.f32 %v331, %v335
    %vm337 = vweird.f32 %v317
    %vm338 = vweird.f32 %v331
    %vm339 = vmor %vm337, %vm338
    %v340 = vsel %vm339, %v331, %v336
    %v341 = vrsqrt.pop %v318
    %v342 = vmul.f32 %v341, %v318
    %v343 = vmul.f32 %v342, %v341
    %v344 = vmul.f32 0.5, %v343
    %v345 = vsub.f32 1.5, %v344
    %v346 = vmul.f32 %v341, %v345
    %vm347 = vweird.f32 %v318
    %vm348 = vweird.f32 %v341
    %vm349 = vmor %vm347, %vm348
    %v350 = vsel %vm349, %v341, %v346
    %v351 = vrsqrt.pop %v319
    %v352 = vmul.f32 %v351, %v319
    %v353 = vmul.f32 %v352, %v351
    %v354 = vmul.f32 0.5, %v353
    %v355 = vsub.f32 1.5, %v354
    %v356 = vmul.f32 %v351, %v355
    %vm357 = vweird.f32 %v319
    %vm358 = vweird.f32 %v351
    %vm359 = vmor %vm357, %vm358
    %v360 = vsel %vm359, %v351, %v356
    %v361 = vrsqrt.pop %v320
    %v362 = vmul.f32 %v361, %v320
    %v363 = vmul.f32 %v362, %v361
    %v364 = vmul.f32 0.5, %v363
    %v365 = vsub.f32 1.5, %v364
    %v366 = vmul.f32 %v361, %v365
    %vm367 = vweird.f32 %v320
    %vm368 = vweird.f32 %v361
    %vm369 = vmor %vm367, %vm368
    %v370 = vsel %vm369, %v361, %v366
    %v371 = vmul.f32 %v286, %v330
    %v372 = vmul.f32 %v287, %v340
    %v373 = vmul.f32 %v288, %v350
    %v374 = vmul.f32 %v289, %v360
    %v375 = vmul.f32 %v290, %v370
    %v377 = vperm.slane %v256, 0
    %v379 = vmul.f32 %v371, %v377
    %v380 = vmul.f32 %v372, %v377
    %v381 = vmul.f32 %v373, %v377
    %v382 = vmul.f32 %v374, %v377
    %v383 = vmul.f32 %v375, %v377
    %v385 = vperm.slane %v257, 0
    %v387 = vadd.f32 %v379, %v385
    %v388 = vadd.f32 %v380, %v385
    %v389 = vadd.f32 %v381, %v385
    %v390 = vadd.f32 %v382, %v385
    %v391 = vadd.f32 %v383, %v385
    %v392 = vld [vmem:[%s5] sm:$0xff]
    %v393 = vld [vmem:[%s5 + $0x8] sm:$0xff]
    %v394 = vld [vmem:[%s5 + $0x10] sm:$0xff]
    %v395 = vld [vmem:[%s5 + $0x18] sm:$0xff]
    %v396 = vld [vmem:[%s5 + $0x20] sm:$0xff]
    %v397 = vld [vmem:[%s7] sm:$0x1]
    %v398 = vld [vmem:[%s8] sm:$0x1]
    %v399 = vsel %vm258, %v387, 0.0
    %400 = vadd.xlane.f32.xlu0 %v399
    %v401 = vpop.xlane.xlu0 %400
    %v402 = vsel %vm258, %v388, 0.0
    %403 = vadd.xlane.f32.xlu0 %v402
    %v404 = vpop.xlane.xlu0 %403
    %v405 = vsel %vm258, %v389, 0.0
    %406 = vadd.xlane.f32.xlu0 %v405
    %v407 = vpop.xlane.xlu0 %406
    %v408 = vsel %vm258, %v390, 0.0
    %409 = vadd.xlane.f32.xlu0 %v408
    %v410 = vpop.xlane.xlu0 %409
    %v411 = vsel %vm258, %v391, 0.0
    %412 = vadd.xlane.f32.xlu0 %v411
    %v413 = vpop.xlane.xlu0 %412
    %v414 = vmul.f32 %v401, %v280
    %v415 = vmul.f32 %v404, %v280
    %v416 = vmul.f32 %v407, %v280
    %v417 = vmul.f32 %v410, %v280
    %v418 = vmul.f32 %v413, %v280
    %v419 = vsub.f32 %v387, %v414
    %v420 = vsub.f32 %v388, %v415
    %v421 = vsub.f32 %v389, %v416
    %v422 = vsub.f32 %v390, %v417
    %v423 = vsub.f32 %v391, %v418
    %v424 = vmul.f32 %v419, %v419
    %v425 = vmul.f32 %v420, %v420
    %v426 = vmul.f32 %v421, %v421
    %v427 = vmul.f32 %v422, %v422
    %v428 = vmul.f32 %v423, %v423
    %v429 = vsel %vm258, %v424, 0.0
    %430 = vadd.xlane.f32.xlu0 %v429
    %v431 = vpop.xlane.xlu0 %430
    %v432 = vsel %vm258, %v425, 0.0
    %433 = vadd.xlane.f32.xlu0 %v432
    %v434 = vpop.xlane.xlu0 %433
    %v435 = vsel %vm258, %v426, 0.0
    %436 = vadd.xlane.f32.xlu0 %v435
    %v437 = vpop.xlane.xlu0 %436
    %v438 = vsel %vm258, %v427, 0.0
    %439 = vadd.xlane.f32.xlu0 %v438
    %v440 = vpop.xlane.xlu0 %439
    %v441 = vsel %vm258, %v428, 0.0
    %442 = vadd.xlane.f32.xlu0 %v441
    %v443 = vpop.xlane.xlu0 %442
    %v444 = vmul.f32 %v431, %v280
    %v445 = vmul.f32 %v434, %v280
    %v446 = vmul.f32 %v437, %v280
    %v447 = vmul.f32 %v440, %v280
    %v448 = vmul.f32 %v443, %v280
    %v449 = vadd.f32 %v444, 1e-05
    %v450 = vadd.f32 %v445, 1e-05
    %v451 = vadd.f32 %v446, 1e-05
    %v452 = vadd.f32 %v447, 1e-05
    %v453 = vadd.f32 %v448, 1e-05
    %v454 = vrsqrt.pop %v449
    %v455 = vmul.f32 %v454, %v449
    %v456 = vmul.f32 %v455, %v454
    %v457 = vmul.f32 0.5, %v456
    %v458 = vsub.f32 1.5, %v457
    %v459 = vmul.f32 %v454, %v458
    %vm460 = vweird.f32 %v449
    %vm461 = vweird.f32 %v454
    %vm462 = vmor %vm460, %vm461
    %v463 = vsel %vm462, %v454, %v459
    %v464 = vrsqrt.pop %v450
    %v465 = vmul.f32 %v464, %v450
    %v466 = vmul.f32 %v465, %v464
    %v467 = vmul.f32 0.5, %v466
    %v468 = vsub.f32 1.5, %v467
    %v469 = vmul.f32 %v464, %v468
    %vm470 = vweird.f32 %v450
    %vm471 = vweird.f32 %v464
    %vm472 = vmor %vm470, %vm471
    %v473 = vsel %vm472, %v464, %v469
    %v474 = vrsqrt.pop %v451
    %v475 = vmul.f32 %v474, %v451
    %v476 = vmul.f32 %v475, %v474
    %v477 = vmul.f32 0.5, %v476
    %v478 = vsub.f32 1.5, %v477
    %v479 = vmul.f32 %v474, %v478
    %vm480 = vweird.f32 %v451
    %vm481 = vweird.f32 %v474
    %vm482 = vmor %vm480, %vm481
    %v483 = vsel %vm482, %v474, %v479
    %v484 = vrsqrt.pop %v452
    %v485 = vmul.f32 %v484, %v452
    %v486 = vmul.f32 %v485, %v484
    %v487 = vmul.f32 0.5, %v486
    %v488 = vsub.f32 1.5, %v487
    %v489 = vmul.f32 %v484, %v488
    %vm490 = vweird.f32 %v452
    %vm491 = vweird.f32 %v484
    %vm492 = vmor %vm490, %vm491
    %v493 = vsel %vm492, %v484, %v489
    %v494 = vrsqrt.pop %v453
    %v495 = vmul.f32 %v494, %v453
    %v496 = vmul.f32 %v495, %v494
    %v497 = vmul.f32 0.5, %v496
    %v498 = vsub.f32 1.5, %v497
    %v499 = vmul.f32 %v494, %v498
    %vm500 = vweird.f32 %v453
    %vm501 = vweird.f32 %v494
    %vm502 = vmor %vm500, %vm501
    %v503 = vsel %vm502, %v494, %v499
    %v504 = vmul.f32 %v419, %v463
    %v505 = vmul.f32 %v420, %v473
    %v506 = vmul.f32 %v421, %v483
    %v507 = vmul.f32 %v422, %v493
    %v508 = vmul.f32 %v423, %v503
    %v510 = vperm.slane %v397, 0
    %v512 = vmul.f32 %v504, %v510
    %v513 = vmul.f32 %v505, %v510
    %v514 = vmul.f32 %v506, %v510
    %v515 = vmul.f32 %v507, %v510
    %v516 = vmul.f32 %v508, %v510
    %v518 = vperm.slane %v398, 0
    %v520 = vadd.f32 %v512, %v518
    %v521 = vadd.f32 %v513, %v518
    %v522 = vadd.f32 %v514, %v518
    %v523 = vadd.f32 %v515, %v518
    %v524 = vadd.f32 %v516, %v518
    %v525 = vpack.c.bf16 %v521, %v520
    %v526 = vpack.c.bf16 %v523, %v522
    %v527 = vpack.c.bf16 %v524, %v524
    %v528 = vld [vmem:[%s9] sm:$0xf]
    %v529 = vld [vmem:[%s9 + $0x4] sm:$0xf]
    %v530 = vld [vmem:[%s9 + $0x8] sm:$0xf]
    %v531 = vld [vmem:[%s9 + $0xc] sm:$0xf]
    %v532 = vld [vmem:[%s10] sm:$0x1]
    %v534 = vperm.slane %v532, 0
    %v540 = vunpack.c.l.b16 %v528
    %v541 = vunpack.c.l.b16 %v529
    %v542 = vunpack.c.l.b16 %v530
    %v543 = vunpack.c.l.b16 %v531
    %v544 = vpack.c.b16 %v541, %v540
    %v545 = vpack.c.b16 %v543, %v542
    %v549 = vsel %vm258, %v525, 0
    %v552 = vsel %vm258, %v526, 0
    %v555 = vsel %vm258, %v527, 0
    %557 = vmatpush.bf16.msra.mxu0 0
    %558 = vmatpush.bf16.msra.mxu0 0
    %559 = vmatpush.bf16.msra.mxu0 0
    %560 = vmatpush.bf16.msra.mxu0 0
    %561 = vmatpush.bf16.msra.mxu0 0
    %562 = vmatpush.bf16.msra.mxu0 0
    %563 = vmatpush.bf16.msra.mxu0 %v545
    %564 = vmatpush.bf16.msra.mxu0 %v544
    %565 = vmatmul.bf16.gmra.mxu0 %v549
    %v566 = vpop.f32.mrf.mxu0
    %v567 = vadd.f32 %v534, %v566
    %v568 = vpop.f32.mrf.mxu0
    %v569 = vadd.f32 %v534, %v568
    %570 = vmatmul.bf16.gmra.mxu0 %v552
    %v571 = vpop.f32.mrf.mxu0
    %v572 = vadd.f32 %v534, %v571
    %v573 = vpop.f32.mrf.mxu0
    %v574 = vadd.f32 %v534, %v573
    %575 = vmatmul.bf16.gmra.mxu0 %v555
    %v576 = vpop.f32.mrf.mxu0
    %v577 = vadd.f32 %v534, %v576
    %v578 = vpop.f32.mrf.mxu0
    %579 = vdwg.mxu0
    %v580 = vmul.f32 %v567, 0.35355338
    %v581 = vmul.f32 %v569, 0.35355338
    %v582 = vmul.f32 %v572, 0.35355338
    %v583 = vmul.f32 %v574, 0.35355338
    %v584 = vmul.f32 %v577, 0.35355338
    %v585 = vpack.c.bf16 %v580, %v580
    %v586 = vpack.c.bf16 %v581, %v581
    %v587 = vpack.c.bf16 %v582, %v582
    %v588 = vpack.c.bf16 %v583, %v583
    %v589 = vpack.c.bf16 %v584, %v584
    %v590 = vpack.c.bf16 %v567, %v567
    %v591 = vpack.c.bf16 %v569, %v569
    %v592 = vpack.c.bf16 %v572, %v572
    %v593 = vpack.c.bf16 %v574, %v574
    %v594 = vpack.c.bf16 %v577, %v577
    %v600 = vunpack.c.l.b16 %v585
    %v601 = vunpack.c.l.b16 %v586
    %v602 = vunpack.c.l.b16 %v587
    %v603 = vunpack.c.l.b16 %v588
    %v604 = vunpack.c.l.b16 %v589
    %v605 = vpack.c.b16 %v601, %v600
    %v606 = vpack.c.b16 %v603, %v602
    %v607 = vpack.c.b16 %v604, %v604
    %v613 = vunpack.c.l.b16 %v590
    %v614 = vunpack.c.l.b16 %v591
    %v615 = vunpack.c.l.b16 %v592
    %v616 = vunpack.c.l.b16 %v593
    %v617 = vunpack.c.l.b16 %v594
    %v618 = vpack.c.b16 %v614, %v613
    %v619 = vpack.c.b16 %v616, %v615
    %v620 = vpack.c.b16 %v617, %v617
    %621 = vrot.lane.b32.xlu0 %v618, 96
    %v622 = vpop.permute.xlu0 %621
    %623 = vrot.lane.b32.xlu0 %v619, 96
    %v624 = vpop.permute.xlu0 %623
    %625 = vrot.lane.b32.xlu0 %v620, 96
    %v626 = vpop.permute.xlu0 %625
    %vm627 = vcmask 64512
    %v629 = vsel %vm627, %v605, 0
    %v632 = vsel %vm627, %v606, 0
    %v635 = vsel %vm627, %v607, 0
    %v638 = vsel %vm627, %v622, 0
    %v641 = vsel %vm627, %v624, 0
    %v644 = vsel %vm627, %v626, 0
    %646 = vmatpush.bf16.xpose.msra.mxu0 0
    %647 = vmatpush.bf16.xpose.msra.mxu0 0
    %648 = vmatpush.bf16.xpose.msra.mxu0 0
    %649 = vmatpush.bf16.xpose.msra.mxu0 0
    %650 = vmatpush.bf16.xpose.msra.mxu0 0
    %651 = vmatpush.bf16.xpose.msra.mxu0 %v644
    %652 = vmatpush.bf16.xpose.msra.mxu0 %v641
    %653 = vmatpush.bf16.xpose.msra.mxu0 %v638
    %654 = vmatmul.bf16.gmra.mxu0 %v629
    %v655 = vpop.f32.mrf.mxu0
    %v656 = vadd.f32 %v392, %v655
    %v657 = vpop.f32.mrf.mxu0
    %v658 = vadd.f32 %v393, %v657
    %659 = vmatmul.bf16.gmra.mxu0 %v632
    %v660 = vpop.f32.mrf.mxu0
    %v661 = vadd.f32 %v394, %v660
    %v662 = vpop.f32.mrf.mxu0
    %v663 = vadd.f32 %v395, %v662
    %664 = vmatmul.bf16.gmra.mxu0 %v635
    %v665 = vpop.f32.mrf.mxu0
    %v666 = vadd.f32 %v396, %v665
    %v667 = vpop.f32.mrf.mxu0
    %668 = vdwg.mxu0
    %vm669 = vcmask 326656
    %v670 = vsel %vm669, %v656, -inf
    %671 = vmax.xlane.f32.xlu0 %v670
    %v672 = vpop.xlane.xlu0 %671
    %v673 = vsel %vm669, %v658, -inf
    %674 = vmax.xlane.f32.xlu0 %v673
    %v675 = vpop.xlane.xlu0 %674
    %v676 = vsel %vm669, %v661, -inf
    %677 = vmax.xlane.f32.xlu0 %v676
    %v678 = vpop.xlane.xlu0 %677
    %v679 = vsel %vm669, %v663, -inf
    %680 = vmax.xlane.f32.xlu0 %v679
    %v681 = vpop.xlane.xlu0 %680
    %v682 = vsel %vm669, %v666, -inf
    %683 = vmax.xlane.f32.xlu0 %v682
    %v684 = vpop.xlane.xlu0 %683
    %v685 = vsub.f32 %v656, %v672
    %v686 = vsub.f32 %v658, %v675
    %v687 = vsub.f32 %v661, %v678
    %v688 = vsub.f32 %v663, %v681
    %v689 = vsub.f32 %v666, %v684
    %v690 = vmul.f32 %v685, 1.442695
    %v691 = vpow.pop %v690
    %v692 = vmul.f32 %v686, 1.442695
    %v693 = vpow.pop %v692
    %v694 = vmul.f32 %v687, 1.442695
    %v695 = vpow.pop %v694
    %v696 = vmul.f32 %v688, 1.442695
    %v697 = vpow.pop %v696
    %v698 = vmul.f32 %v689, 1.442695
    %v699 = vpow.pop %v698
    %v700 = vsel %vm669, %v691, 0.0
    %701 = vadd.xlane.f32.xlu0 %v700
    %v702 = vpop.xlane.xlu0 %701
    %v703 = vsel %vm669, %v693, 0.0
    %704 = vadd.xlane.f32.xlu0 %v703
    %v705 = vpop.xlane.xlu0 %704
    %v706 = vsel %vm669, %v695, 0.0
    %707 = vadd.xlane.f32.xlu0 %v706
    %v708 = vpop.xlane.xlu0 %707
    %v709 = vsel %vm669, %v697, 0.0
    %710 = vadd.xlane.f32.xlu0 %v709
    %v711 = vpop.xlane.xlu0 %710
    %v712 = vsel %vm669, %v699, 0.0
    %713 = vadd.xlane.f32.xlu0 %v712
    %v714 = vpop.xlane.xlu0 %713
    %v715 = vrcp.pop %v702
    %v716 = vrcp.pop %v705
    %v717 = vrcp.pop %v708
    %v718 = vrcp.pop %v711
    %v719 = vrcp.pop %v714
    %v720 = vmul.f32 %v691, %v715
    %v721 = vmul.f32 %v693, %v716
    %v722 = vmul.f32 %v695, %v717
    %v723 = vmul.f32 %v697, %v718
    %v724 = vmul.f32 %v699, %v719
    %v725 = vpack.c.bf16 %v721, %v720
    %v726 = vpack.c.bf16 %v723, %v722
    %v727 = vpack.c.bf16 %v724, %v724
    %728 = vrot.lane.b32.xlu0 %v618, 64
    %v729 = vpop.permute.xlu0 %728
    %730 = vrot.lane.b32.xlu0 %v619, 64
    %v731 = vpop.permute.xlu0 %730
    %732 = vrot.lane.b32.xlu0 %v620, 64
    %v733 = vpop.permute.xlu0 %732
    %v737 = vsel %vm669, %v725, 0
    %v740 = vsel %vm669, %v726, 0
    %v743 = vsel %vm669, %v727, 0
    %vm745 = vcmask 1043456
    %v747 = vsel %vm745, %v733, 0
    %749 = vmatpush.bf16.msra.mxu0 0
    %750 = vmatpush.bf16.msra.mxu0 0
    %751 = vmatpush.bf16.msra.mxu0 0
    %752 = vmatpush.bf16.msra.mxu0 0
    %753 = vmatpush.bf16.msra.mxu0 0
    %754 = vmatpush.bf16.msra.mxu0 %v747
    %755 = vmatpush.bf16.msra.mxu0 %v731
    %756 = vmatpush.bf16.msra.mxu0 %v729
    %757 = vmatmul.bf16.gmra.mxu0 %v737
    %v758 = vpop.f32.mrf.mxu0
    %v759 = vadd.f32 0.0, %v758
    %v760 = vpop.f32.mrf.mxu0
    %v761 = vadd.f32 0.0, %v760
    %762 = vmatmul.bf16.gmra.mxu0 %v740
    %v763 = vpop.f32.mrf.mxu0
    %v764 = vadd.f32 0.0, %v763
    %v765 = vpop.f32.mrf.mxu0
    %v766 = vadd.f32 0.0, %v765
    %767 = vmatmul.bf16.gmra.mxu0 %v743
    %v768 = vpop.f32.mrf.mxu0
    %v769 = vadd.f32 0.0, %v768
    %v770 = vpop.f32.mrf.mxu0
    %771 = vdwg.mxu0
    %772 = vrot.lane.b32.xlu0 %v605, 120
    %v773 = vpop.permute.xlu0 %772
    %774 = vrot.lane.b32.xlu0 %v606, 120
    %v775 = vpop.permute.xlu0 %774
    %776 = vrot.lane.b32.xlu0 %v607, 120
    %v777 = vpop.permute.xlu0 %776
    %778 = vrot.lane.b32.xlu0 %v618, 88
    %v779 = vpop.permute.xlu0 %778
    %780 = vrot.lane.b32.xlu0 %v619, 88
    %v781 = vpop.permute.xlu0 %780
    %782 = vrot.lane.b32.xlu0 %v620, 88
    %v783 = vpop.permute.xlu0 %782
    %v785 = vsel %vm627, %v773, 0
    %v788 = vsel %vm627, %v775, 0
    %v791 = vsel %vm627, %v777, 0
    %v794 = vsel %vm627, %v779, 0
    %v797 = vsel %vm627, %v781, 0
    %v800 = vsel %vm627, %v783, 0
    %802 = vmatpush.bf16.xpose.msra.mxu0 0
    %803 = vmatpush.bf16.xpose.msra.mxu0 0
    %804 = vmatpush.bf16.xpose.msra.mxu0 0
    %805 = vmatpush.bf16.xpose.msra.mxu0 0
    %806 = vmatpush.bf16.xpose.msra.mxu0 0
    %807 = vmatpush.bf16.xpose.msra.mxu0 %v800
    %808 = vmatpush.bf16.xpose.msra.mxu0 %v797
    %809 = vmatpush.bf16.xpose.msra.mxu0 %v794
    %810 = vmatmul.bf16.gmra.mxu0 %v785
    %v811 = vpop.f32.mrf.mxu0
    %v812 = vadd.f32 %v392, %v811
    %v813 = vpop.f32.mrf.mxu0
    %v814 = vadd.f32 %v393, %v813
    %815 = vmatmul.bf16.gmra.mxu0 %v788
    %v816 = vpop.f32.mrf.mxu0
    %v817 = vadd.f32 %v394, %v816
    %v818 = vpop.f32.mrf.mxu0
    %v819 = vadd.f32 %v395, %v818
    %820 = vmatmul.bf16.gmra.mxu0 %v791
    %v821 = vpop.f32.mrf.mxu0
    %v822 = vadd.f32 %v396, %v821
    %v823 = vpop.f32.mrf.mxu0
    %824 = vdwg.mxu0
    %v825 = vsel %vm669, %v812, -inf
    %826 = vmax.xlane.f32.xlu0 %v825
    %v827 = vpop.xlane.xlu0 %826
    %v828 = vsel %vm669, %v814, -inf
    %829 = vmax.xlane.f32.xlu0 %v828
    %v830 = vpop.xlane.xlu0 %829
    %v831 = vsel %vm669, %v817, -inf
    %832 = vmax.xlane.f32.xlu0 %v831
    %v833 = vpop.xlane.xlu0 %832
    %v834 = vsel %vm669, %v819, -inf
    %835 = vmax.xlane.f32.xlu0 %v834
    %v836 = vpop.xlane.xlu0 %835
    %v837 = vsel %vm669, %v822, -inf
    %838 = vmax.xlane.f32.xlu0 %v837
    %v839 = vpop.xlane.xlu0 %838
    %v840 = vsub.f32 %v812, %v827
    %v841 = vsub.f32 %v814, %v830
    %v842 = vsub.f32 %v817, %v833
    %v843 = vsub.f32 %v819, %v836
    %v844 = vsub.f32 %v822, %v839
    %v845 = vmul.f32 %v840, 1.442695
    %v846 = vpow.pop %v845
    %v847 = vmul.f32 %v841, 1.442695
    %v848 = vpow.pop %v847
    %v849 = vmul.f32 %v842, 1.442695
    %v850 = vpow.pop %v849
    %v851 = vmul.f32 %v843, 1.442695
    %v852 = vpow.pop %v851
    %v853 = vmul.f32 %v844, 1.442695
    %v854 = vpow.pop %v853
    %v855 = vsel %vm669, %v846, 0.0
    %856 = vadd.xlane.f32.xlu0 %v855
    %v857 = vpop.xlane.xlu0 %856
    %v858 = vsel %vm669, %v848, 0.0
    %859 = vadd.xlane.f32.xlu0 %v858
    %v860 = vpop.xlane.xlu0 %859
    %v861 = vsel %vm669, %v850, 0.0
    %862 = vadd.xlane.f32.xlu0 %v861
    %v863 = vpop.xlane.xlu0 %862
    %v864 = vsel %vm669, %v852, 0.0
    %865 = vadd.xlane.f32.xlu0 %v864
    %v866 = vpop.xlane.xlu0 %865
    %v867 = vsel %vm669, %v854, 0.0
    %868 = vadd.xlane.f32.xlu0 %v867
    %v869 = vpop.xlane.xlu0 %868
    %v870 = vrcp.pop %v857
    %v871 = vrcp.pop %v860
    %v872 = vrcp.pop %v863
    %v873 = vrcp.pop %v866
    %v874 = vrcp.pop %v869
    %v875 = vmul.f32 %v846, %v870
    %v876 = vmul.f32 %v848, %v871
    %v877 = vmul.f32 %v850, %v872
    %v878 = vmul.f32 %v852, %v873
    %v879 = vmul.f32 %v854, %v874
    %v880 = vpack.c.bf16 %v876, %v875
    %v881 = vpack.c.bf16 %v878, %v877
    %v882 = vpack.c.bf16 %v879, %v879
    %883 = vrot.lane.b32.xlu0 %v618, 56
    %v884 = vpop.permute.xlu0 %883
    %885 = vrot.lane.b32.xlu0 %v619, 56
    %v886 = vpop.permute.xlu0 %885
    %887 = vrot.lane.b32.xlu0 %v620, 56
    %v888 = vpop.permute.xlu0 %887
    %v892 = vsel %vm669, %v880, 0
    %v895 = vsel %vm669, %v881, 0
    %v898 = vsel %vm669, %v882, 0
    %v901 = vsel %vm745, %v888, 0
    %903 = vmatpush.bf16.msra.mxu0 0
    %904 = vmatpush.bf16.msra.mxu0 0
    %905 = vmatpush.bf16.msra.mxu0 0
    %906 = vmatpush.bf16.msra.mxu0 0
    %907 = vmatpush.bf16.msra.mxu0 0
    %908 = vmatpush.bf16.msra.mxu0 %v901
    %909 = vmatpush.bf16.msra.mxu0 %v886
    %910 = vmatpush.bf16.msra.mxu0 %v884
    %911 = vmatmul.bf16.gmra.mxu0 %v892
    %v912 = vpop.f32.mrf.mxu0
    %v913 = vadd.f32 0.0, %v912
    %v914 = vpop.f32.mrf.mxu0
    %v915 = vadd.f32 0.0, %v914
    %916 = vmatmul.bf16.gmra.mxu0 %v895
    %v917 = vpop.f32.mrf.mxu0
    %v918 = vadd.f32 0.0, %v917
    %v919 = vpop.f32.mrf.mxu0
    %v920 = vadd.f32 0.0, %v919
    %921 = vmatmul.bf16.gmra.mxu0 %v898
    %v922 = vpop.f32.mrf.mxu0
    %v923 = vadd.f32 0.0, %v922
    %v924 = vpop.f32.mrf.mxu0
    %925 = vdwg.mxu0
    %926 = vrot.lane.b32.xlu0 %v605, 112
    %v927 = vpop.permute.xlu0 %926
    %928 = vrot.lane.b32.xlu0 %v606, 112
    %v929 = vpop.permute.xlu0 %928
    %930 = vrot.lane.b32.xlu0 %v607, 112
    %v931 = vpop.permute.xlu0 %930
    %932 = vrot.lane.b32.xlu0 %v618, 80
    %v933 = vpop.permute.xlu0 %932
    %934 = vrot.lane.b32.xlu0 %v619, 80
    %v935 = vpop.permute.xlu0 %934
    %936 = vrot.lane.b32.xlu0 %v620, 80
    %v937 = vpop.permute.xlu0 %936
    %v939 = vsel %vm627, %v927, 0
    %v942 = vsel %vm627, %v929, 0
    %v945 = vsel %vm627, %v931, 0
    %v948 = vsel %vm627, %v933, 0
    %v951 = vsel %vm627, %v935, 0
    %v954 = vsel %vm627, %v937, 0
    %956 = vmatpush.bf16.xpose.msra.mxu0 0
    %957 = vmatpush.bf16.xpose.msra.mxu0 0
    %958 = vmatpush.bf16.xpose.msra.mxu0 0
    %959 = vmatpush.bf16.xpose.msra.mxu0 0
    %960 = vmatpush.bf16.xpose.msra.mxu0 0
    %961 = vmatpush.bf16.xpose.msra.mxu0 %v954
    %962 = vmatpush.bf16.xpose.msra.mxu0 %v951
    %963 = vmatpush.bf16.xpose.msra.mxu0 %v948
    %964 = vmatmul.bf16.gmra.mxu0 %v939
    %v965 = vpop.f32.mrf.mxu0
    %v966 = vadd.f32 %v392, %v965
    %v967 = vpop.f32.mrf.mxu0
    %v968 = vadd.f32 %v393, %v967
    %969 = vmatmul.bf16.gmra.mxu0 %v942
    %v970 = vpop.f32.mrf.mxu0
    %v971 = vadd.f32 %v394, %v970
    %v972 = vpop.f32.mrf.mxu0
    %v973 = vadd.f32 %v395, %v972
    %974 = vmatmul.bf16.gmra.mxu0 %v945
    %v975 = vpop.f32.mrf.mxu0
    %v976 = vadd.f32 %v396, %v975
    %v977 = vpop.f32.mrf.mxu0
    %978 = vdwg.mxu0
    %v979 = vsel %vm669, %v966, -inf
    %980 = vmax.xlane.f32.xlu0 %v979
    %v981 = vpop.xlane.xlu0 %980
    %v982 = vsel %vm669, %v968, -inf
    %983 = vmax.xlane.f32.xlu0 %v982
    %v984 = vpop.xlane.xlu0 %983
    %v985 = vsel %vm669, %v971, -inf
    %986 = vmax.xlane.f32.xlu0 %v985
    %v987 = vpop.xlane.xlu0 %986
    %v988 = vsel %vm669, %v973, -inf
    %989 = vmax.xlane.f32.xlu0 %v988
    %v990 = vpop.xlane.xlu0 %989
    %v991 = vsel %vm669, %v976, -inf
    %992 = vmax.xlane.f32.xlu0 %v991
    %v993 = vpop.xlane.xlu0 %992
    %v994 = vsub.f32 %v966, %v981
    %v995 = vsub.f32 %v968, %v984
    %v996 = vsub.f32 %v971, %v987
    %v997 = vsub.f32 %v973, %v990
    %v998 = vsub.f32 %v976, %v993
    %v999 = vmul.f32 %v994, 1.442695
    %v1000 = vpow.pop %v999
    %v1001 = vmul.f32 %v995, 1.442695
    %v1002 = vpow.pop %v1001
    %v1003 = vmul.f32 %v996, 1.442695
    %v1004 = vpow.pop %v1003
    %v1005 = vmul.f32 %v997, 1.442695
    %v1006 = vpow.pop %v1005
    %v1007 = vmul.f32 %v998, 1.442695
    %v1008 = vpow.pop %v1007
    %v1009 = vsel %vm669, %v1000, 0.0
    %1010 = vadd.xlane.f32.xlu0 %v1009
    %v1011 = vpop.xlane.xlu0 %1010
    %v1012 = vsel %vm669, %v1002, 0.0
    %1013 = vadd.xlane.f32.xlu0 %v1012
    %v1014 = vpop.xlane.xlu0 %1013
    %v1015 = vsel %vm669, %v1004, 0.0
    %1016 = vadd.xlane.f32.xlu0 %v1015
    %v1017 = vpop.xlane.xlu0 %1016
    %v1018 = vsel %vm669, %v1006, 0.0
    %1019 = vadd.xlane.f32.xlu0 %v1018
    %v1020 = vpop.xlane.xlu0 %1019
    %v1021 = vsel %vm669, %v1008, 0.0
    %1022 = vadd.xlane.f32.xlu0 %v1021
    %v1023 = vpop.xlane.xlu0 %1022
    %v1024 = vrcp.pop %v1011
    %v1025 = vrcp.pop %v1014
    %v1026 = vrcp.pop %v1017
    %v1027 = vrcp.pop %v1020
    %v1028 = vrcp.pop %v1023
    %v1029 = vmul.f32 %v1000, %v1024
    %v1030 = vmul.f32 %v1002, %v1025
    %v1031 = vmul.f32 %v1004, %v1026
    %v1032 = vmul.f32 %v1006, %v1027
    %v1033 = vmul.f32 %v1008, %v1028
    %v1034 = vpack.c.bf16 %v1030, %v1029
    %v1035 = vpack.c.bf16 %v1032, %v1031
    %v1036 = vpack.c.bf16 %v1033, %v1033
    %1037 = vrot.lane.b32.xlu0 %v618, 48
    %v1038 = vpop.permute.xlu0 %1037
    %1039 = vrot.lane.b32.xlu0 %v619, 48
    %v1040 = vpop.permute.xlu0 %1039
    %1041 = vrot.lane.b32.xlu0 %v620, 48
    %v1042 = vpop.permute.xlu0 %1041
    %v1046 = vsel %vm669, %v1034, 0
    %v1049 = vsel %vm669, %v1035, 0
    %v1052 = vsel %vm669, %v1036, 0
    %v1055 = vsel %vm745, %v1042, 0
    %1057 = vmatpush.bf16.msra.mxu0 0
    %1058 = vmatpush.bf16.msra.mxu0 0
    %1059 = vmatpush.bf16.msra.mxu0 0
    %1060 = vmatpush.bf16.msra.mxu0 0
    %1061 = vmatpush.bf16.msra.mxu0 0
    %1062 = vmatpush.bf16.msra.mxu0 %v1055
    %1063 = vmatpush.bf16.msra.mxu0 %v1040
    %1064 = vmatpush.bf16.msra.mxu0 %v1038
    %1065 = vmatmul.bf16.gmra.mxu0 %v1046
    %v1066 = vpop.f32.mrf.mxu0
    %v1067 = vadd.f32 0.0, %v1066
    %v1068 = vpop.f32.mrf.mxu0
    %v1069 = vadd.f32 0.0, %v1068
    %1070 = vmatmul.bf16.gmra.mxu0 %v1049
    %v1071 = vpop.f32.mrf.mxu0
    %v1072 = vadd.f32 0.0, %v1071
    %v1073 = vpop.f32.mrf.mxu0
    %v1074 = vadd.f32 0.0, %v1073
    %1075 = vmatmul.bf16.gmra.mxu0 %v1052
    %v1076 = vpop.f32.mrf.mxu0
    %v1077 = vadd.f32 0.0, %v1076
    %v1078 = vpop.f32.mrf.mxu0
    %1079 = vdwg.mxu0
    %1080 = vrot.lane.b32.xlu0 %v605, 104
    %v1081 = vpop.permute.xlu0 %1080
    %1082 = vrot.lane.b32.xlu0 %v606, 104
    %v1083 = vpop.permute.xlu0 %1082
    %1084 = vrot.lane.b32.xlu0 %v607, 104
    %v1085 = vpop.permute.xlu0 %1084
    %1086 = vrot.lane.b32.xlu0 %v618, 72
    %v1087 = vpop.permute.xlu0 %1086
    %1088 = vrot.lane.b32.xlu0 %v619, 72
    %v1089 = vpop.permute.xlu0 %1088
    %1090 = vrot.lane.b32.xlu0 %v620, 72
    %v1091 = vpop.permute.xlu0 %1090
    %v1093 = vsel %vm627, %v1081, 0
    %v1096 = vsel %vm627, %v1083, 0
    %v1099 = vsel %vm627, %v1085, 0
    %v1102 = vsel %vm627, %v1087, 0
    %v1105 = vsel %vm627, %v1089, 0
    %v1108 = vsel %vm627, %v1091, 0
    %1110 = vmatpush.bf16.xpose.msra.mxu0 0
    %1111 = vmatpush.bf16.xpose.msra.mxu0 0
    %1112 = vmatpush.bf16.xpose.msra.mxu0 0
    %1113 = vmatpush.bf16.xpose.msra.mxu0 0
    %1114 = vmatpush.bf16.xpose.msra.mxu0 0
    %1115 = vmatpush.bf16.xpose.msra.mxu0 %v1108
    %1116 = vmatpush.bf16.xpose.msra.mxu0 %v1105
    %1117 = vmatpush.bf16.xpose.msra.mxu0 %v1102
    %1118 = vmatmul.bf16.gmra.mxu0 %v1093
    %v1119 = vpop.f32.mrf.mxu0
    %v1120 = vadd.f32 %v392, %v1119
    %v1121 = vpop.f32.mrf.mxu0
    %v1122 = vadd.f32 %v393, %v1121
    %1123 = vmatmul.bf16.gmra.mxu0 %v1096
    %v1124 = vpop.f32.mrf.mxu0
    %v1125 = vadd.f32 %v394, %v1124
    %v1126 = vpop.f32.mrf.mxu0
    %v1127 = vadd.f32 %v395, %v1126
    %1128 = vmatmul.bf16.gmra.mxu0 %v1099
    %v1129 = vpop.f32.mrf.mxu0
    %v1130 = vadd.f32 %v396, %v1129
    %v1131 = vpop.f32.mrf.mxu0
    %1132 = vdwg.mxu0
    %v1133 = vsel %vm669, %v1120, -inf
    %1134 = vmax.xlane.f32.xlu0 %v1133
    %v1135 = vpop.xlane.xlu0 %1134
    %v1136 = vsel %vm669, %v1122, -inf
    %1137 = vmax.xlane.f32.xlu0 %v1136
    %v1138 = vpop.xlane.xlu0 %1137
    %v1139 = vsel %vm669, %v1125, -inf
    %1140 = vmax.xlane.f32.xlu0 %v1139
    %v1141 = vpop.xlane.xlu0 %1140
    %v1142 = vsel %vm669, %v1127, -inf
    %1143 = vmax.xlane.f32.xlu0 %v1142
    %v1144 = vpop.xlane.xlu0 %1143
    %v1145 = vsel %vm669, %v1130, -inf
    %1146 = vmax.xlane.f32.xlu0 %v1145
    %v1147 = vpop.xlane.xlu0 %1146
    %v1148 = vsub.f32 %v1120, %v1135
    %v1149 = vsub.f32 %v1122, %v1138
    %v1150 = vsub.f32 %v1125, %v1141
    %v1151 = vsub.f32 %v1127, %v1144
    %v1152 = vsub.f32 %v1130, %v1147
    %v1153 = vmul.f32 %v1148, 1.442695
    %v1154 = vpow.pop %v1153
    %v1155 = vmul.f32 %v1149, 1.442695
    %v1156 = vpow.pop %v1155
    %v1157 = vmul.f32 %v1150, 1.442695
    %v1158 = vpow.pop %v1157
    %v1159 = vmul.f32 %v1151, 1.442695
    %v1160 = vpow.pop %v1159
    %v1161 = vmul.f32 %v1152, 1.442695
    %v1162 = vpow.pop %v1161
    %v1163 = vsel %vm669, %v1154, 0.0
    %1164 = vadd.xlane.f32.xlu0 %v1163
    %v1165 = vpop.xlane.xlu0 %1164
    %v1166 = vsel %vm669, %v1156, 0.0
    %1167 = vadd.xlane.f32.xlu0 %v1166
    %v1168 = vpop.xlane.xlu0 %1167
    %v1169 = vsel %vm669, %v1158, 0.0
    %1170 = vadd.xlane.f32.xlu0 %v1169
    %v1171 = vpop.xlane.xlu0 %1170
    %v1172 = vsel %vm669, %v1160, 0.0
    %1173 = vadd.xlane.f32.xlu0 %v1172
    %v1174 = vpop.xlane.xlu0 %1173
    %v1175 = vsel %vm669, %v1162, 0.0
    %1176 = vadd.xlane.f32.xlu0 %v1175
    %v1177 = vpop.xlane.xlu0 %1176
    %v1178 = vrcp.pop %v1165
    %v1179 = vrcp.pop %v1168
    %v1180 = vrcp.pop %v1171
    %v1181 = vrcp.pop %v1174
    %v1182 = vrcp.pop %v1177
    %v1183 = vmul.f32 %v1154, %v1178
    %v1184 = vmul.f32 %v1156, %v1179
    %v1185 = vmul.f32 %v1158, %v1180
    %v1186 = vmul.f32 %v1160, %v1181
    %v1187 = vmul.f32 %v1162, %v1182
    %v1188 = vpack.c.bf16 %v1184, %v1183
    %v1189 = vpack.c.bf16 %v1186, %v1185
    %v1190 = vpack.c.bf16 %v1187, %v1187
    %1191 = vrot.lane.b32.xlu0 %v618, 40
    %v1192 = vpop.permute.xlu0 %1191
    %1193 = vrot.lane.b32.xlu0 %v619, 40
    %v1194 = vpop.permute.xlu0 %1193
    %1195 = vrot.lane.b32.xlu0 %v620, 40
    %v1196 = vpop.permute.xlu0 %1195
    %v1200 = vsel %vm669, %v1188, 0
    %v1203 = vsel %vm669, %v1189, 0
    %v1206 = vsel %vm669, %v1190, 0
    %v1209 = vsel %vm745, %v1196, 0
    %1211 = vmatpush.bf16.msra.mxu0 0
    %1212 = vmatpush.bf16.msra.mxu0 0
    %1213 = vmatpush.bf16.msra.mxu0 0
    %1214 = vmatpush.bf16.msra.mxu0 0
    %1215 = vmatpush.bf16.msra.mxu0 0
    %1216 = vmatpush.bf16.msra.mxu0 %v1209
    %1217 = vmatpush.bf16.msra.mxu0 %v1194
    %1218 = vmatpush.bf16.msra.mxu0 %v1192
    %1219 = vmatmul.bf16.gmra.mxu0 %v1200
    %v1220 = vpop.f32.mrf.mxu0
    %v1221 = vadd.f32 0.0, %v1220
    %v1222 = vpop.f32.mrf.mxu0
    %v1223 = vadd.f32 0.0, %v1222
    %1224 = vmatmul.bf16.gmra.mxu0 %v1203
    %v1225 = vpop.f32.mrf.mxu0
    %v1226 = vadd.f32 0.0, %v1225
    %v1227 = vpop.f32.mrf.mxu0
    %v1228 = vadd.f32 0.0, %v1227
    %1229 = vmatmul.bf16.gmra.mxu0 %v1206
    %v1230 = vpop.f32.mrf.mxu0
    %v1231 = vadd.f32 0.0, %v1230
    %v1232 = vpop.f32.mrf.mxu0
    %1233 = vdwg.mxu0
    %1239 = vrot.lane.b32.xlu0 %v913, 8
    %v1240 = vpop.permute.xlu0 %1239
    %1241 = vrot.lane.b32.xlu0 %v915, 8
    %v1242 = vpop.permute.xlu0 %1241
    %1243 = vrot.lane.b32.xlu0 %v918, 8
    %v1244 = vpop.permute.xlu0 %1243
    %1245 = vrot.lane.b32.xlu0 %v920, 8
    %v1246 = vpop.permute.xlu0 %1245
    %1247 = vrot.lane.b32.xlu0 %v923, 8
    %v1248 = vpop.permute.xlu0 %1247
    %1259 = vrot.lane.b32.xlu0 %v1067, 16
    %v1260 = vpop.permute.xlu0 %1259
    %1261 = vrot.lane.b32.xlu0 %v1069, 16
    %v1262 = vpop.permute.xlu0 %1261
    %1263 = vrot.lane.b32.xlu0 %v1072, 16
    %v1264 = vpop.permute.xlu0 %1263
    %1265 = vrot.lane.b32.xlu0 %v1074, 16
    %v1266 = vpop.permute.xlu0 %1265
    %1267 = vrot.lane.b32.xlu0 %v1077, 16
    %v1268 = vpop.permute.xlu0 %1267
    %1279 = vrot.lane.b32.xlu0 %v1221, 24
    %v1280 = vpop.permute.xlu0 %1279
    %1281 = vrot.lane.b32.xlu0 %v1223, 24
    %v1282 = vpop.permute.xlu0 %1281
    %1283 = vrot.lane.b32.xlu0 %v1226, 24
    %v1284 = vpop.permute.xlu0 %1283
    %1285 = vrot.lane.b32.xlu0 %v1228, 24
    %v1286 = vpop.permute.xlu0 %1285
    %1287 = vrot.lane.b32.xlu0 %v1231, 24
    %v1288 = vpop.permute.xlu0 %1287
    %v1294 = vsel %vm627, %v759, %v1240
    %v1295 = vsel %vm627, %v761, %v1242
    %v1296 = vsel %vm627, %v764, %v1244
    %v1297 = vsel %vm627, %v766, %v1246
    %v1298 = vsel %vm627, %v769, %v1248
    %vm1299 = vcmask 130048
    %v1300 = vsel %vm1299, %v1294, %v1260
    %v1301 = vsel %vm1299, %v1295, %v1262
    %v1302 = vsel %vm1299, %v1296, %v1264
    %v1303 = vsel %vm1299, %v1297, %v1266
    %v1304 = vsel %vm1299, %v1298, %v1268
    %vm1305 = vcmask 195584
    %v1306 = vsel %vm1305, %v1300, %v1280
    %v1307 = vsel %vm1305, %v1301, %v1282
    %v1308 = vsel %vm1305, %v1302, %v1284
    %v1309 = vsel %vm1305, %v1303, %v1286
    %v1310 = vsel %vm1305, %v1304, %v1288
    %v1311 = vpack.c.bf16 %v1307, %v1306
    %v1312 = vpack.c.bf16 %v1309, %v1308
    %v1313 = vpack.c.bf16 %v1310, %v1310
    %v1314 = vld [vmem:[%s11] sm:$0xf]
    %v1315 = vld [vmem:[%s11 + $0x4] sm:$0xf]
    %v1316 = vld [vmem:[%s11 + $0x8] sm:$0xf]
    %v1317 = vld [vmem:[%s11 + $0xc] sm:$0xf]
    %v1322 = vunpack.c.l.b16 %v1314
    %v1323 = vunpack.c.l.b16 %v1315
    %v1324 = vunpack.c.l.b16 %v1316
    %v1325 = vunpack.c.l.b16 %v1317
    %v1326 = vpack.c.b16 %v1323, %v1322
    %v1327 = vpack.c.b16 %v1325, %v1324
    %v1331 = vsel %vm258, %v1311, 0
    %v1334 = vsel %vm258, %v1312, 0
    %v1337 = vsel %vm258, %v1313, 0
    %1339 = vmatpush.bf16.msra.mxu0 0
    %1340 = vmatpush.bf16.msra.mxu0 0
    %1341 = vmatpush.bf16.msra.mxu0 0
    %1342 = vmatpush.bf16.msra.mxu0 0
    %1343 = vmatpush.bf16.msra.mxu0 0
    %1344 = vmatpush.bf16.msra.mxu0 0
    %1345 = vmatpush.bf16.msra.mxu0 %v1327
    %1346 = vmatpush.bf16.msra.mxu0 %v1326
    %1347 = vmatmul.bf16.gmra.mxu0 %v1331
    %v1348 = vpop.f32.mrf.mxu0
    %v1349 = vadd.f32 0.0, %v1348
    %v1350 = vpop.f32.mrf.mxu0
    %v1351 = vadd.f32 0.0, %v1350
    %1352 = vmatmul.bf16.gmra.mxu0 %v1334
    %v1353 = vpop.f32.mrf.mxu0
    %v1354 = vadd.f32 0.0, %v1353
    %v1355 = vpop.f32.mrf.mxu0
    %v1356 = vadd.f32 0.0, %v1355
    %1357 = vmatmul.bf16.gmra.mxu0 %v1337
    %v1358 = vpop.f32.mrf.mxu0
    %v1359 = vadd.f32 0.0, %v1358
    %v1360 = vpop.f32.mrf.mxu0
    %1361 = vdwg.mxu0
    %v1362 = vadd.f32 %v387, %v1349
    %v1363 = vadd.f32 %v388, %v1351
    %v1364 = vadd.f32 %v389, %v1354
    %v1365 = vadd.f32 %v390, %v1356
    %v1366 = vadd.f32 %v391, %v1359
    %v1367 = vld [vmem:[%s12] sm:$0x1]
    %v1369 = vperm.slane %v1367, 0
    %v1371 = vadd.f32 %v1362, %v1369
    %v1372 = vadd.f32 %v1363, %v1369
    %v1373 = vadd.f32 %v1364, %v1369
    %v1374 = vadd.f32 %v1365, %v1369
    %v1375 = vadd.f32 %v1366, %v1369
    %v1376 = vld [vmem:[%s13] sm:$0x1]
    %v1377 = vld [vmem:[%s14] sm:$0x1]
    %v1378 = vsel %vm258, %v1371, 0.0
    %1379 = vadd.xlane.f32.xlu0 %v1378
    %v1380 = vpop.xlane.xlu0 %1379
    %v1381 = vsel %vm258, %v1372, 0.0
    %1382 = vadd.xlane.f32.xlu0 %v1381
    %v1383 = vpop.xlane.xlu0 %1382
    %v1384 = vsel %vm258, %v1373, 0.0
    %1385 = vadd.xlane.f32.xlu0 %v1384
    %v1386 = vpop.xlane.xlu0 %1385
    %v1387 = vsel %vm258, %v1374, 0.0
    %1388 = vadd.xlane.f32.xlu0 %v1387
    %v1389 = vpop.xlane.xlu0 %1388
    %v1390 = vsel %vm258, %v1375, 0.0
    %1391 = vadd.xlane.f32.xlu0 %v1390
    %v1392 = vpop.xlane.xlu0 %1391
    %v1393 = vmul.f32 %v1380, %v280
    %v1394 = vmul.f32 %v1383, %v280
    %v1395 = vmul.f32 %v1386, %v280
    %v1396 = vmul.f32 %v1389, %v280
    %v1397 = vmul.f32 %v1392, %v280
    %v1398 = vsub.f32 %v1371, %v1393
    %v1399 = vsub.f32 %v1372, %v1394
    %v1400 = vsub.f32 %v1373, %v1395
    %v1401 = vsub.f32 %v1374, %v1396
    %v1402 = vsub.f32 %v1375, %v1397
    %v1403 = vmul.f32 %v1398, %v1398
    %v1404 = vmul.f32 %v1399, %v1399
    %v1405 = vmul.f32 %v1400, %v1400
    %v1406 = vmul.f32 %v1401, %v1401
    %v1407 = vmul.f32 %v1402, %v1402
    %v1408 = vsel %vm258, %v1403, 0.0
    %1409 = vadd.xlane.f32.xlu0 %v1408
    %v1410 = vpop.xlane.xlu0 %1409
    %v1411 = vsel %vm258, %v1404, 0.0
    %1412 = vadd.xlane.f32.xlu0 %v1411
    %v1413 = vpop.xlane.xlu0 %1412
    %v1414 = vsel %vm258, %v1405, 0.0
    %1415 = vadd.xlane.f32.xlu0 %v1414
    %v1416 = vpop.xlane.xlu0 %1415
    %v1417 = vsel %vm258, %v1406, 0.0
    %1418 = vadd.xlane.f32.xlu0 %v1417
    %v1419 = vpop.xlane.xlu0 %1418
    %v1420 = vsel %vm258, %v1407, 0.0
    %1421 = vadd.xlane.f32.xlu0 %v1420
    %v1422 = vpop.xlane.xlu0 %1421
    %v1423 = vmul.f32 %v1410, %v280
    %v1424 = vmul.f32 %v1413, %v280
    %v1425 = vmul.f32 %v1416, %v280
    %v1426 = vmul.f32 %v1419, %v280
    %v1427 = vmul.f32 %v1422, %v280
    %v1428 = vadd.f32 %v1423, 1e-05
    %v1429 = vadd.f32 %v1424, 1e-05
    %v1430 = vadd.f32 %v1425, 1e-05
    %v1431 = vadd.f32 %v1426, 1e-05
    %v1432 = vadd.f32 %v1427, 1e-05
    %v1433 = vrsqrt.pop %v1428
    %v1434 = vmul.f32 %v1433, %v1428
    %v1435 = vmul.f32 %v1434, %v1433
    %v1436 = vmul.f32 0.5, %v1435
    %v1437 = vsub.f32 1.5, %v1436
    %v1438 = vmul.f32 %v1433, %v1437
    %vm1439 = vweird.f32 %v1428
    %vm1440 = vweird.f32 %v1433
    %vm1441 = vmor %vm1439, %vm1440
    %v1442 = vsel %vm1441, %v1433, %v1438
    %v1443 = vrsqrt.pop %v1429
    %v1444 = vmul.f32 %v1443, %v1429
    %v1445 = vmul.f32 %v1444, %v1443
    %v1446 = vmul.f32 0.5, %v1445
    %v1447 = vsub.f32 1.5, %v1446
    %v1448 = vmul.f32 %v1443, %v1447
    %vm1449 = vweird.f32 %v1429
    %vm1450 = vweird.f32 %v1443
    %vm1451 = vmor %vm1449, %vm1450
    %v1452 = vsel %vm1451, %v1443, %v1448
    %v1453 = vrsqrt.pop %v1430
    %v1454 = vmul.f32 %v1453, %v1430
    %v1455 = vmul.f32 %v1454, %v1453
    %v1456 = vmul.f32 0.5, %v1455
    %v1457 = vsub.f32 1.5, %v1456
    %v1458 = vmul.f32 %v1453, %v1457
    %vm1459 = vweird.f32 %v1430
    %vm1460 = vweird.f32 %v1453
    %vm1461 = vmor %vm1459, %vm1460
    %v1462 = vsel %vm1461, %v1453, %v1458
    %v1463 = vrsqrt.pop %v1431
    %v1464 = vmul.f32 %v1463, %v1431
    %v1465 = vmul.f32 %v1464, %v1463
    %v1466 = vmul.f32 0.5, %v1465
    %v1467 = vsub.f32 1.5, %v1466
    %v1468 = vmul.f32 %v1463, %v1467
    %vm1469 = vweird.f32 %v1431
    %vm1470 = vweird.f32 %v1463
    %vm1471 = vmor %vm1469, %vm1470
    %v1472 = vsel %vm1471, %v1463, %v1468
    %v1473 = vrsqrt.pop %v1432
    %v1474 = vmul.f32 %v1473, %v1432
    %v1475 = vmul.f32 %v1474, %v1473
    %v1476 = vmul.f32 0.5, %v1475
    %v1477 = vsub.f32 1.5, %v1476
    %v1478 = vmul.f32 %v1473, %v1477
    %vm1479 = vweird.f32 %v1432
    %vm1480 = vweird.f32 %v1473
    %vm1481 = vmor %vm1479, %vm1480
    %v1482 = vsel %vm1481, %v1473, %v1478
    %v1483 = vmul.f32 %v1398, %v1442
    %v1484 = vmul.f32 %v1399, %v1452
    %v1485 = vmul.f32 %v1400, %v1462
    %v1486 = vmul.f32 %v1401, %v1472
    %v1487 = vmul.f32 %v1402, %v1482
    %v1489 = vperm.slane %v1376, 0
    %v1491 = vmul.f32 %v1483, %v1489
    %v1492 = vmul.f32 %v1484, %v1489
    %v1493 = vmul.f32 %v1485, %v1489
    %v1494 = vmul.f32 %v1486, %v1489
    %v1495 = vmul.f32 %v1487, %v1489
    %v1497 = vperm.slane %v1377, 0
    %v1499 = vadd.f32 %v1491, %v1497
    %v1500 = vadd.f32 %v1492, %v1497
    %v1501 = vadd.f32 %v1493, %v1497
    %v1502 = vadd.f32 %v1494, %v1497
    %v1503 = vadd.f32 %v1495, %v1497
    %v1504 = vpack.c.bf16 %v1500, %v1499
    %v1505 = vpack.c.bf16 %v1502, %v1501
    %v1506 = vpack.c.bf16 %v1503, %v1503
    %v1507 = vld [vmem:[%s15] sm:$0xf]
    %v1508 = vld [vmem:[%s15 + $0x4] sm:$0xf]
    %v1509 = vld [vmem:[%s15 + $0x8] sm:$0xf]
    %v1510 = vld [vmem:[%s15 + $0xc] sm:$0xf]
    %v1511 = vld [vmem:[%s16] sm:$0x1]
    %v1513 = vperm.slane %v1511, 0
    %v1519 = vunpack.c.l.b16 %v1507
    %v1520 = vunpack.c.l.b16 %v1508
    %v1521 = vunpack.c.l.b16 %v1509
    %v1522 = vunpack.c.l.b16 %v1510
    %v1523 = vpack.c.b16 %v1520, %v1519
    %v1524 = vpack.c.b16 %v1522, %v1521
    %v1528 = vsel %vm258, %v1504, 0
    %v1531 = vsel %vm258, %v1505, 0
    %v1534 = vsel %vm258, %v1506, 0
    %1536 = vmatpush.bf16.msra.mxu0 0
    %1537 = vmatpush.bf16.msra.mxu0 0
    %1538 = vmatpush.bf16.msra.mxu0 0
    %1539 = vmatpush.bf16.msra.mxu0 0
    %1540 = vmatpush.bf16.msra.mxu0 0
    %1541 = vmatpush.bf16.msra.mxu0 0
    %1542 = vmatpush.bf16.msra.mxu0 %v1524
    %1543 = vmatpush.bf16.msra.mxu0 %v1523
    %1544 = vmatmul.bf16.gmra.mxu0 %v1528
    %v1545 = vpop.f32.mrf.mxu0
    %v1546 = vadd.f32 %v1513, %v1545
    %v1547 = vpop.f32.mrf.mxu0
    %v1548 = vadd.f32 %v1513, %v1547
    %1549 = vmatmul.bf16.gmra.mxu0 %v1531
    %v1550 = vpop.f32.mrf.mxu0
    %v1551 = vadd.f32 %v1513, %v1550
    %v1552 = vpop.f32.mrf.mxu0
    %v1553 = vadd.f32 %v1513, %v1552
    %1554 = vmatmul.bf16.gmra.mxu0 %v1534
    %v1555 = vpop.f32.mrf.mxu0
    %v1556 = vadd.f32 %v1513, %v1555
    %v1557 = vpop.f32.mrf.mxu0
    %1558 = vdwg.mxu0
    %v1559 = vmul.f32 %v1546, 1.702
    %v1560 = vmul.f32 %v1548, 1.702
    %v1561 = vmul.f32 %v1551, 1.702
    %v1562 = vmul.f32 %v1553, 1.702
    %v1563 = vmul.f32 %v1556, 1.702
    %v1564 = vxor.u32 %v1559, 2147483648
    %v1565 = vxor.u32 %v1560, 2147483648
    %v1566 = vxor.u32 %v1561, 2147483648
    %v1567 = vxor.u32 %v1562, 2147483648
    %v1568 = vxor.u32 %v1563, 2147483648
    %v1569 = vmul.f32 %v1564, 1.442695
    %v1570 = vpow.pop %v1569
    %v1571 = vmul.f32 %v1565, 1.442695
    %v1572 = vpow.pop %v1571
    %v1573 = vmul.f32 %v1566, 1.442695
    %v1574 = vpow.pop %v1573
    %v1575 = vmul.f32 %v1567, 1.442695
    %v1576 = vpow.pop %v1575
    %v1577 = vmul.f32 %v1568, 1.442695
    %v1578 = vpow.pop %v1577
    %v1579 = vadd.f32 %v1570, 1.0
    %v1580 = vadd.f32 %v1572, 1.0
    %v1581 = vadd.f32 %v1574, 1.0
    %v1582 = vadd.f32 %v1576, 1.0
    %v1583 = vadd.f32 %v1578, 1.0
    %v1584 = vrcp.pop %v1579
    %v1585 = vmul.f32 %v1579, %v1584
    %v1586 = vsub.f32 1.0, %v1585
    %v1587 = vmul.f32 %v1584, %v1586
    %v1588 = vadd.f32 %v1584, %v1587
    %vm1589 = vweird.f32 %v1579
    %vm1590 = vweird.f32 %v1584
    %vm1591 = vmor %vm1589, %vm1590
    %v1592 = vsel %vm1591, %v1584, %v1588
    %v1593 = vand.u32 2147483647, %v1579
    %vm1594 = vcmp.eq.f32.partialorder %v1593, 8.507059e+37
    %v1595 = vand.u32 %v1579, 2147483648
    %v1596 = vor.u32 1.1754944e-38, %v1595
    %v1597 = vsel %vm1594, %v1596, %v1592
    %v1598 = vmul.f32 1.0, %v1597
    %v1599 = vrcp.pop %v1580
    %v1600 = vmul.f32 %v1580, %v1599
    %v1601 = vsub.f32 1.0, %v1600
    %v1602 = vmul.f32 %v1599, %v1601
    %v1603 = vadd.f32 %v1599, %v1602
    %vm1604 = vweird.f32 %v1580
    %vm1605 = vweird.f32 %v1599
    %vm1606 = vmor %vm1604, %vm1605
    %v1607 = vsel %vm1606, %v1599, %v1603
    %v1608 = vand.u32 2147483647, %v1580
    %vm1609 = vcmp.eq.f32.partialorder %v1608, 8.507059e+37
    %v1610 = vand.u32 %v1580, 2147483648
    %v1611 = vor.u32 1.1754944e-38, %v1610
    %v1612 = vsel %vm1609, %v1611, %v1607
    %v1613 = vmul.f32 1.0, %v1612
    %v1614 = vrcp.pop %v1581
    %v1615 = vmul.f32 %v1581, %v1614
    %v1616 = vsub.f32 1.0, %v1615
    %v1617 = vmul.f32 %v1614, %v1616
    %v1618 = vadd.f32 %v1614, %v1617
    %vm1619 = vweird.f32 %v1581
    %vm1620 = vweird.f32 %v1614
    %vm1621 = vmor %vm1619, %vm1620
    %v1622 = vsel %vm1621, %v1614, %v1618
    %v1623 = vand.u32 2147483647, %v1581
    %vm1624 = vcmp.eq.f32.partialorder %v1623, 8.507059e+37
    %v1625 = vand.u32 %v1581, 2147483648
    %v1626 = vor.u32 1.1754944e-38, %v1625
    %v1627 = vsel %vm1624, %v1626, %v1622
    %v1628 = vmul.f32 1.0, %v1627
    %v1629 = vrcp.pop %v1582
    %v1630 = vmul.f32 %v1582, %v1629
    %v1631 = vsub.f32 1.0, %v1630
    %v1632 = vmul.f32 %v1629, %v1631
    %v1633 = vadd.f32 %v1629, %v1632
    %vm1634 = vweird.f32 %v1582
    %vm1635 = vweird.f32 %v1629
    %vm1636 = vmor %vm1634, %vm1635
    %v1637 = vsel %vm1636, %v1629, %v1633
    %v1638 = vand.u32 2147483647, %v1582
    %vm1639 = vcmp.eq.f32.partialorder %v1638, 8.507059e+37
    %v1640 = vand.u32 %v1582, 2147483648
    %v1641 = vor.u32 1.1754944e-38, %v1640
    %v1642 = vsel %vm1639, %v1641, %v1637
    %v1643 = vmul.f32 1.0, %v1642
    %v1644 = vrcp.pop %v1583
    %v1645 = vmul.f32 %v1583, %v1644
    %v1646 = vsub.f32 1.0, %v1645
    %v1647 = vmul.f32 %v1644, %v1646
    %v1648 = vadd.f32 %v1644, %v1647
    %vm1649 = vweird.f32 %v1583
    %vm1650 = vweird.f32 %v1644
    %vm1651 = vmor %vm1649, %vm1650
    %v1652 = vsel %vm1651, %v1644, %v1648
    %v1653 = vand.u32 2147483647, %v1583
    %vm1654 = vcmp.eq.f32.partialorder %v1653, 8.507059e+37
    %v1655 = vand.u32 %v1583, 2147483648
    %v1656 = vor.u32 1.1754944e-38, %v1655
    %v1657 = vsel %vm1654, %v1656, %v1652
    %v1658 = vmul.f32 1.0, %v1657
    %v1659 = vmul.f32 %v1546, %v1598
    %v1660 = vmul.f32 %v1548, %v1613
    %v1661 = vmul.f32 %v1551, %v1628
    %v1662 = vmul.f32 %v1553, %v1643
    %v1663 = vmul.f32 %v1556, %v1658
    %v1664 = vpack.c.bf16 %v1660, %v1659
    %v1665 = vpack.c.bf16 %v1662, %v1661
    %v1666 = vpack.c.bf16 %v1663, %v1663
    %v1667 = vld [vmem:[%s17] sm:$0xf]
    %v1668 = vld [vmem:[%s17 + $0x4] sm:$0xf]
    %v1669 = vld [vmem:[%s17 + $0x8] sm:$0xf]
    %v1670 = vld [vmem:[%s17 + $0xc] sm:$0xf]
    %v1671 = vld [vmem:[%s17 + $0x10] sm:$0xf]
    %v1672 = vld [vmem:[%s17 + $0x14] sm:$0xf]
    %v1673 = vld [vmem:[%s17 + $0x18] sm:$0xf]
    %v1674 = vld [vmem:[%s17 + $0x1c] sm:$0xf]
    %v1675 = vld [vmem:[%s17 + $0x20] sm:$0xf]
    %v1676 = vld [vmem:[%s17 + $0x24] sm:$0xf]
    %v1677 = vld [vmem:[%s17 + $0x28] sm:$0xf]
    %v1678 = vld [vmem:[%s17 + $0x2c] sm:$0xf]
    %v1679 = vld [vmem:[%s17 + $0x30] sm:$0xf]
    %v1680 = vld [vmem:[%s17 + $0x34] sm:$0xf]
    %v1681 = vld [vmem:[%s17 + $0x38] sm:$0xf]
    %v1682 = vld [vmem:[%s17 + $0x3c] sm:$0xf]
    %v1683 = vld [vmem:[%s18] sm:$0x1]
    %v1685 = vperm.slane %v1683, 0
    %v1703 = vunpack.c.l.b16 %v1667
    %v1704 = vunpack.c.l.b16 %v1668
    %v1705 = vunpack.c.l.b16 %v1669
    %v1706 = vunpack.c.l.b16 %v1670
    %v1707 = vunpack.c.l.b16 %v1671
    %v1708 = vunpack.c.l.b16 %v1672
    %v1709 = vunpack.c.l.b16 %v1673
    %v1710 = vunpack.c.l.b16 %v1674
    %v1711 = vunpack.c.l.b16 %v1675
    %v1712 = vunpack.c.l.b16 %v1676
    %v1713 = vunpack.c.l.b16 %v1677
    %v1714 = vunpack.c.l.b16 %v1678
    %v1715 = vunpack.c.l.b16 %v1679
    %v1716 = vunpack.c.l.b16 %v1680
    %v1717 = vunpack.c.l.b16 %v1681
    %v1718 = vunpack.c.l.b16 %v1682
    %v1719 = vpack.c.b16 %v1704, %v1703
    %v1720 = vpack.c.b16 %v1706, %v1705
    %v1721 = vpack.c.b16 %v1708, %v1707
    %v1722 = vpack.c.b16 %v1710, %v1709
    %v1723 = vpack.c.b16 %v1712, %v1711
    %v1724 = vpack.c.b16 %v1714, %v1713
    %v1725 = vpack.c.b16 %v1716, %v1715
    %v1726 = vpack.c.b16 %v1718, %v1717
    %1735 = vmatpush.bf16.msra.mxu0 %v1726
    %1736 = vmatpush.bf16.msra.mxu0 %v1725
    %1737 = vmatpush.bf16.msra.mxu0 %v1724
    %1738 = vmatpush.bf16.msra.mxu0 %v1723
    %1739 = vmatpush.bf16.msra.mxu0 %v1722
    %1740 = vmatpush.bf16.msra.mxu0 %v1721
    %1741 = vmatpush.bf16.msra.mxu0 %v1720
    %1742 = vmatpush.bf16.msra.mxu0 %v1719
    %1743 = vmatmul.bf16.gmra.mxu0 %v1664
    %v1744 = vpop.f32.mrf.mxu0
    %v1745 = vadd.f32 %v1685, %v1744
    %v1746 = vpop.f32.mrf.mxu0
    %v1747 = vadd.f32 %v1685, %v1746
    %1748 = vmatmul.bf16.gmra.mxu0 %v1665
    %v1749 = vpop.f32.mrf.mxu0
    %v1750 = vadd.f32 %v1685, %v1749
    %v1751 = vpop.f32.mrf.mxu0
    %v1752 = vadd.f32 %v1685, %v1751
    %1753 = vmatmul.bf16.gmra.mxu0 %v1666
    %v1754 = vpop.f32.mrf.mxu0
    %v1755 = vadd.f32 %v1685, %v1754
    %v1756 = vpop.f32.mrf.mxu0
    %1757 = vdwg.mxu0
    %v1758 = vadd.f32 %v1371, %v1745
    %v1759 = vadd.f32 %v1372, %v1747
    %v1760 = vadd.f32 %v1373, %v1750
    %v1761 = vadd.f32 %v1374, %v1752
    %v1762 = vadd.f32 %v1375, %v1755
    %s1763 = scalar_lea.vmem %s7, 1
    %v1764 = vld [vmem:[%s1763] sm:$0x1]
    %s1765 = scalar_lea.vmem %s8, 1
    %v1766 = vld [vmem:[%s1765] sm:$0x1]
    %v1767 = vsel %vm258, %v1758, 0.0
    %1768 = vadd.xlane.f32.xlu0 %v1767
    %v1769 = vpop.xlane.xlu0 %1768
    %v1770 = vsel %vm258, %v1759, 0.0
    %1771 = vadd.xlane.f32.xlu0 %v1770
    %v1772 = vpop.xlane.xlu0 %1771
    %v1773 = vsel %vm258, %v1760, 0.0
    %1774 = vadd.xlane.f32.xlu0 %v1773
    %v1775 = vpop.xlane.xlu0 %1774
    %v1776 = vsel %vm258, %v1761, 0.0
    %1777 = vadd.xlane.f32.xlu0 %v1776
    %v1778 = vpop.xlane.xlu0 %1777
    %v1779 = vsel %vm258, %v1762, 0.0
    %1780 = vadd.xlane.f32.xlu0 %v1779
    %v1781 = vpop.xlane.xlu0 %1780
    %v1782 = vmul.f32 %v1769, %v280
    %v1783 = vmul.f32 %v1772, %v280
    %v1784 = vmul.f32 %v1775, %v280
    %v1785 = vmul.f32 %v1778, %v280
    %v1786 = vmul.f32 %v1781, %v280
    %v1787 = vsub.f32 %v1758, %v1782
    %v1788 = vsub.f32 %v1759, %v1783
    %v1789 = vsub.f32 %v1760, %v1784
    %v1790 = vsub.f32 %v1761, %v1785
    %v1791 = vsub.f32 %v1762, %v1786
    %v1792 = vmul.f32 %v1787, %v1787
    %v1793 = vmul.f32 %v1788, %v1788
    %v1794 = vmul.f32 %v1789, %v1789
    %v1795 = vmul.f32 %v1790, %v1790
    %v1796 = vmul.f32 %v1791, %v1791
    %v1797 = vsel %vm258, %v1792, 0.0
    %1798 = vadd.xlane.f32.xlu0 %v1797
    %v1799 = vpop.xlane.xlu0 %1798
    %v1800 = vsel %vm258, %v1793, 0.0
    %1801 = vadd.xlane.f32.xlu0 %v1800
    %v1802 = vpop.xlane.xlu0 %1801
    %v1803 = vsel %vm258, %v1794, 0.0
    %1804 = vadd.xlane.f32.xlu0 %v1803
    %v1805 = vpop.xlane.xlu0 %1804
    %v1806 = vsel %vm258, %v1795, 0.0
    %1807 = vadd.xlane.f32.xlu0 %v1806
    %v1808 = vpop.xlane.xlu0 %1807
    %v1809 = vsel %vm258, %v1796, 0.0
    %1810 = vadd.xlane.f32.xlu0 %v1809
    %v1811 = vpop.xlane.xlu0 %1810
    %v1812 = vmul.f32 %v1799, %v280
    %v1813 = vmul.f32 %v1802, %v280
    %v1814 = vmul.f32 %v1805, %v280
    %v1815 = vmul.f32 %v1808, %v280
    %v1816 = vmul.f32 %v1811, %v280
    %v1817 = vadd.f32 %v1812, 1e-05
    %v1818 = vadd.f32 %v1813, 1e-05
    %v1819 = vadd.f32 %v1814, 1e-05
    %v1820 = vadd.f32 %v1815, 1e-05
    %v1821 = vadd.f32 %v1816, 1e-05
    %v1822 = vrsqrt.pop %v1817
    %v1823 = vmul.f32 %v1822, %v1817
    %v1824 = vmul.f32 %v1823, %v1822
    %v1825 = vmul.f32 0.5, %v1824
    %v1826 = vsub.f32 1.5, %v1825
    %v1827 = vmul.f32 %v1822, %v1826
    %vm1828 = vweird.f32 %v1817
    %vm1829 = vweird.f32 %v1822
    %vm1830 = vmor %vm1828, %vm1829
    %v1831 = vsel %vm1830, %v1822, %v1827
    %v1832 = vrsqrt.pop %v1818
    %v1833 = vmul.f32 %v1832, %v1818
    %v1834 = vmul.f32 %v1833, %v1832
    %v1835 = vmul.f32 0.5, %v1834
    %v1836 = vsub.f32 1.5, %v1835
    %v1837 = vmul.f32 %v1832, %v1836
    %vm1838 = vweird.f32 %v1818
    %vm1839 = vweird.f32 %v1832
    %vm1840 = vmor %vm1838, %vm1839
    %v1841 = vsel %vm1840, %v1832, %v1837
    %v1842 = vrsqrt.pop %v1819
    %v1843 = vmul.f32 %v1842, %v1819
    %v1844 = vmul.f32 %v1843, %v1842
    %v1845 = vmul.f32 0.5, %v1844
    %v1846 = vsub.f32 1.5, %v1845
    %v1847 = vmul.f32 %v1842, %v1846
    %vm1848 = vweird.f32 %v1819
    %vm1849 = vweird.f32 %v1842
    %vm1850 = vmor %vm1848, %vm1849
    %v1851 = vsel %vm1850, %v1842, %v1847
    %v1852 = vrsqrt.pop %v1820
    %v1853 = vmul.f32 %v1852, %v1820
    %v1854 = vmul.f32 %v1853, %v1852
    %v1855 = vmul.f32 0.5, %v1854
    %v1856 = vsub.f32 1.5, %v1855
    %v1857 = vmul.f32 %v1852, %v1856
    %vm1858 = vweird.f32 %v1820
    %vm1859 = vweird.f32 %v1852
    %vm1860 = vmor %vm1858, %vm1859
    %v1861 = vsel %vm1860, %v1852, %v1857
    %v1862 = vrsqrt.pop %v1821
    %v1863 = vmul.f32 %v1862, %v1821
    %v1864 = vmul.f32 %v1863, %v1862
    %v1865 = vmul.f32 0.5, %v1864
    %v1866 = vsub.f32 1.5, %v1865
    %v1867 = vmul.f32 %v1862, %v1866
    %vm1868 = vweird.f32 %v1821
    %vm1869 = vweird.f32 %v1862
    %vm1870 = vmor %vm1868, %vm1869
    %v1871 = vsel %vm1870, %v1862, %v1867
    %v1872 = vmul.f32 %v1787, %v1831
    %v1873 = vmul.f32 %v1788, %v1841
    %v1874 = vmul.f32 %v1789, %v1851
    %v1875 = vmul.f32 %v1790, %v1861
    %v1876 = vmul.f32 %v1791, %v1871
    %v1878 = vperm.slane %v1764, 0
    %v1880 = vmul.f32 %v1872, %v1878
    %v1881 = vmul.f32 %v1873, %v1878
    %v1882 = vmul.f32 %v1874, %v1878
    %v1883 = vmul.f32 %v1875, %v1878
    %v1884 = vmul.f32 %v1876, %v1878
    %v1886 = vperm.slane %v1766, 0
    %v1888 = vadd.f32 %v1880, %v1886
    %v1889 = vadd.f32 %v1881, %v1886
    %v1890 = vadd.f32 %v1882, %v1886
    %v1891 = vadd.f32 %v1883, %v1886
    %v1892 = vadd.f32 %v1884, %v1886
    %v1893 = vpack.c.bf16 %v1889, %v1888
    %v1894 = vpack.c.bf16 %v1891, %v1890
    %v1895 = vpack.c.bf16 %v1892, %v1892
    %s1896 = scalar_lea.vmem %s9, 16
    %v1897 = vld [vmem:[%s1896] sm:$0xf]
    %v1898 = vld [vmem:[%s1896 + $0x4] sm:$0xf]
    %v1899 = vld [vmem:[%s1896 + $0x8] sm:$0xf]
    %v1900 = vld [vmem:[%s1896 + $0xc] sm:$0xf]
    %s1901 = scalar_lea.vmem %s10, 1
    %v1902 = vld [vmem:[%s1901] sm:$0x1]
    %v1904 = vperm.slane %v1902, 0
    %v1910 = vunpack.c.l.b16 %v1897
    %v1911 = vunpack.c.l.b16 %v1898
    %v1912 = vunpack.c.l.b16 %v1899
    %v1913 = vunpack.c.l.b16 %v1900
    %v1914 = vpack.c.b16 %v1911, %v1910
    %v1915 = vpack.c.b16 %v1913, %v1912
    %v1919 = vsel %vm258, %v1893, 0
    %v1922 = vsel %vm258, %v1894, 0
    %v1925 = vsel %vm258, %v1895, 0
    %1927 = vmatpush.bf16.msra.mxu0 0
    %1928 = vmatpush.bf16.msra.mxu0 0
    %1929 = vmatpush.bf16.msra.mxu0 0
    %1930 = vmatpush.bf16.msra.mxu0 0
    %1931 = vmatpush.bf16.msra.mxu0 0
    %1932 = vmatpush.bf16.msra.mxu0 0
    %1933 = vmatpush.bf16.msra.mxu0 %v1915
    %1934 = vmatpush.bf16.msra.mxu0 %v1914
    %1935 = vmatmul.bf16.gmra.mxu0 %v1919
    %v1936 = vpop.f32.mrf.mxu0
    %v1937 = vadd.f32 %v1904, %v1936
    %v1938 = vpop.f32.mrf.mxu0
    %v1939 = vadd.f32 %v1904, %v1938
    %1940 = vmatmul.bf16.gmra.mxu0 %v1922
    %v1941 = vpop.f32.mrf.mxu0
    %v1942 = vadd.f32 %v1904, %v1941
    %v1943 = vpop.f32.mrf.mxu0
    %v1944 = vadd.f32 %v1904, %v1943
    %1945 = vmatmul.bf16.gmra.mxu0 %v1925
    %v1946 = vpop.f32.mrf.mxu0
    %v1947 = vadd.f32 %v1904, %v1946
    %v1948 = vpop.f32.mrf.mxu0
    %1949 = vdwg.mxu0
    %v1950 = vmul.f32 %v1937, 0.35355338
    %v1951 = vmul.f32 %v1939, 0.35355338
    %v1952 = vmul.f32 %v1942, 0.35355338
    %v1953 = vmul.f32 %v1944, 0.35355338
    %v1954 = vmul.f32 %v1947, 0.35355338
    %v1955 = vpack.c.bf16 %v1950, %v1950
    %v1956 = vpack.c.bf16 %v1951, %v1951
    %v1957 = vpack.c.bf16 %v1952, %v1952
    %v1958 = vpack.c.bf16 %v1953, %v1953
    %v1959 = vpack.c.bf16 %v1954, %v1954
    %v1960 = vpack.c.bf16 %v1937, %v1937
    %v1961 = vpack.c.bf16 %v1939, %v1939
    %v1962 = vpack.c.bf16 %v1942, %v1942
    %v1963 = vpack.c.bf16 %v1944, %v1944
    %v1964 = vpack.c.bf16 %v1947, %v1947
    %v1970 = vunpack.c.l.b16 %v1955
    %v1971 = vunpack.c.l.b16 %v1956
    %v1972 = vunpack.c.l.b16 %v1957
    %v1973 = vunpack.c.l.b16 %v1958
    %v1974 = vunpack.c.l.b16 %v1959
    %v1975 = vpack.c.b16 %v1971, %v1970
    %v1976 = vpack.c.b16 %v1973, %v1972
    %v1977 = vpack.c.b16 %v1974, %v1974
    %v1983 = vunpack.c.l.b16 %v1960
    %v1984 = vunpack.c.l.b16 %v1961
    %v1985 = vunpack.c.l.b16 %v1962
    %v1986 = vunpack.c.l.b16 %v1963
    %v1987 = vunpack.c.l.b16 %v1964
    %v1988 = vpack.c.b16 %v1984, %v1983
    %v1989 = vpack.c.b16 %v1986, %v1985
    %v1990 = vpack.c.b16 %v1987, %v1987
    %1991 = vrot.lane.b32.xlu0 %v1988, 96
    %v1992 = vpop.permute.xlu0 %1991
    %1993 = vrot.lane.b32.xlu0 %v1989, 96
    %v1994 = vpop.permute.xlu0 %1993
    %1995 = vrot.lane.b32.xlu0 %v1990, 96
    %v1996 = vpop.permute.xlu0 %1995
    %v1998 = vsel %vm627, %v1975, 0
    %v2001 = vsel %vm627, %v1976, 0
    %v2004 = vsel %vm627, %v1977, 0
    %v2007 = vsel %vm627, %v1992, 0
    %v2010 = vsel %vm627, %v1994, 0
    %v2013 = vsel %vm627, %v1996, 0
    %2015 = vmatpush.bf16.xpose.msra.mxu0 0
    %2016 = vmatpush.bf16.xpose.msra.mxu0 0
    %2017 = vmatpush.bf16.xpose.msra.mxu0 0
    %2018 = vmatpush.bf16.xpose.msra.mxu0 0
    %2019 = vmatpush.bf16.xpose.msra.mxu0 0
    %2020 = vmatpush.bf16.xpose.msra.mxu0 %v2013
    %2021 = vmatpush.bf16.xpose.msra.mxu0 %v2010
    %2022 = vmatpush.bf16.xpose.msra.mxu0 %v2007
    %2023 = vmatmul.bf16.gmra.mxu0 %v1998
    %v2024 = vpop.f32.mrf.mxu0
    %v2025 = vadd.f32 %v392, %v2024
    %v2026 = vpop.f32.mrf.mxu0
    %v2027 = vadd.f32 %v393, %v2026
    %2028 = vmatmul.bf16.gmra.mxu0 %v2001
    %v2029 = vpop.f32.mrf.mxu0
    %v2030 = vadd.f32 %v394, %v2029
    %v2031 = vpop.f32.mrf.mxu0
    %v2032 = vadd.f32 %v395, %v2031
    %2033 = vmatmul.bf16.gmra.mxu0 %v2004
    %v2034 = vpop.f32.mrf.mxu0
    %v2035 = vadd.f32 %v396, %v2034
    %v2036 = vpop.f32.mrf.mxu0
    %2037 = vdwg.mxu0
    %v2038 = vsel %vm669, %v2025, -inf
    %2039 = vmax.xlane.f32.xlu0 %v2038
    %v2040 = vpop.xlane.xlu0 %2039
    %v2041 = vsel %vm669, %v2027, -inf
    %2042 = vmax.xlane.f32.xlu0 %v2041
    %v2043 = vpop.xlane.xlu0 %2042
    %v2044 = vsel %vm669, %v2030, -inf
    %2045 = vmax.xlane.f32.xlu0 %v2044
    %v2046 = vpop.xlane.xlu0 %2045
    %v2047 = vsel %vm669, %v2032, -inf
    %2048 = vmax.xlane.f32.xlu0 %v2047
    %v2049 = vpop.xlane.xlu0 %2048
    %v2050 = vsel %vm669, %v2035, -inf
    %2051 = vmax.xlane.f32.xlu0 %v2050
    %v2052 = vpop.xlane.xlu0 %2051
    %v2053 = vsub.f32 %v2025, %v2040
    %v2054 = vsub.f32 %v2027, %v2043
    %v2055 = vsub.f32 %v2030, %v2046
    %v2056 = vsub.f32 %v2032, %v2049
    %v2057 = vsub.f32 %v2035, %v2052
    %v2058 = vmul.f32 %v2053, 1.442695
    %v2059 = vpow.pop %v2058
    %v2060 = vmul.f32 %v2054, 1.442695
    %v2061 = vpow.pop %v2060
    %v2062 = vmul.f32 %v2055, 1.442695
    %v2063 = vpow.pop %v2062
    %v2064 = vmul.f32 %v2056, 1.442695
    %v2065 = vpow.pop %v2064
    %v2066 = vmul.f32 %v2057, 1.442695
    %v2067 = vpow.pop %v2066
    %v2068 = vsel %vm669, %v2059, 0.0
    %2069 = vadd.xlane.f32.xlu0 %v2068
    %v2070 = vpop.xlane.xlu0 %2069
    %v2071 = vsel %vm669, %v2061, 0.0
    %2072 = vadd.xlane.f32.xlu0 %v2071
    %v2073 = vpop.xlane.xlu0 %2072
    %v2074 = vsel %vm669, %v2063, 0.0
    %2075 = vadd.xlane.f32.xlu0 %v2074
    %v2076 = vpop.xlane.xlu0 %2075
    %v2077 = vsel %vm669, %v2065, 0.0
    %2078 = vadd.xlane.f32.xlu0 %v2077
    %v2079 = vpop.xlane.xlu0 %2078
    %v2080 = vsel %vm669, %v2067, 0.0
    %2081 = vadd.xlane.f32.xlu0 %v2080
    %v2082 = vpop.xlane.xlu0 %2081
    %v2083 = vrcp.pop %v2070
    %v2084 = vrcp.pop %v2073
    %v2085 = vrcp.pop %v2076
    %v2086 = vrcp.pop %v2079
    %v2087 = vrcp.pop %v2082
    %v2088 = vmul.f32 %v2059, %v2083
    %v2089 = vmul.f32 %v2061, %v2084
    %v2090 = vmul.f32 %v2063, %v2085
    %v2091 = vmul.f32 %v2065, %v2086
    %v2092 = vmul.f32 %v2067, %v2087
    %v2093 = vpack.c.bf16 %v2089, %v2088
    %v2094 = vpack.c.bf16 %v2091, %v2090
    %v2095 = vpack.c.bf16 %v2092, %v2092
    %2096 = vrot.lane.b32.xlu0 %v1988, 64
    %v2097 = vpop.permute.xlu0 %2096
    %2098 = vrot.lane.b32.xlu0 %v1989, 64
    %v2099 = vpop.permute.xlu0 %2098
    %2100 = vrot.lane.b32.xlu0 %v1990, 64
    %v2101 = vpop.permute.xlu0 %2100
    %v2105 = vsel %vm669, %v2093, 0
    %v2108 = vsel %vm669, %v2094, 0
    %v2111 = vsel %vm669, %v2095, 0
    %v2114 = vsel %vm745, %v2101, 0
    %2116 = vmatpush.bf16.msra.mxu0 0
    %2117 = vmatpush.bf16.msra.mxu0 0
    %2118 = vmatpush.bf16.msra.mxu0 0
    %2119 = vmatpush.bf16.msra.mxu0 0
    %2120 = vmatpush.bf16.msra.mxu0 0
    %2121 = vmatpush.bf16.msra.mxu0 %v2114
    %2122 = vmatpush.bf16.msra.mxu0 %v2099
    %2123 = vmatpush.bf16.msra.mxu0 %v2097
    %2124 = vmatmul.bf16.gmra.mxu0 %v2105
    %v2125 = vpop.f32.mrf.mxu0
    %v2126 = vadd.f32 0.0, %v2125
    %v2127 = vpop.f32.mrf.mxu0
    %v2128 = vadd.f32 0.0, %v2127
    %2129 = vmatmul.bf16.gmra.mxu0 %v2108
    %v2130 = vpop.f32.mrf.mxu0
    %v2131 = vadd.f32 0.0, %v2130
    %v2132 = vpop.f32.mrf.mxu0
    %v2133 = vadd.f32 0.0, %v2132
    %2134 = vmatmul.bf16.gmra.mxu0 %v2111
    %v2135 = vpop.f32.mrf.mxu0
    %v2136 = vadd.f32 0.0, %v2135
    %v2137 = vpop.f32.mrf.mxu0
    %2138 = vdwg.mxu0
    %2139 = vrot.lane.b32.xlu0 %v1975, 120
    %v2140 = vpop.permute.xlu0 %2139
    %2141 = vrot.lane.b32.xlu0 %v1976, 120
    %v2142 = vpop.permute.xlu0 %2141
    %2143 = vrot.lane.b32.xlu0 %v1977, 120
    %v2144 = vpop.permute.xlu0 %2143
    %2145 = vrot.lane.b32.xlu0 %v1988, 88
    %v2146 = vpop.permute.xlu0 %2145
    %2147 = vrot.lane.b32.xlu0 %v1989, 88
    %v2148 = vpop.permute.xlu0 %2147
    %2149 = vrot.lane.b32.xlu0 %v1990, 88
    %v2150 = vpop.permute.xlu0 %2149
    %v2152 = vsel %vm627, %v2140, 0
    %v2155 = vsel %vm627, %v2142, 0
    %v2158 = vsel %vm627, %v2144, 0
    %v2161 = vsel %vm627, %v2146, 0
    %v2164 = vsel %vm627, %v2148, 0
    %v2167 = vsel %vm627, %v2150, 0
    %2169 = vmatpush.bf16.xpose.msra.mxu0 0
    %2170 = vmatpush.bf16.xpose.msra.mxu0 0
    %2171 = vmatpush.bf16.xpose.msra.mxu0 0
    %2172 = vmatpush.bf16.xpose.msra.mxu0 0
    %2173 = vmatpush.bf16.xpose.msra.mxu0 0
    %2174 = vmatpush.bf16.xpose.msra.mxu0 %v2167
    %2175 = vmatpush.bf16.xpose.msra.mxu0 %v2164
    %2176 = vmatpush.bf16.xpose.msra.mxu0 %v2161
    %2177 = vmatmul.bf16.gmra.mxu0 %v2152
    %v2178 = vpop.f32.mrf.mxu0
    %v2179 = vadd.f32 %v392, %v2178
    %v2180 = vpop.f32.mrf.mxu0
    %v2181 = vadd.f32 %v393, %v2180
    %2182 = vmatmul.bf16.gmra.mxu0 %v2155
    %v2183 = vpop.f32.mrf.mxu0
    %v2184 = vadd.f32 %v394, %v2183
    %v2185 = vpop.f32.mrf.mxu0
    %v2186 = vadd.f32 %v395, %v2185
    %2187 = vmatmul.bf16.gmra.mxu0 %v2158
    %v2188 = vpop.f32.mrf.mxu0
    %v2189 = vadd.f32 %v396, %v2188
    %v2190 = vpop.f32.mrf.mxu0
    %2191 = vdwg.mxu0
    %v2192 = vsel %vm669, %v2179, -inf
    %2193 = vmax.xlane.f32.xlu0 %v2192
    %v2194 = vpop.xlane.xlu0 %2193
    %v2195 = vsel %vm669, %v2181, -inf
    %2196 = vmax.xlane.f32.xlu0 %v2195
    %v2197 = vpop.xlane.xlu0 %2196
    %v2198 = vsel %vm669, %v2184, -inf
    %2199 = vmax.xlane.f32.xlu0 %v2198
    %v2200 = vpop.xlane.xlu0 %2199
    %v2201 = vsel %vm669, %v2186, -inf
    %2202 = vmax.xlane.f32.xlu0 %v2201
    %v2203 = vpop.xlane.xlu0 %2202
    %v2204 = vsel %vm669, %v2189, -inf
    %2205 = vmax.xlane.f32.xlu0 %v2204
    %v2206 = vpop.xlane.xlu0 %2205
    %v2207 = vsub.f32 %v2179, %v2194
    %v2208 = vsub.f32 %v2181, %v2197
    %v2209 = vsub.f32 %v2184, %v2200
    %v2210 = vsub.f32 %v2186, %v2203
    %v2211 = vsub.f32 %v2189, %v2206
    %v2212 = vmul.f32 %v2207, 1.442695
    %v2213 = vpow.pop %v2212
    %v2214 = vmul.f32 %v2208, 1.442695
    %v2215 = vpow.pop %v2214
    %v2216 = vmul.f32 %v2209, 1.442695
    %v2217 = vpow.pop %v2216
    %v2218 = vmul.f32 %v2210, 1.442695
    %v2219 = vpow.pop %v2218
    %v2220 = vmul.f32 %v2211, 1.442695
    %v2221 = vpow.pop %v2220
    %v2222 = vsel %vm669, %v2213, 0.0
    %2223 = vadd.xlane.f32.xlu0 %v2222
    %v2224 = vpop.xlane.xlu0 %2223
    %v2225 = vsel %vm669, %v2215, 0.0
    %2226 = vadd.xlane.f32.xlu0 %v2225
    %v2227 = vpop.xlane.xlu0 %2226
    %v2228 = vsel %vm669, %v2217, 0.0
    %2229 = vadd.xlane.f32.xlu0 %v2228
    %v2230 = vpop.xlane.xlu0 %2229
    %v2231 = vsel %vm669, %v2219, 0.0
    %2232 = vadd.xlane.f32.xlu0 %v2231
    %v2233 = vpop.xlane.xlu0 %2232
    %v2234 = vsel %vm669, %v2221, 0.0
    %2235 = vadd.xlane.f32.xlu0 %v2234
    %v2236 = vpop.xlane.xlu0 %2235
    %v2237 = vrcp.pop %v2224
    %v2238 = vrcp.pop %v2227
    %v2239 = vrcp.pop %v2230
    %v2240 = vrcp.pop %v2233
    %v2241 = vrcp.pop %v2236
    %v2242 = vmul.f32 %v2213, %v2237
    %v2243 = vmul.f32 %v2215, %v2238
    %v2244 = vmul.f32 %v2217, %v2239
    %v2245 = vmul.f32 %v2219, %v2240
    %v2246 = vmul.f32 %v2221, %v2241
    %v2247 = vpack.c.bf16 %v2243, %v2242
    %v2248 = vpack.c.bf16 %v2245, %v2244
    %v2249 = vpack.c.bf16 %v2246, %v2246
    %2250 = vrot.lane.b32.xlu0 %v1988, 56
    %v2251 = vpop.permute.xlu0 %2250
    %2252 = vrot.lane.b32.xlu0 %v1989, 56
    %v2253 = vpop.permute.xlu0 %2252
    %2254 = vrot.lane.b32.xlu0 %v1990, 56
    %v2255 = vpop.permute.xlu0 %2254
    %v2259 = vsel %vm669, %v2247, 0
    %v2262 = vsel %vm669, %v2248, 0
    %v2265 = vsel %vm669, %v2249, 0
    %v2268 = vsel %vm745, %v2255, 0
    %2270 = vmatpush.bf16.msra.mxu0 0
    %2271 = vmatpush.bf16.msra.mxu0 0
    %2272 = vmatpush.bf16.msra.mxu0 0
    %2273 = vmatpush.bf16.msra.mxu0 0
    %2274 = vmatpush.bf16.msra.mxu0 0
    %2275 = vmatpush.bf16.msra.mxu0 %v2268
    %2276 = vmatpush.bf16.msra.mxu0 %v2253
    %2277 = vmatpush.bf16.msra.mxu0 %v2251
    %2278 = vmatmul.bf16.gmra.mxu0 %v2259
    %v2279 = vpop.f32.mrf.mxu0
    %v2280 = vadd.f32 0.0, %v2279
    %v2281 = vpop.f32.mrf.mxu0
    %v2282 = vadd.f32 0.0, %v2281
    %2283 = vmatmul.bf16.gmra.mxu0 %v2262
    %v2284 = vpop.f32.mrf.mxu0
    %v2285 = vadd.f32 0.0, %v2284
    %v2286 = vpop.f32.mrf.mxu0
    %v2287 = vadd.f32 0.0, %v2286
    %2288 = vmatmul.bf16.gmra.mxu0 %v2265
    %v2289 = vpop.f32.mrf.mxu0
    %v2290 = vadd.f32 0.0, %v2289
    %v2291 = vpop.f32.mrf.mxu0
    %2292 = vdwg.mxu0
    %2293 = vrot.lane.b32.xlu0 %v1975, 112
    %v2294 = vpop.permute.xlu0 %2293
    %2295 = vrot.lane.b32.xlu0 %v1976, 112
    %v2296 = vpop.permute.xlu0 %2295
    %2297 = vrot.lane.b32.xlu0 %v1977, 112
    %v2298 = vpop.permute.xlu0 %2297
    %2299 = vrot.lane.b32.xlu0 %v1988, 80
    %v2300 = vpop.permute.xlu0 %2299
    %2301 = vrot.lane.b32.xlu0 %v1989, 80
    %v2302 = vpop.permute.xlu0 %2301
    %2303 = vrot.lane.b32.xlu0 %v1990, 80
    %v2304 = vpop.permute.xlu0 %2303
    %v2306 = vsel %vm627, %v2294, 0
    %v2309 = vsel %vm627, %v2296, 0
    %v2312 = vsel %vm627, %v2298, 0
    %v2315 = vsel %vm627, %v2300, 0
    %v2318 = vsel %vm627, %v2302, 0
    %v2321 = vsel %vm627, %v2304, 0
    %2323 = vmatpush.bf16.xpose.msra.mxu0 0
    %2324 = vmatpush.bf16.xpose.msra.mxu0 0
    %2325 = vmatpush.bf16.xpose.msra.mxu0 0
    %2326 = vmatpush.bf16.xpose.msra.mxu0 0
    %2327 = vmatpush.bf16.xpose.msra.mxu0 0
    %2328 = vmatpush.bf16.xpose.msra.mxu0 %v2321
    %2329 = vmatpush.bf16.xpose.msra.mxu0 %v2318
    %2330 = vmatpush.bf16.xpose.msra.mxu0 %v2315
    %2331 = vmatmul.bf16.gmra.mxu0 %v2306
    %v2332 = vpop.f32.mrf.mxu0
    %v2333 = vadd.f32 %v392, %v2332
    %v2334 = vpop.f32.mrf.mxu0
    %v2335 = vadd.f32 %v393, %v2334
    %2336 = vmatmul.bf16.gmra.mxu0 %v2309
    %v2337 = vpop.f32.mrf.mxu0
    %v2338 = vadd.f32 %v394, %v2337
    %v2339 = vpop.f32.mrf.mxu0
    %v2340 = vadd.f32 %v395, %v2339
    %2341 = vmatmul.bf16.gmra.mxu0 %v2312
    %v2342 = vpop.f32.mrf.mxu0
    %v2343 = vadd.f32 %v396, %v2342
    %v2344 = vpop.f32.mrf.mxu0
    %2345 = vdwg.mxu0
    %v2346 = vsel %vm669, %v2333, -inf
    %2347 = vmax.xlane.f32.xlu0 %v2346
    %v2348 = vpop.xlane.xlu0 %2347
    %v2349 = vsel %vm669, %v2335, -inf
    %2350 = vmax.xlane.f32.xlu0 %v2349
    %v2351 = vpop.xlane.xlu0 %2350
    %v2352 = vsel %vm669, %v2338, -inf
    %2353 = vmax.xlane.f32.xlu0 %v2352
    %v2354 = vpop.xlane.xlu0 %2353
    %v2355 = vsel %vm669, %v2340, -inf
    %2356 = vmax.xlane.f32.xlu0 %v2355
    %v2357 = vpop.xlane.xlu0 %2356
    %v2358 = vsel %vm669, %v2343, -inf
    %2359 = vmax.xlane.f32.xlu0 %v2358
    %v2360 = vpop.xlane.xlu0 %2359
    %v2361 = vsub.f32 %v2333, %v2348
    %v2362 = vsub.f32 %v2335, %v2351
    %v2363 = vsub.f32 %v2338, %v2354
    %v2364 = vsub.f32 %v2340, %v2357
    %v2365 = vsub.f32 %v2343, %v2360
    %v2366 = vmul.f32 %v2361, 1.442695
    %v2367 = vpow.pop %v2366
    %v2368 = vmul.f32 %v2362, 1.442695
    %v2369 = vpow.pop %v2368
    %v2370 = vmul.f32 %v2363, 1.442695
    %v2371 = vpow.pop %v2370
    %v2372 = vmul.f32 %v2364, 1.442695
    %v2373 = vpow.pop %v2372
    %v2374 = vmul.f32 %v2365, 1.442695
    %v2375 = vpow.pop %v2374
    %v2376 = vsel %vm669, %v2367, 0.0
    %2377 = vadd.xlane.f32.xlu0 %v2376
    %v2378 = vpop.xlane.xlu0 %2377
    %v2379 = vsel %vm669, %v2369, 0.0
    %2380 = vadd.xlane.f32.xlu0 %v2379
    %v2381 = vpop.xlane.xlu0 %2380
    %v2382 = vsel %vm669, %v2371, 0.0
    %2383 = vadd.xlane.f32.xlu0 %v2382
    %v2384 = vpop.xlane.xlu0 %2383
    %v2385 = vsel %vm669, %v2373, 0.0
    %2386 = vadd.xlane.f32.xlu0 %v2385
    %v2387 = vpop.xlane.xlu0 %2386
    %v2388 = vsel %vm669, %v2375, 0.0
    %2389 = vadd.xlane.f32.xlu0 %v2388
    %v2390 = vpop.xlane.xlu0 %2389
    %v2391 = vrcp.pop %v2378
    %v2392 = vrcp.pop %v2381
    %v2393 = vrcp.pop %v2384
    %v2394 = vrcp.pop %v2387
    %v2395 = vrcp.pop %v2390
    %v2396 = vmul.f32 %v2367, %v2391
    %v2397 = vmul.f32 %v2369, %v2392
    %v2398 = vmul.f32 %v2371, %v2393
    %v2399 = vmul.f32 %v2373, %v2394
    %v2400 = vmul.f32 %v2375, %v2395
    %v2401 = vpack.c.bf16 %v2397, %v2396
    %v2402 = vpack.c.bf16 %v2399, %v2398
    %v2403 = vpack.c.bf16 %v2400, %v2400
    %2404 = vrot.lane.b32.xlu0 %v1988, 48
    %v2405 = vpop.permute.xlu0 %2404
    %2406 = vrot.lane.b32.xlu0 %v1989, 48
    %v2407 = vpop.permute.xlu0 %2406
    %2408 = vrot.lane.b32.xlu0 %v1990, 48
    %v2409 = vpop.permute.xlu0 %2408
    %v2413 = vsel %vm669, %v2401, 0
    %v2416 = vsel %vm669, %v2402, 0
    %v2419 = vsel %vm669, %v2403, 0
    %v2422 = vsel %vm745, %v2409, 0
    %2424 = vmatpush.bf16.msra.mxu0 0
    %2425 = vmatpush.bf16.msra.mxu0 0
    %2426 = vmatpush.bf16.msra.mxu0 0
    %2427 = vmatpush.bf16.msra.mxu0 0
    %2428 = vmatpush.bf16.msra.mxu0 0
    %2429 = vmatpush.bf16.msra.mxu0 %v2422
    %2430 = vmatpush.bf16.msra.mxu0 %v2407
    %2431 = vmatpush.bf16.msra.mxu0 %v2405
    %2432 = vmatmul.bf16.gmra.mxu0 %v2413
    %v2433 = vpop.f32.mrf.mxu0
    %v2434 = vadd.f32 0.0, %v2433
    %v2435 = vpop.f32.mrf.mxu0
    %v2436 = vadd.f32 0.0, %v2435
    %2437 = vmatmul.bf16.gmra.mxu0 %v2416
    %v2438 = vpop.f32.mrf.mxu0
    %v2439 = vadd.f32 0.0, %v2438
    %v2440 = vpop.f32.mrf.mxu0
    %v2441 = vadd.f32 0.0, %v2440
    %2442 = vmatmul.bf16.gmra.mxu0 %v2419
    %v2443 = vpop.f32.mrf.mxu0
    %v2444 = vadd.f32 0.0, %v2443
    %v2445 = vpop.f32.mrf.mxu0
    %2446 = vdwg.mxu0
    %2447 = vrot.lane.b32.xlu0 %v1975, 104
    %v2448 = vpop.permute.xlu0 %2447
    %2449 = vrot.lane.b32.xlu0 %v1976, 104
    %v2450 = vpop.permute.xlu0 %2449
    %2451 = vrot.lane.b32.xlu0 %v1977, 104
    %v2452 = vpop.permute.xlu0 %2451
    %2453 = vrot.lane.b32.xlu0 %v1988, 72
    %v2454 = vpop.permute.xlu0 %2453
    %2455 = vrot.lane.b32.xlu0 %v1989, 72
    %v2456 = vpop.permute.xlu0 %2455
    %2457 = vrot.lane.b32.xlu0 %v1990, 72
    %v2458 = vpop.permute.xlu0 %2457
    %v2460 = vsel %vm627, %v2448, 0
    %v2463 = vsel %vm627, %v2450, 0
    %v2466 = vsel %vm627, %v2452, 0
    %v2469 = vsel %vm627, %v2454, 0
    %v2472 = vsel %vm627, %v2456, 0
    %v2475 = vsel %vm627, %v2458, 0
    %2477 = vmatpush.bf16.xpose.msra.mxu0 0
    %2478 = vmatpush.bf16.xpose.msra.mxu0 0
    %2479 = vmatpush.bf16.xpose.msra.mxu0 0
    %2480 = vmatpush.bf16.xpose.msra.mxu0 0
    %2481 = vmatpush.bf16.xpose.msra.mxu0 0
    %2482 = vmatpush.bf16.xpose.msra.mxu0 %v2475
    %2483 = vmatpush.bf16.xpose.msra.mxu0 %v2472
    %2484 = vmatpush.bf16.xpose.msra.mxu0 %v2469
    %2485 = vmatmul.bf16.gmra.mxu0 %v2460
    %v2486 = vpop.f32.mrf.mxu0
    %v2487 = vadd.f32 %v392, %v2486
    %v2488 = vpop.f32.mrf.mxu0
    %v2489 = vadd.f32 %v393, %v2488
    %2490 = vmatmul.bf16.gmra.mxu0 %v2463
    %v2491 = vpop.f32.mrf.mxu0
    %v2492 = vadd.f32 %v394, %v2491
    %v2493 = vpop.f32.mrf.mxu0
    %v2494 = vadd.f32 %v395, %v2493
    %2495 = vmatmul.bf16.gmra.mxu0 %v2466
    %v2496 = vpop.f32.mrf.mxu0
    %v2497 = vadd.f32 %v396, %v2496
    %v2498 = vpop.f32.mrf.mxu0
    %2499 = vdwg.mxu0
    %v2500 = vsel %vm669, %v2487, -inf
    %2501 = vmax.xlane.f32.xlu0 %v2500
    %v2502 = vpop.xlane.xlu0 %2501
    %v2503 = vsel %vm669, %v2489, -inf
    %2504 = vmax.xlane.f32.xlu0 %v2503
    %v2505 = vpop.xlane.xlu0 %2504
    %v2506 = vsel %vm669, %v2492, -inf
    %2507 = vmax.xlane.f32.xlu0 %v2506
    %v2508 = vpop.xlane.xlu0 %2507
    %v2509 = vsel %vm669, %v2494, -inf
    %2510 = vmax.xlane.f32.xlu0 %v2509
    %v2511 = vpop.xlane.xlu0 %2510
    %v2512 = vsel %vm669, %v2497, -inf
    %2513 = vmax.xlane.f32.xlu0 %v2512
    %v2514 = vpop.xlane.xlu0 %2513
    %v2515 = vsub.f32 %v2487, %v2502
    %v2516 = vsub.f32 %v2489, %v2505
    %v2517 = vsub.f32 %v2492, %v2508
    %v2518 = vsub.f32 %v2494, %v2511
    %v2519 = vsub.f32 %v2497, %v2514
    %v2520 = vmul.f32 %v2515, 1.442695
    %v2521 = vpow.pop %v2520
    %v2522 = vmul.f32 %v2516, 1.442695
    %v2523 = vpow.pop %v2522
    %v2524 = vmul.f32 %v2517, 1.442695
    %v2525 = vpow.pop %v2524
    %v2526 = vmul.f32 %v2518, 1.442695
    %v2527 = vpow.pop %v2526
    %v2528 = vmul.f32 %v2519, 1.442695
    %v2529 = vpow.pop %v2528
    %v2530 = vsel %vm669, %v2521, 0.0
    %2531 = vadd.xlane.f32.xlu0 %v2530
    %v2532 = vpop.xlane.xlu0 %2531
    %v2533 = vsel %vm669, %v2523, 0.0
    %2534 = vadd.xlane.f32.xlu0 %v2533
    %v2535 = vpop.xlane.xlu0 %2534
    %v2536 = vsel %vm669, %v2525, 0.0
    %2537 = vadd.xlane.f32.xlu0 %v2536
    %v2538 = vpop.xlane.xlu0 %2537
    %v2539 = vsel %vm669, %v2527, 0.0
    %2540 = vadd.xlane.f32.xlu0 %v2539
    %v2541 = vpop.xlane.xlu0 %2540
    %v2542 = vsel %vm669, %v2529, 0.0
    %2543 = vadd.xlane.f32.xlu0 %v2542
    %v2544 = vpop.xlane.xlu0 %2543
    %v2545 = vrcp.pop %v2532
    %v2546 = vrcp.pop %v2535
    %v2547 = vrcp.pop %v2538
    %v2548 = vrcp.pop %v2541
    %v2549 = vrcp.pop %v2544
    %v2550 = vmul.f32 %v2521, %v2545
    %v2551 = vmul.f32 %v2523, %v2546
    %v2552 = vmul.f32 %v2525, %v2547
    %v2553 = vmul.f32 %v2527, %v2548
    %v2554 = vmul.f32 %v2529, %v2549
    %v2555 = vpack.c.bf16 %v2551, %v2550
    %v2556 = vpack.c.bf16 %v2553, %v2552
    %v2557 = vpack.c.bf16 %v2554, %v2554
    %2558 = vrot.lane.b32.xlu0 %v1988, 40
    %v2559 = vpop.permute.xlu0 %2558
    %2560 = vrot.lane.b32.xlu0 %v1989, 40
    %v2561 = vpop.permute.xlu0 %2560
    %2562 = vrot.lane.b32.xlu0 %v1990, 40
    %v2563 = vpop.permute.xlu0 %2562
    %v2567 = vsel %vm669, %v2555, 0
    %v2570 = vsel %vm669, %v2556, 0
    %v2573 = vsel %vm669, %v2557, 0
    %v2576 = vsel %vm745, %v2563, 0
    %2578 = vmatpush.bf16.msra.mxu0 0
    %2579 = vmatpush.bf16.msra.mxu0 0
    %2580 = vmatpush.bf16.msra.mxu0 0
    %2581 = vmatpush.bf16.msra.mxu0 0
    %2582 = vmatpush.bf16.msra.mxu0 0
    %2583 = vmatpush.bf16.msra.mxu0 %v2576
    %2584 = vmatpush.bf16.msra.mxu0 %v2561
    %2585 = vmatpush.bf16.msra.mxu0 %v2559
    %2586 = vmatmul.bf16.gmra.mxu0 %v2567
    %v2587 = vpop.f32.mrf.mxu0
    %v2588 = vadd.f32 0.0, %v2587
    %v2589 = vpop.f32.mrf.mxu0
    %v2590 = vadd.f32 0.0, %v2589
    %2591 = vmatmul.bf16.gmra.mxu0 %v2570
    %v2592 = vpop.f32.mrf.mxu0
    %v2593 = vadd.f32 0.0, %v2592
    %v2594 = vpop.f32.mrf.mxu0
    %v2595 = vadd.f32 0.0, %v2594
    %2596 = vmatmul.bf16.gmra.mxu0 %v2573
    %v2597 = vpop.f32.mrf.mxu0
    %v2598 = vadd.f32 0.0, %v2597
    %v2599 = vpop.f32.mrf.mxu0
    %2600 = vdwg.mxu0
    %2606 = vrot.lane.b32.xlu0 %v2280, 8
    %v2607 = vpop.permute.xlu0 %2606
    %2608 = vrot.lane.b32.xlu0 %v2282, 8
    %v2609 = vpop.permute.xlu0 %2608
    %2610 = vrot.lane.b32.xlu0 %v2285, 8
    %v2611 = vpop.permute.xlu0 %2610
    %2612 = vrot.lane.b32.xlu0 %v2287, 8
    %v2613 = vpop.permute.xlu0 %2612
    %2614 = vrot.lane.b32.xlu0 %v2290, 8
    %v2615 = vpop.permute.xlu0 %2614
    %2626 = vrot.lane.b32.xlu0 %v2434, 16
    %v2627 = vpop.permute.xlu0 %2626
    %2628 = vrot.lane.b32.xlu0 %v2436, 16
    %v2629 = vpop.permute.xlu0 %2628
    %2630 = vrot.lane.b32.xlu0 %v2439, 16
    %v2631 = vpop.permute.xlu0 %2630
    %2632 = vrot.lane.b32.xlu0 %v2441, 16
    %v2633 = vpop.permute.xlu0 %2632
    %2634 = vrot.lane.b32.xlu0 %v2444, 16
    %v2635 = vpop.permute.xlu0 %2634
    %2646 = vrot.lane.b32.xlu0 %v2588, 24
    %v2647 = vpop.permute.xlu0 %2646
    %2648 = vrot.lane.b32.xlu0 %v2590, 24
    %v2649 = vpop.permute.xlu0 %2648
    %2650 = vrot.lane.b32.xlu0 %v2593, 24
    %v2651 = vpop.permute.xlu0 %2650
    %2652 = vrot.lane.b32.xlu0 %v2595, 24
    %v2653 = vpop.permute.xlu0 %2652
    %2654 = vrot.lane.b32.xlu0 %v2598, 24
    %v2655 = vpop.permute.xlu0 %2654
    %v2661 = vsel %vm627, %v2126, %v2607
    %v2662 = vsel %vm627, %v2128, %v2609
    %v2663 = vsel %vm627, %v2131, %v2611
    %v2664 = vsel %vm627, %v2133, %v2613
    %v2665 = vsel %vm627, %v2136, %v2615
    %v2666 = vsel %vm1299, %v2661, %v2627
    %v2667 = vsel %vm1299, %v2662, %v2629
    %v2668 = vsel %vm1299, %v2663, %v2631
    %v2669 = vsel %vm1299, %v2664, %v2633
    %v2670 = vsel %vm1299, %v2665, %v2635
    %v2671 = vsel %vm1305, %v2666, %v2647
    %v2672 = vsel %vm1305, %v2667, %v2649
    %v2673 = vsel %vm1305, %v2668, %v2651
    %v2674 = vsel %vm1305, %v2669, %v2653
    %v2675 = vsel %vm1305, %v2670, %v2655
    %v2676 = vpack.c.bf16 %v2672, %v2671
    %v2677 = vpack.c.bf16 %v2674, %v2673
    %v2678 = vpack.c.bf16 %v2675, %v2675
    %s2679 = scalar_lea.vmem %s11, 16
    %v2680 = vld [vmem:[%s2679] sm:$0xf]
    %v2681 = vld [vmem:[%s2679 + $0x4] sm:$0xf]
    %v2682 = vld [vmem:[%s2679 + $0x8] sm:$0xf]
    %v2683 = vld [vmem:[%s2679 + $0xc] sm:$0xf]
    %v2688 = vunpack.c.l.b16 %v2680
    %v2689 = vunpack.c.l.b16 %v2681
    %v2690 = vunpack.c.l.b16 %v2682
    %v2691 = vunpack.c.l.b16 %v2683
    %v2692 = vpack.c.b16 %v2689, %v2688
    %v2693 = vpack.c.b16 %v2691, %v2690
    %v2697 = vsel %vm258, %v2676, 0
    %v2700 = vsel %vm258, %v2677, 0
    %v2703 = vsel %vm258, %v2678, 0
    %2705 = vmatpush.bf16.msra.mxu0 0
    %2706 = vmatpush.bf16.msra.mxu0 0
    %2707 = vmatpush.bf16.msra.mxu0 0
    %2708 = vmatpush.bf16.msra.mxu0 0
    %2709 = vmatpush.bf16.msra.mxu0 0
    %2710 = vmatpush.bf16.msra.mxu0 0
    %2711 = vmatpush.bf16.msra.mxu0 %v2693
    %2712 = vmatpush.bf16.msra.mxu0 %v2692
    %2713 = vmatmul.bf16.gmra.mxu0 %v2697
    %v2714 = vpop.f32.mrf.mxu0
    %v2715 = vadd.f32 0.0, %v2714
    %v2716 = vpop.f32.mrf.mxu0
    %v2717 = vadd.f32 0.0, %v2716
    %2718 = vmatmul.bf16.gmra.mxu0 %v2700
    %v2719 = vpop.f32.mrf.mxu0
    %v2720 = vadd.f32 0.0, %v2719
    %v2721 = vpop.f32.mrf.mxu0
    %v2722 = vadd.f32 0.0, %v2721
    %2723 = vmatmul.bf16.gmra.mxu0 %v2703
    %v2724 = vpop.f32.mrf.mxu0
    %v2725 = vadd.f32 0.0, %v2724
    %v2726 = vpop.f32.mrf.mxu0
    %2727 = vdwg.mxu0
    %v2728 = vadd.f32 %v1758, %v2715
    %v2729 = vadd.f32 %v1759, %v2717
    %v2730 = vadd.f32 %v1760, %v2720
    %v2731 = vadd.f32 %v1761, %v2722
    %v2732 = vadd.f32 %v1762, %v2725
    %s2733 = scalar_lea.vmem %s12, 1
    %v2734 = vld [vmem:[%s2733] sm:$0x1]
    %v2736 = vperm.slane %v2734, 0
    %v2738 = vadd.f32 %v2728, %v2736
    %v2739 = vadd.f32 %v2729, %v2736
    %v2740 = vadd.f32 %v2730, %v2736
    %v2741 = vadd.f32 %v2731, %v2736
    %v2742 = vadd.f32 %v2732, %v2736
    %s2743 = scalar_lea.vmem %s13, 1
    %v2744 = vld [vmem:[%s2743] sm:$0x1]
    %s2745 = scalar_lea.vmem %s14, 1
    %v2746 = vld [vmem:[%s2745] sm:$0x1]
    %v2747 = vsel %vm258, %v2738, 0.0
    %2748 = vadd.xlane.f32.xlu0 %v2747
    %v2749 = vpop.xlane.xlu0 %2748
    %v2750 = vsel %vm258, %v2739, 0.0
    %2751 = vadd.xlane.f32.xlu0 %v2750
    %v2752 = vpop.xlane.xlu0 %2751
    %v2753 = vsel %vm258, %v2740, 0.0
    %2754 = vadd.xlane.f32.xlu0 %v2753
    %v2755 = vpop.xlane.xlu0 %2754
    %v2756 = vsel %vm258, %v2741, 0.0
    %2757 = vadd.xlane.f32.xlu0 %v2756
    %v2758 = vpop.xlane.xlu0 %2757
    %v2759 = vsel %vm258, %v2742, 0.0
    %2760 = vadd.xlane.f32.xlu0 %v2759
    %v2761 = vpop.xlane.xlu0 %2760
    %v2762 = vmul.f32 %v2749, %v280
    %v2763 = vmul.f32 %v2752, %v280
    %v2764 = vmul.f32 %v2755, %v280
    %v2765 = vmul.f32 %v2758, %v280
    %v2766 = vmul.f32 %v2761, %v280
    %v2767 = vsub.f32 %v2738, %v2762
    %v2768 = vsub.f32 %v2739, %v2763
    %v2769 = vsub.f32 %v2740, %v2764
    %v2770 = vsub.f32 %v2741, %v2765
    %v2771 = vsub.f32 %v2742, %v2766
    %v2772 = vmul.f32 %v2767, %v2767
    %v2773 = vmul.f32 %v2768, %v2768
    %v2774 = vmul.f32 %v2769, %v2769
    %v2775 = vmul.f32 %v2770, %v2770
    %v2776 = vmul.f32 %v2771, %v2771
    %v2777 = vsel %vm258, %v2772, 0.0
    %2778 = vadd.xlane.f32.xlu0 %v2777
    %v2779 = vpop.xlane.xlu0 %2778
    %v2780 = vsel %vm258, %v2773, 0.0
    %2781 = vadd.xlane.f32.xlu0 %v2780
    %v2782 = vpop.xlane.xlu0 %2781
    %v2783 = vsel %vm258, %v2774, 0.0
    %2784 = vadd.xlane.f32.xlu0 %v2783
    %v2785 = vpop.xlane.xlu0 %2784
    %v2786 = vsel %vm258, %v2775, 0.0
    %2787 = vadd.xlane.f32.xlu0 %v2786
    %v2788 = vpop.xlane.xlu0 %2787
    %v2789 = vsel %vm258, %v2776, 0.0
    %2790 = vadd.xlane.f32.xlu0 %v2789
    %v2791 = vpop.xlane.xlu0 %2790
    %v2792 = vmul.f32 %v2779, %v280
    %v2793 = vmul.f32 %v2782, %v280
    %v2794 = vmul.f32 %v2785, %v280
    %v2795 = vmul.f32 %v2788, %v280
    %v2796 = vmul.f32 %v2791, %v280
    %v2797 = vadd.f32 %v2792, 1e-05
    %v2798 = vadd.f32 %v2793, 1e-05
    %v2799 = vadd.f32 %v2794, 1e-05
    %v2800 = vadd.f32 %v2795, 1e-05
    %v2801 = vadd.f32 %v2796, 1e-05
    %v2802 = vrsqrt.pop %v2797
    %v2803 = vmul.f32 %v2802, %v2797
    %v2804 = vmul.f32 %v2803, %v2802
    %v2805 = vmul.f32 0.5, %v2804
    %v2806 = vsub.f32 1.5, %v2805
    %v2807 = vmul.f32 %v2802, %v2806
    %vm2808 = vweird.f32 %v2797
    %vm2809 = vweird.f32 %v2802
    %vm2810 = vmor %vm2808, %vm2809
    %v2811 = vsel %vm2810, %v2802, %v2807
    %v2812 = vrsqrt.pop %v2798
    %v2813 = vmul.f32 %v2812, %v2798
    %v2814 = vmul.f32 %v2813, %v2812
    %v2815 = vmul.f32 0.5, %v2814
    %v2816 = vsub.f32 1.5, %v2815
    %v2817 = vmul.f32 %v2812, %v2816
    %vm2818 = vweird.f32 %v2798
    %vm2819 = vweird.f32 %v2812
    %vm2820 = vmor %vm2818, %vm2819
    %v2821 = vsel %vm2820, %v2812, %v2817
    %v2822 = vrsqrt.pop %v2799
    %v2823 = vmul.f32 %v2822, %v2799
    %v2824 = vmul.f32 %v2823, %v2822
    %v2825 = vmul.f32 0.5, %v2824
    %v2826 = vsub.f32 1.5, %v2825
    %v2827 = vmul.f32 %v2822, %v2826
    %vm2828 = vweird.f32 %v2799
    %vm2829 = vweird.f32 %v2822
    %vm2830 = vmor %vm2828, %vm2829
    %v2831 = vsel %vm2830, %v2822, %v2827
    %v2832 = vrsqrt.pop %v2800
    %v2833 = vmul.f32 %v2832, %v2800
    %v2834 = vmul.f32 %v2833, %v2832
    %v2835 = vmul.f32 0.5, %v2834
    %v2836 = vsub.f32 1.5, %v2835
    %v2837 = vmul.f32 %v2832, %v2836
    %vm2838 = vweird.f32 %v2800
    %vm2839 = vweird.f32 %v2832
    %vm2840 = vmor %vm2838, %vm2839
    %v2841 = vsel %vm2840, %v2832, %v2837
    %v2842 = vrsqrt.pop %v2801
    %v2843 = vmul.f32 %v2842, %v2801
    %v2844 = vmul.f32 %v2843, %v2842
    %v2845 = vmul.f32 0.5, %v2844
    %v2846 = vsub.f32 1.5, %v2845
    %v2847 = vmul.f32 %v2842, %v2846
    %vm2848 = vweird.f32 %v2801
    %vm2849 = vweird.f32 %v2842
    %vm2850 = vmor %vm2848, %vm2849
    %v2851 = vsel %vm2850, %v2842, %v2847
    %v2852 = vmul.f32 %v2767, %v2811
    %v2853 = vmul.f32 %v2768, %v2821
    %v2854 = vmul.f32 %v2769, %v2831
    %v2855 = vmul.f32 %v2770, %v2841
    %v2856 = vmul.f32 %v2771, %v2851
    %v2858 = vperm.slane %v2744, 0
    %v2860 = vmul.f32 %v2852, %v2858
    %v2861 = vmul.f32 %v2853, %v2858
    %v2862 = vmul.f32 %v2854, %v2858
    %v2863 = vmul.f32 %v2855, %v2858
    %v2864 = vmul.f32 %v2856, %v2858
    %v2866 = vperm.slane %v2746, 0
    %v2868 = vadd.f32 %v2860, %v2866
    %v2869 = vadd.f32 %v2861, %v2866
    %v2870 = vadd.f32 %v2862, %v2866
    %v2871 = vadd.f32 %v2863, %v2866
    %v2872 = vadd.f32 %v2864, %v2866
    %v2873 = vpack.c.bf16 %v2869, %v2868
    %v2874 = vpack.c.bf16 %v2871, %v2870
    %v2875 = vpack.c.bf16 %v2872, %v2872
    %s2876 = scalar_lea.vmem %s15, 16
    %v2877 = vld [vmem:[%s2876] sm:$0xf]
    %v2878 = vld [vmem:[%s2876 + $0x4] sm:$0xf]
    %v2879 = vld [vmem:[%s2876 + $0x8] sm:$0xf]
    %v2880 = vld [vmem:[%s2876 + $0xc] sm:$0xf]
    %s2881 = scalar_lea.vmem %s16, 1
    %v2882 = vld [vmem:[%s2881] sm:$0x1]
    %v2884 = vperm.slane %v2882, 0
    %v2890 = vunpack.c.l.b16 %v2877
    %v2891 = vunpack.c.l.b16 %v2878
    %v2892 = vunpack.c.l.b16 %v2879
    %v2893 = vunpack.c.l.b16 %v2880
    %v2894 = vpack.c.b16 %v2891, %v2890
    %v2895 = vpack.c.b16 %v2893, %v2892
    %v2899 = vsel %vm258, %v2873, 0
    %v2902 = vsel %vm258, %v2874, 0
    %v2905 = vsel %vm258, %v2875, 0
    %2907 = vmatpush.bf16.msra.mxu0 0
    %2908 = vmatpush.bf16.msra.mxu0 0
    %2909 = vmatpush.bf16.msra.mxu0 0
    %2910 = vmatpush.bf16.msra.mxu0 0
    %2911 = vmatpush.bf16.msra.mxu0 0
    %2912 = vmatpush.bf16.msra.mxu0 0
    %2913 = vmatpush.bf16.msra.mxu0 %v2895
    %2914 = vmatpush.bf16.msra.mxu0 %v2894
    %2915 = vmatmul.bf16.gmra.mxu0 %v2899
    %v2916 = vpop.f32.mrf.mxu0
    %v2917 = vadd.f32 %v2884, %v2916
    %v2918 = vpop.f32.mrf.mxu0
    %v2919 = vadd.f32 %v2884, %v2918
    %2920 = vmatmul.bf16.gmra.mxu0 %v2902
    %v2921 = vpop.f32.mrf.mxu0
    %v2922 = vadd.f32 %v2884, %v2921
    %v2923 = vpop.f32.mrf.mxu0
    %v2924 = vadd.f32 %v2884, %v2923
    %2925 = vmatmul.bf16.gmra.mxu0 %v2905
    %v2926 = vpop.f32.mrf.mxu0
    %v2927 = vadd.f32 %v2884, %v2926
    %v2928 = vpop.f32.mrf.mxu0
    %2929 = vdwg.mxu0
    %v2930 = vmul.f32 %v2917, 1.702
    %v2931 = vmul.f32 %v2919, 1.702
    %v2932 = vmul.f32 %v2922, 1.702
    %v2933 = vmul.f32 %v2924, 1.702
    %v2934 = vmul.f32 %v2927, 1.702
    %v2935 = vxor.u32 %v2930, 2147483648
    %v2936 = vxor.u32 %v2931, 2147483648
    %v2937 = vxor.u32 %v2932, 2147483648
    %v2938 = vxor.u32 %v2933, 2147483648
    %v2939 = vxor.u32 %v2934, 2147483648
    %v2940 = vmul.f32 %v2935, 1.442695
    %v2941 = vpow.pop %v2940
    %v2942 = vmul.f32 %v2936, 1.442695
    %v2943 = vpow.pop %v2942
    %v2944 = vmul.f32 %v2937, 1.442695
    %v2945 = vpow.pop %v2944
    %v2946 = vmul.f32 %v2938, 1.442695
    %v2947 = vpow.pop %v2946
    %v2948 = vmul.f32 %v2939, 1.442695
    %v2949 = vpow.pop %v2948
    %v2950 = vadd.f32 %v2941, 1.0
    %v2951 = vadd.f32 %v2943, 1.0
    %v2952 = vadd.f32 %v2945, 1.0
    %v2953 = vadd.f32 %v2947, 1.0
    %v2954 = vadd.f32 %v2949, 1.0
    %v2955 = vrcp.pop %v2950
    %v2956 = vmul.f32 %v2950, %v2955
    %v2957 = vsub.f32 1.0, %v2956
    %v2958 = vmul.f32 %v2955, %v2957
    %v2959 = vadd.f32 %v2955, %v2958
    %vm2960 = vweird.f32 %v2950
    %vm2961 = vweird.f32 %v2955
    %vm2962 = vmor %vm2960, %vm2961
    %v2963 = vsel %vm2962, %v2955, %v2959
    %v2964 = vand.u32 2147483647, %v2950
    %vm2965 = vcmp.eq.f32.partialorder %v2964, 8.507059e+37
    %v2966 = vand.u32 %v2950, 2147483648
    %v2967 = vor.u32 1.1754944e-38, %v2966
    %v2968 = vsel %vm2965, %v2967, %v2963
    %v2969 = vmul.f32 1.0, %v2968
    %v2970 = vrcp.pop %v2951
    %v2971 = vmul.f32 %v2951, %v2970
    %v2972 = vsub.f32 1.0, %v2971
    %v2973 = vmul.f32 %v2970, %v2972
    %v2974 = vadd.f32 %v2970, %v2973
    %vm2975 = vweird.f32 %v2951
    %vm2976 = vweird.f32 %v2970
    %vm2977 = vmor %vm2975, %vm2976
    %v2978 = vsel %vm2977, %v2970, %v2974
    %v2979 = vand.u32 2147483647, %v2951
    %vm2980 = vcmp.eq.f32.partialorder %v2979, 8.507059e+37
    %v2981 = vand.u32 %v2951, 2147483648
    %v2982 = vor.u32 1.1754944e-38, %v2981
    %v2983 = vsel %vm2980, %v2982, %v2978
    %v2984 = vmul.f32 1.0, %v2983
    %v2985 = vrcp.pop %v2952
    %v2986 = vmul.f32 %v2952, %v2985
    %v2987 = vsub.f32 1.0, %v2986
    %v2988 = vmul.f32 %v2985, %v2987
    %v2989 = vadd.f32 %v2985, %v2988
    %vm2990 = vweird.f32 %v2952
    %vm2991 = vweird.f32 %v2985
    %vm2992 = vmor %vm2990, %vm2991
    %v2993 = vsel %vm2992, %v2985, %v2989
    %v2994 = vand.u32 2147483647, %v2952
    %vm2995 = vcmp.eq.f32.partialorder %v2994, 8.507059e+37
    %v2996 = vand.u32 %v2952, 2147483648
    %v2997 = vor.u32 1.1754944e-38, %v2996
    %v2998 = vsel %vm2995, %v2997, %v2993
    %v2999 = vmul.f32 1.0, %v2998
    %v3000 = vrcp.pop %v2953
    %v3001 = vmul.f32 %v2953, %v3000
    %v3002 = vsub.f32 1.0, %v3001
    %v3003 = vmul.f32 %v3000, %v3002
    %v3004 = vadd.f32 %v3000, %v3003
    %vm3005 = vweird.f32 %v2953
    %vm3006 = vweird.f32 %v3000
    %vm3007 = vmor %vm3005, %vm3006
    %v3008 = vsel %vm3007, %v3000, %v3004
    %v3009 = vand.u32 2147483647, %v2953
    %vm3010 = vcmp.eq.f32.partialorder %v3009, 8.507059e+37
    %v3011 = vand.u32 %v2953, 2147483648
    %v3012 = vor.u32 1.1754944e-38, %v3011
    %v3013 = vsel %vm3010, %v3012, %v3008
    %v3014 = vmul.f32 1.0, %v3013
    %v3015 = vrcp.pop %v2954
    %v3016 = vmul.f32 %v2954, %v3015
    %v3017 = vsub.f32 1.0, %v3016
    %v3018 = vmul.f32 %v3015, %v3017
    %v3019 = vadd.f32 %v3015, %v3018
    %vm3020 = vweird.f32 %v2954
    %vm3021 = vweird.f32 %v3015
    %vm3022 = vmor %vm3020, %vm3021
    %v3023 = vsel %vm3022, %v3015, %v3019
    %v3024 = vand.u32 2147483647, %v2954
    %vm3025 = vcmp.eq.f32.partialorder %v3024, 8.507059e+37
    %v3026 = vand.u32 %v2954, 2147483648
    %v3027 = vor.u32 1.1754944e-38, %v3026
    %v3028 = vsel %vm3025, %v3027, %v3023
    %v3029 = vmul.f32 1.0, %v3028
    %v3030 = vmul.f32 %v2917, %v2969
    %v3031 = vmul.f32 %v2919, %v2984
    %v3032 = vmul.f32 %v2922, %v2999
    %v3033 = vmul.f32 %v2924, %v3014
    %v3034 = vmul.f32 %v2927, %v3029
    %v3035 = vpack.c.bf16 %v3031, %v3030
    %v3036 = vpack.c.bf16 %v3033, %v3032
    %v3037 = vpack.c.bf16 %v3034, %v3034
    %s3038 = scalar_lea.vmem %s17, 64
    %v3039 = vld [vmem:[%s3038] sm:$0xf]
    %v3040 = vld [vmem:[%s3038 + $0x4] sm:$0xf]
    %v3041 = vld [vmem:[%s3038 + $0x8] sm:$0xf]
    %v3042 = vld [vmem:[%s3038 + $0xc] sm:$0xf]
    %v3043 = vld [vmem:[%s3038 + $0x10] sm:$0xf]
    %v3044 = vld [vmem:[%s3038 + $0x14] sm:$0xf]
    %v3045 = vld [vmem:[%s3038 + $0x18] sm:$0xf]
    %v3046 = vld [vmem:[%s3038 + $0x1c] sm:$0xf]
    %v3047 = vld [vmem:[%s3038 + $0x20] sm:$0xf]
    %v3048 = vld [vmem:[%s3038 + $0x24] sm:$0xf]
    %v3049 = vld [vmem:[%s3038 + $0x28] sm:$0xf]
    %v3050 = vld [vmem:[%s3038 + $0x2c] sm:$0xf]
    %v3051 = vld [vmem:[%s3038 + $0x30] sm:$0xf]
    %v3052 = vld [vmem:[%s3038 + $0x34] sm:$0xf]
    %v3053 = vld [vmem:[%s3038 + $0x38] sm:$0xf]
    %v3054 = vld [vmem:[%s3038 + $0x3c] sm:$0xf]
    %s3055 = scalar_lea.vmem %s18, 1
    %v3056 = vld [vmem:[%s3055] sm:$0x1]
    %v3058 = vperm.slane %v3056, 0
    %v3076 = vunpack.c.l.b16 %v3039
    %v3077 = vunpack.c.l.b16 %v3040
    %v3078 = vunpack.c.l.b16 %v3041
    %v3079 = vunpack.c.l.b16 %v3042
    %v3080 = vunpack.c.l.b16 %v3043
    %v3081 = vunpack.c.l.b16 %v3044
    %v3082 = vunpack.c.l.b16 %v3045
    %v3083 = vunpack.c.l.b16 %v3046
    %v3084 = vunpack.c.l.b16 %v3047
    %v3085 = vunpack.c.l.b16 %v3048
    %v3086 = vunpack.c.l.b16 %v3049
    %v3087 = vunpack.c.l.b16 %v3050
    %v3088 = vunpack.c.l.b16 %v3051
    %v3089 = vunpack.c.l.b16 %v3052
    %v3090 = vunpack.c.l.b16 %v3053
    %v3091 = vunpack.c.l.b16 %v3054
    %v3092 = vpack.c.b16 %v3077, %v3076
    %v3093 = vpack.c.b16 %v3079, %v3078
    %v3094 = vpack.c.b16 %v3081, %v3080
    %v3095 = vpack.c.b16 %v3083, %v3082
    %v3096 = vpack.c.b16 %v3085, %v3084
    %v3097 = vpack.c.b16 %v3087, %v3086
    %v3098 = vpack.c.b16 %v3089, %v3088
    %v3099 = vpack.c.b16 %v3091, %v3090
    %3108 = vmatpush.bf16.msra.mxu0 %v3099
    %3109 = vmatpush.bf16.msra.mxu0 %v3098
    %3110 = vmatpush.bf16.msra.mxu0 %v3097
    %3111 = vmatpush.bf16.msra.mxu0 %v3096
    %3112 = vmatpush.bf16.msra.mxu0 %v3095
    %3113 = vmatpush.bf16.msra.mxu0 %v3094
    %3114 = vmatpush.bf16.msra.mxu0 %v3093
    %3115 = vmatpush.bf16.msra.mxu0 %v3092
    %3116 = vmatmul.bf16.gmra.mxu0 %v3035
    %v3117 = vpop.f32.mrf.mxu0
    %v3118 = vadd.f32 %v3058, %v3117
    %v3119 = vpop.f32.mrf.mxu0
    %v3120 = vadd.f32 %v3058, %v3119
    %3121 = vmatmul.bf16.gmra.mxu0 %v3036
    %v3122 = vpop.f32.mrf.mxu0
    %v3123 = vadd.f32 %v3058, %v3122
    %v3124 = vpop.f32.mrf.mxu0
    %v3125 = vadd.f32 %v3058, %v3124
    %3126 = vmatmul.bf16.gmra.mxu0 %v3037
    %v3127 = vpop.f32.mrf.mxu0
    %v3128 = vadd.f32 %v3058, %v3127
    %v3129 = vpop.f32.mrf.mxu0
    %3130 = vdwg.mxu0
    %v3131 = vadd.f32 %v2738, %v3118
    %v3132 = vadd.f32 %v2739, %v3120
    %v3133 = vadd.f32 %v2740, %v3123
    %v3134 = vadd.f32 %v2741, %v3125
    %v3135 = vadd.f32 %v2742, %v3128
    %v3136 = vld [vmem:[%s6] sm:$0xff]
    %v3138 = vsel %vm669, %v3136, 0
    %3140 = vmatpush.msra.mxu0 0.0
    %3141 = vmatpush.msra.mxu0 0.0
    %3142 = vmatpush.msra.mxu0 0.0
    %3143 = vmatpush.msra.mxu0 0.0
    %3144 = vmatpush.msra.mxu0 0.0
    %3145 = vmatpush.msra.mxu0 0.0
    %3146 = vmatpush.msra.mxu0 0.0
    %3147 = vmatpush.msra.mxu0 0.0
    %3148 = vmatpush.msra.mxu0 0.0
    %3149 = vmatpush.msra.mxu0 0.0
    %3150 = vmatpush.msra.mxu0 0.0
    %3151 = vmatpush.msra.mxu0 %v3135
    %3152 = vmatpush.msra.mxu0 %v3134
    %3153 = vmatpush.msra.mxu0 %v3133
    %3154 = vmatpush.msra.mxu0 %v3132
    %3155 = vmatpush.msra.mxu0 %v3131
    %3156 = vmatmul.f32.gmra.mxu0 %v3138
    %v3157 = vpop.f32.mrf.mxu0
    %v3158 = vadd.f32 0.0, %v3157
    %3159 = vdwg.mxu0
    %v3160 = vpack.c.bf16 %v3158, %v3158
    %v3161 = vld [vmem:[%s19] sm:$0xf]
    %v3162 = vld [vmem:[%s19 + $0x4] sm:$0xf]
    %v3163 = vld [vmem:[%s19 + $0x8] sm:$0xf]
    %v3164 = vld [vmem:[%s19 + $0xc] sm:$0xf]
    %v3165 = vld [vmem:[%s20] sm:$0x1]
    %v3167 = vperm.slane %v3165, 0
    %v3173 = vunpack.c.l.b16 %v3161
    %v3174 = vunpack.c.l.b16 %v3162
    %v3175 = vunpack.c.l.b16 %v3163
    %v3176 = vunpack.c.l.b16 %v3164
    %v3177 = vpack.c.b16 %v3174, %v3173
    %v3178 = vpack.c.b16 %v3176, %v3175
    %v3182 = vsel %vm258, %v3160, 0
    %3184 = vmatpush.bf16.msra.mxu0 0
    %3185 = vmatpush.bf16.msra.mxu0 0
    %3186 = vmatpush.bf16.msra.mxu0 0
    %3187 = vmatpush.bf16.msra.mxu0 0
    %3188 = vmatpush.bf16.msra.mxu0 0
    %3189 = vmatpush.bf16.msra.mxu0 0
    %3190 = vmatpush.bf16.msra.mxu0 %v3178
    %3191 = vmatpush.bf16.msra.mxu0 %v3177
    %3192 = vmatmul.bf16.gmra.mxu0 %v3182
    %v3193 = vpop.f32.mrf.mxu0
    %v3194 = vadd.f32 %v3167, %v3193
    %v3195 = vpop.f32.mrf.mxu0
    %3196 = vdwg.mxu0
    %v3197 = vsel %vm258, %v3158, 0.0
    %3198 = vst [vmem:[#allocation2] sm:$0xff] %v3194
    %3199 = vst [vmem:[#allocation2 + $0x8] sm:$0xff] %v3197
    // Predicated region
    $region86: #{tpu_custom_call.1} parent=1 // pred_check
      _
    $region87: #{tpu_custom_call.1} parent=1 // pred_check_branch
      %3201 = sbr.rel (0) target = $region89
    $region88: #{tpu_custom_call.1} parent=1 // pred_region
      %3203 = vsyncadd [#allocation3], 0
      %s3205 = sshll.u32 [#allocation2], 4
      %s3206 = int_to_ptr.vmem [resolvable:$true] %s3205
      %s3207 = sshll.u32 %s21, 4
      %s3208 = int_to_ptr.hbm [resolvable:$true] %s3207
      %3210 = dma.vmem_to_hbm [thread:$0]  %s3206, 256, %s3208, [#allocation3]
    $region89: #{tpu_custom_call.1} parent=1 // pred_fallthru
      _
    // Predicated region
    $region90: #{tpu_custom_call.1} parent=1 // pred_check
      _
    $region91: #{tpu_custom_call.1} parent=1 // pred_check_branch
      %3212 = sbr.rel (0) target = $region93
    $region92: #{tpu_custom_call.1} parent=1 // pred_region
      %3214 = dma.done [#allocation3], 256
    $region93: #{tpu_custom_call.1} parent=1 // pred_fallthru
      _
    %3215 = vsyncpa [#allocation3], 1

</llo_original>
